<compile_context>
chip_gen: v5e
topology: v5e:2x2
jax: 0.10.0
libtpu: 0.0.40
codegen_flags: <defaults>
</compile_context>

<pallas_src>
import functools

import jax
import jax.numpy as jnp
from jax import lax
from jax.experimental import pallas as pl
from jax.experimental.pallas import tpu as pltpu

SCALE = 2          # module shapes only line up for scale_factor=2
K = 4              # ConvTranspose2d kernel size


def _fused_kernel(xw_ref, w_ref, o_ref):
    """One (batch, row-tile) grid step: all 4 output phases for TA input rows.

    xw_ref : (1, 1, TA+2, W+2, C)  zero-padded input rows [t*TA, t*TA+TA+2)
    w_ref  : (16, C, C)            folded weights, index ((ph*2+pw)*2+dh)*2+dw
    o_ref  : (1, 2, 2, TA, W, C)   o[0, ph, pw, a, b, :] == out[2a+ph, 2b+pw, :]
    """
    TA, W, C = o_ref.shape[3], o_ref.shape[4], o_ref.shape[5]
    xw = xw_ref[0, 0]                                    # (TA+2, W+2, C)

    # 9 shifted views shared by the 4 phases (each phase uses a 2x2 subset).
    # Row shifts select whole (sublane, lane) tiles along the leading dim
    # (free); column shifts are small static slices with offsets {0, 1, 2}.
    views = {}
    for r in range(3):
        for c in range(3):
            views[(r, c)] = xw[r:r + TA, c:c + W, :].reshape(TA * W, C)

    for ph in range(2):
        for pw in range(2):
            # 4 channel matmuls per phase, accumulated in f32 on the MXU.
            # LHS stays in the input dtype (no f32 upcast before the dot).
            acc = None
            for dh in range(2):
                for dw in range(2):
                    idx = ((ph * 2 + pw) * 2 + dh) * 2 + dw
                    part = jnp.dot(views[(ph + dh, pw + dw)], w_ref[idx],
                                   preferred_element_type=jnp.float32)
                    acc = part if acc is None else acc + part
            o_ref[0, ph, pw] = acc.reshape(TA, W, C).astype(o_ref.dtype)


def _fold_weights(w_conv, w_reduce, C):
    """Fold the 1x1 reduce conv into per-(phase, tap) channel matrices.

    For output phase (ph, pw) and tap offset (dh, dw) in {0,1}^2:
        out[2a+ph, 2b+pw] += x[a-1+ph+dh, b-1+pw+dw] @ Wfold[ph, pw, dh, dw]
    Wfold folds (a) the ConvTranspose2d tap w_conv[:, :, 3-ph-2dh, 3-pw-2dw],
    (b) the reduce's x3 block, and, on the single tap that reads x[a, b]
    (dh == 1-ph, dw == 1-pw), (c) the nearest-upsample (x1) and pixel-shuffle
    (x2) contributions of the reduce.  Concat / reduce channel order is
    [x1 (C), x2 (C/4), x3 (C)], matching torch.cat([x1, x2, x3], dim=1).
    """
    Ch = C // (SCALE * SCALE)
    wr = w_reduce[:, :, 0, 0].astype(jnp.float32)        # (C, C + Ch + C)
    wr1 = wr[:, :C].T                                     # (C, C)   x1 block
    wr2 = wr[:, C:C + Ch]                                 # (C, Ch)  x2 block
    wr3 = wr[:, C + Ch:].T                                # (C, C)   x3 block
    wc = w_conv.astype(jnp.float32)                       # (Cin, Cout, 4, 4)

    mats = []
    for ph in range(2):
        for pw in range(2):
            for dh in range(2):
                for dw in range(2):
                    tap = wc[:, :, 3 - ph - 2 * dh, 3 - pw - 2 * dw]  # (Cin,Cout)
                    m = tap @ wr3
                    if dh == 1 - ph and dw == 1 - pw:      # this tap reads x[a, b]
                        m = m + wr1                         # nearest upsample
                        rows = (jnp.arange(Ch) * (SCALE * SCALE)
                                + ph * SCALE + pw)          # pixel-shuffle channels
                        m = m.at[rows, :].add(wr2.T)
                    mats.append(m)
    return jnp.stack(mats)                                 # (16, C, C)


def _row_tile(H, W, C):
    # Keep the in-kernel f32 working set (~10 x TA*W*C x 4 B) plus the
    # double-buffered I/O blocks comfortably inside the default scoped VMEM
    # on all generations (v7x has only 64 MiB physical VMEM).
    max_elems = 128 * 1024                                 # cap on TA * W * C
    ta = max(1, max_elems // max(1, W * C))
    return int(min(ta, H))


@functools.partial(jax.jit, static_argnames=("scale",))
def pixel_shuffle2d(x_nchw, w_conv, w_reduce, scale=SCALE):
    """w_conv:   (Cin, Cout, 4, 4)       PyTorch ConvTranspose2d weight
       w_reduce: (Cout, C/4 + 2C, 1, 1)  PyTorch Conv2d weight (cat order x1,x2,x3)
    """
    assert scale == 2, "shapes only line up for scale_factor=2"
    N, C, H, W = x_nchw.shape
    x = jnp.transpose(x_nchw, (0, 2, 3, 1))               # NHWC

    wfold = _fold_weights(w_conv, w_reduce, C).astype(x.dtype)

    # ---- spatial row tiling (2-row halo baked into per-tile windows) ----
    TA = _row_tile(H, W, C)
    n_tiles = -(-H // TA)
    Hp = n_tiles * TA
    Wp = W + 2
    # 1-pixel zero pad left/right/top; bottom pad also absorbs H -> Hp.
    xp = jnp.pad(x, ((0, 0), (1, Hp - H + 1), (1, 1), (0, 0)))
    starts = jnp.arange(n_tiles) * TA
    xw = jax.vmap(lambda s: lax.dynamic_slice_in_dim(xp, s, TA + 2, axis=1),
                  out_axes=1)(starts)                      # (N, n_tiles, TA+2, Wp, C)

    out = pl.pallas_call(
        _fused_kernel,
        out_shape=jax.ShapeDtypeStruct((N, 2, 2, Hp, W, C), x.dtype),
        grid_spec=pltpu.PrefetchScalarGridSpec(
            num_scalar_prefetch=0,
            grid=(N, n_tiles),
            in_specs=[
                pl.BlockSpec((1, 1, TA + 2, Wp, C), lambda n, t: (n, t, 0, 0, 0)),
                pl.BlockSpec((16, C, C), lambda n, t: (0, 0, 0)),
            ],
            out_specs=pl.BlockSpec((1, 2, 2, TA, W, C),
                                   lambda n, t: (n, 0, 0, t, 0, 0)),
        ),
        compiler_params=pltpu.CompilerParams(
            dimension_semantics=("parallel", "parallel"),
            vmem_limit_bytes=32 * 1024 * 1024,
        ),
    )(xw, wfold)

    # (N, 2, 2, Hp, W, C) -> (N, C, H, 2, W, 2) -> NCHW (N, C, 2H, 2W)
    out = out[:, :, :, :H]
    out = jnp.transpose(out, (0, 5, 3, 1, 4, 2)).reshape(N, C, 2 * H, 2 * W)
    return out


def _reference(x_nchw, w_conv, w_reduce, scale=SCALE):
    """Pure-JAX reference (XLA convs) for correctness checking."""
    N, C, H, W = x_nchw.shape
    Ch = C // (scale * scale)
    x = jnp.transpose(x_nchw, (0, 2, 3, 1))
    x1 = jnp.repeat(jnp.repeat(x, scale, axis=1), scale, axis=2)
    x2 = x.reshape(N, H, W, Ch, scale, scale)
    x2 = jnp.transpose(x2, (0, 1, 4, 2, 5, 3)).reshape(N, H * scale, W * scale, Ch)
    w_hwio = jnp.transpose(w_conv[:, :, ::-1, ::-1], (2, 3, 0, 1))
    x3 = lax.conv_general_dilated(
        x, w_hwio, window_strides=(1, 1),
        padding=((K - 2, K - 2), (K - 2, K - 2)),
        lhs_dilation=(scale, scale),
        dimension_numbers=('NHWC', 'HWIO', 'NHWC'))
    cat = jnp.concatenate([x1, x2, x3], axis=-1)
    out = jnp.einsum('nhwc,oc->nhwo', cat, w_reduce[:, :, 0, 0])
    return jnp.transpose(out, (0, 3, 1, 2))


if __name__ == "__main__":
    out_dim = 4
    key = jax.random.PRNGKey(0)
    kx, kc, kr = jax.random.split(key, 3)

    # deterministic synthetic params (shapes from the module's __init__)
    x = jax.random.normal(kx, (2, out_dim, 16, 16), jnp.float32)
    w_conv = 0.1 * jax.random.normal(kc, (out_dim, out_dim, K, K), jnp.float32)
    hidden = out_dim // (SCALE * SCALE)
    w_reduce = 0.1 * jax.random.normal(
        kr, (out_dim, hidden + 2 * out_dim, 1, 1), jnp.float32)

    out = jax.block_until_ready(pixel_shuffle2d(x, w_conv, w_reduce))
    ref = _reference(x, w_conv, w_reduce)

    assert out.shape == (2, out_dim, 32, 32), out.shape
    assert jnp.allclose(out, ref, atol=1e-4, rtol=1e-4), float(
        jnp.max(jnp.abs(out - ref)))
    print("KERNEL_OK")
</pallas_src>

<mosaic_0001>
module attributes {stable_mosaic.version = 11 : i64} {
  func.func @_fused_kernel(%arg0: i32, %arg1: i32, %arg2: memref<1x1x18x18x4xf32, #tpu.memory_space<vmem>>, %arg3: memref<16x4x4xf32, #tpu.memory_space<vmem>>, %arg4: memref<1x2x2x16x16x4xf32, #tpu.memory_space<vmem>>) attributes {dimension_semantics = [#tpu.dimension_semantics<parallel>, #tpu.dimension_semantics<parallel>], iteration_bounds = array<i64: 2, 1>, scalar_prefetch = 0 : i64, scratch_operands = 0 : i64, tpu.core_type = #tpu.core_type<tc>, window_params = [{transform_indices = @transform_0, window_bounds = array<i64: 1, 1, 18, 18, 4>}, {pipeline_mode = #tpu.pipeline_mode<synchronous>, transform_indices = @transform_1, window_bounds = array<i64: 16, 4, 4>}, {transform_indices = @transform_2, window_bounds = array<i64: 1, 2, 2, 16, 16, 4>}]} {
    %c0 = arith.constant 0 : index
    %c0_0 = arith.constant 0 : index
    %c0_1 = arith.constant 0 : index
    %c0_2 = arith.constant 0 : index
    %c0_3 = arith.constant 0 : index
    %0 = vector.load %arg2[%c0, %c0_0, %c0_1, %c0_2, %c0_3] : memref<1x1x18x18x4xf32, #tpu.memory_space<vmem>>, vector<1x1x18x18x4xf32>
    %1 = vector.shape_cast %0 : vector<1x1x18x18x4xf32> to vector<18x18x4xf32>
    %2 = vector.extract_strided_slice %1 {offsets = [0, 0, 0], sizes = [16, 16, 4], strides = [1, 1, 1]} : vector<18x18x4xf32> to vector<16x16x4xf32>
    %3 = vector.shape_cast %2 : vector<16x16x4xf32> to vector<256x4xf32>
    %4 = vector.extract_strided_slice %1 {offsets = [0, 1, 0], sizes = [16, 16, 4], strides = [1, 1, 1]} : vector<18x18x4xf32> to vector<16x16x4xf32>
    %5 = vector.shape_cast %4 : vector<16x16x4xf32> to vector<256x4xf32>
    %6 = vector.extract_strided_slice %1 {offsets = [0, 2, 0], sizes = [16, 16, 4], strides = [1, 1, 1]} : vector<18x18x4xf32> to vector<16x16x4xf32>
    %7 = vector.shape_cast %6 : vector<16x16x4xf32> to vector<256x4xf32>
    %8 = vector.extract_strided_slice %1 {offsets = [1, 0, 0], sizes = [16, 16, 4], strides = [1, 1, 1]} : vector<18x18x4xf32> to vector<16x16x4xf32>
    %9 = vector.shape_cast %8 : vector<16x16x4xf32> to vector<256x4xf32>
    %10 = vector.extract_strided_slice %1 {offsets = [1, 1, 0], sizes = [16, 16, 4], strides = [1, 1, 1]} : vector<18x18x4xf32> to vector<16x16x4xf32>
    %11 = vector.shape_cast %10 : vector<16x16x4xf32> to vector<256x4xf32>
    %12 = vector.extract_strided_slice %1 {offsets = [1, 2, 0], sizes = [16, 16, 4], strides = [1, 1, 1]} : vector<18x18x4xf32> to vector<16x16x4xf32>
    %13 = vector.shape_cast %12 : vector<16x16x4xf32> to vector<256x4xf32>
    %14 = vector.extract_strided_slice %1 {offsets = [2, 0, 0], sizes = [16, 16, 4], strides = [1, 1, 1]} : vector<18x18x4xf32> to vector<16x16x4xf32>
    %15 = vector.shape_cast %14 : vector<16x16x4xf32> to vector<256x4xf32>
    %16 = vector.extract_strided_slice %1 {offsets = [2, 1, 0], sizes = [16, 16, 4], strides = [1, 1, 1]} : vector<18x18x4xf32> to vector<16x16x4xf32>
    %17 = vector.shape_cast %16 : vector<16x16x4xf32> to vector<256x4xf32>
    %18 = vector.extract_strided_slice %1 {offsets = [2, 2, 0], sizes = [16, 16, 4], strides = [1, 1, 1]} : vector<18x18x4xf32> to vector<16x16x4xf32>
    %19 = vector.shape_cast %18 : vector<16x16x4xf32> to vector<256x4xf32>
    %c0_4 = arith.constant 0 : index
    %c0_5 = arith.constant 0 : index
    %c0_6 = arith.constant 0 : index
    %20 = vector.load %arg3[%c0_4, %c0_5, %c0_6] : memref<16x4x4xf32, #tpu.memory_space<vmem>>, vector<1x4x4xf32>
    %21 = vector.shape_cast %20 : vector<1x4x4xf32> to vector<4x4xf32>
    %cst = arith.constant dense<0.000000e+00> : vector<256x4xf32>
    %22 = tpu.matmul %3, %21, %cst {dimension_numbers = #tpu.dot_dimension_numbers<[1], [0], [0], [1], [0, 0, 1, 1], [], []>} : vector<256x4xf32>, vector<4x4xf32>, vector<256x4xf32> -> vector<256x4xf32>
    %c1 = arith.constant 1 : index
    %c0_7 = arith.constant 0 : index
    %c0_8 = arith.constant 0 : index
    %23 = vector.load %arg3[%c1, %c0_7, %c0_8] : memref<16x4x4xf32, #tpu.memory_space<vmem>>, vector<1x4x4xf32>
    %24 = vector.shape_cast %23 : vector<1x4x4xf32> to vector<4x4xf32>
    %cst_9 = arith.constant dense<0.000000e+00> : vector<256x4xf32>
    %25 = tpu.matmul %5, %24, %cst_9 {dimension_numbers = #tpu.dot_dimension_numbers<[1], [0], [0], [1], [0, 0, 1, 1], [], []>} : vector<256x4xf32>, vector<4x4xf32>, vector<256x4xf32> -> vector<256x4xf32>
    %26 = arith.addf %22, %25 : vector<256x4xf32>
    %c2 = arith.constant 2 : index
    %c0_10 = arith.constant 0 : index
    %c0_11 = arith.constant 0 : index
    %27 = vector.load %arg3[%c2, %c0_10, %c0_11] : memref<16x4x4xf32, #tpu.memory_space<vmem>>, vector<1x4x4xf32>
    %28 = vector.shape_cast %27 : vector<1x4x4xf32> to vector<4x4xf32>
    %cst_12 = arith.constant dense<0.000000e+00> : vector<256x4xf32>
    %29 = tpu.matmul %9, %28, %cst_12 {dimension_numbers = #tpu.dot_dimension_numbers<[1], [0], [0], [1], [0, 0, 1, 1], [], []>} : vector<256x4xf32>, vector<4x4xf32>, vector<256x4xf32> -> vector<256x4xf32>
    %30 = arith.addf %26, %29 : vector<256x4xf32>
    %c3 = arith.constant 3 : index
    %c0_13 = arith.constant 0 : index
    %c0_14 = arith.constant 0 : index
    %31 = vector.load %arg3[%c3, %c0_13, %c0_14] : memref<16x4x4xf32, #tpu.memory_space<vmem>>, vector<1x4x4xf32>
    %32 = vector.shape_cast %31 : vector<1x4x4xf32> to vector<4x4xf32>
    %cst_15 = arith.constant dense<0.000000e+00> : vector<256x4xf32>
    %33 = tpu.matmul %11, %32, %cst_15 {dimension_numbers = #tpu.dot_dimension_numbers<[1], [0], [0], [1], [0, 0, 1, 1], [], []>} : vector<256x4xf32>, vector<4x4xf32>, vector<256x4xf32> -> vector<256x4xf32>
    %34 = arith.addf %30, %33 : vector<256x4xf32>
    %35 = vector.shape_cast %34 : vector<256x4xf32> to vector<16x16x4xf32>
    %c0_16 = arith.constant 0 : index
    %c0_17 = arith.constant 0 : index
    %c0_18 = arith.constant 0 : index
    %c0_19 = arith.constant 0 : index
    %c0_20 = arith.constant 0 : index
    %c0_21 = arith.constant 0 : index
    %36 = vector.load %arg4[%c0_16, %c0_17, %c0_18, %c0_19, %c0_20, %c0_21] : memref<1x2x2x16x16x4xf32, #tpu.memory_space<vmem>>, vector<1x1x1x16x16x4xf32>
    %37 = vector.shape_cast %36 : vector<1x1x1x16x16x4xf32> to vector<16x16x4xf32>
    %38 = vector.shape_cast %35 : vector<16x16x4xf32> to vector<1x1x1x16x16x4xf32>
    tpu.vector_store %arg4[%c0_16, %c0_17, %c0_18, %c0_19, %c0_20, %c0_21], %38 {strides = array<i32>} : memref<1x2x2x16x16x4xf32, #tpu.memory_space<vmem>>, vector<1x1x1x16x16x4xf32>,
    %c4 = arith.constant 4 : index
    %c0_22 = arith.constant 0 : index
    %c0_23 = arith.constant 0 : index
    %39 = vector.load %arg3[%c4, %c0_22, %c0_23] : memref<16x4x4xf32, #tpu.memory_space<vmem>>, vector<1x4x4xf32>
    %40 = vector.shape_cast %39 : vector<1x4x4xf32> to vector<4x4xf32>
    %cst_24 = arith.constant dense<0.000000e+00> : vector<256x4xf32>
    %41 = tpu.matmul %5, %40, %cst_24 {dimension_numbers = #tpu.dot_dimension_numbers<[1], [0], [0], [1], [0, 0, 1, 1], [], []>} : vector<256x4xf32>, vector<4x4xf32>, vector<256x4xf32> -> vector<256x4xf32>
    %c5 = arith.constant 5 : index
    %c0_25 = arith.constant 0 : index
    %c0_26 = arith.constant 0 : index
    %42 = vector.load %arg3[%c5, %c0_25, %c0_26] : memref<16x4x4xf32, #tpu.memory_space<vmem>>, vector<1x4x4xf32>
    %43 = vector.shape_cast %42 : vector<1x4x4xf32> to vector<4x4xf32>
    %cst_27 = arith.constant dense<0.000000e+00> : vector<256x4xf32>
    %44 = tpu.matmul %7, %43, %cst_27 {dimension_numbers = #tpu.dot_dimension_numbers<[1], [0], [0], [1], [0, 0, 1, 1], [], []>} : vector<256x4xf32>, vector<4x4xf32>, vector<256x4xf32> -> vector<256x4xf32>
    %45 = arith.addf %41, %44 : vector<256x4xf32>
    %c6 = arith.constant 6 : index
    %c0_28 = arith.constant 0 : index
    %c0_29 = arith.constant 0 : index
    %46 = vector.load %arg3[%c6, %c0_28, %c0_29] : memref<16x4x4xf32, #tpu.memory_space<vmem>>, vector<1x4x4xf32>
    %47 = vector.shape_cast %46 : vector<1x4x4xf32> to vector<4x4xf32>
    %cst_30 = arith.constant dense<0.000000e+00> : vector<256x4xf32>
    %48 = tpu.matmul %11, %47, %cst_30 {dimension_numbers = #tpu.dot_dimension_numbers<[1], [0], [0], [1], [0, 0, 1, 1], [], []>} : vector<256x4xf32>, vector<4x4xf32>, vector<256x4xf32> -> vector<256x4xf32>
    %49 = arith.addf %45, %48 : vector<256x4xf32>
    %c7 = arith.constant 7 : index
    %c0_31 = arith.constant 0 : index
    %c0_32 = arith.constant 0 : index
    %50 = vector.load %arg3[%c7, %c0_31, %c0_32] : memref<16x4x4xf32, #tpu.memory_space<vmem>>, vector<1x4x4xf32>
    %51 = vector.shape_cast %50 : vector<1x4x4xf32> to vector<4x4xf32>
    %cst_33 = arith.constant dense<0.000000e+00> : vector<256x4xf32>
    %52 = tpu.matmul %13, %51, %cst_33 {dimension_numbers = #tpu.dot_dimension_numbers<[1], [0], [0], [1], [0, 0, 1, 1], [], []>} : vector<256x4xf32>, vector<4x4xf32>, vector<256x4xf32> -> vector<256x4xf32>
    %53 = arith.addf %49, %52 : vector<256x4xf32>
    %54 = vector.shape_cast %53 : vector<256x4xf32> to vector<16x16x4xf32>
    %c0_34 = arith.constant 0 : index
    %c0_35 = arith.constant 0 : index
    %c1_36 = arith.constant 1 : index
    %c0_37 = arith.constant 0 : index
    %c0_38 = arith.constant 0 : index
    %c0_39 = arith.constant 0 : index
    %55 = vector.load %arg4[%c0_34, %c0_35, %c1_36, %c0_37, %c0_38, %c0_39] : memref<1x2x2x16x16x4xf32, #tpu.memory_space<vmem>>, vector<1x1x1x16x16x4xf32>
    %56 = vector.shape_cast %55 : vector<1x1x1x16x16x4xf32> to vector<16x16x4xf32>
    %57 = vector.shape_cast %54 : vector<16x16x4xf32> to vector<1x1x1x16x16x4xf32>
    tpu.vector_store %arg4[%c0_34, %c0_35, %c1_36, %c0_37, %c0_38, %c0_39], %57 {strides = array<i32>} : memref<1x2x2x16x16x4xf32, #tpu.memory_space<vmem>>, vector<1x1x1x16x16x4xf32>,
    %c8 = arith.constant 8 : index
    %c0_40 = arith.constant 0 : index
    %c0_41 = arith.constant 0 : index
    %58 = vector.load %arg3[%c8, %c0_40, %c0_41] : memref<16x4x4xf32, #tpu.memory_space<vmem>>, vector<1x4x4xf32>
    %59 = vector.shape_cast %58 : vector<1x4x4xf32> to vector<4x4xf32>
    %cst_42 = arith.constant dense<0.000000e+00> : vector<256x4xf32>
    %60 = tpu.matmul %9, %59, %cst_42 {dimension_numbers = #tpu.dot_dimension_numbers<[1], [0], [0], [1], [0, 0, 1, 1], [], []>} : vector<256x4xf32>, vector<4x4xf32>, vector<256x4xf32> -> vector<256x4xf32>
    %c9 = arith.constant 9 : index
    %c0_43 = arith.constant 0 : index
    %c0_44 = arith.constant 0 : index
    %61 = vector.load %arg3[%c9, %c0_43, %c0_44] : memref<16x4x4xf32, #tpu.memory_space<vmem>>, vector<1x4x4xf32>
    %62 = vector.shape_cast %61 : vector<1x4x4xf32> to vector<4x4xf32>
    %cst_45 = arith.constant dense<0.000000e+00> : vector<256x4xf32>
    %63 = tpu.matmul %11, %62, %cst_45 {dimension_numbers = #tpu.dot_dimension_numbers<[1], [0], [0], [1], [0, 0, 1, 1], [], []>} : vector<256x4xf32>, vector<4x4xf32>, vector<256x4xf32> -> vector<256x4xf32>
    %64 = arith.addf %60, %63 : vector<256x4xf32>
    %c10 = arith.constant 10 : index
    %c0_46 = arith.constant 0 : index
    %c0_47 = arith.constant 0 : index
    %65 = vector.load %arg3[%c10, %c0_46, %c0_47] : memref<16x4x4xf32, #tpu.memory_space<vmem>>, vector<1x4x4xf32>
    %66 = vector.shape_cast %65 : vector<1x4x4xf32> to vector<4x4xf32>
    %cst_48 = arith.constant dense<0.000000e+00> : vector<256x4xf32>
    %67 = tpu.matmul %15, %66, %cst_48 {dimension_numbers = #tpu.dot_dimension_numbers<[1], [0], [0], [1], [0, 0, 1, 1], [], []>} : vector<256x4xf32>, vector<4x4xf32>, vector<256x4xf32> -> vector<256x4xf32>
    %68 = arith.addf %64, %67 : vector<256x4xf32>
    %c11 = arith.constant 11 : index
    %c0_49 = arith.constant 0 : index
    %c0_50 = arith.constant 0 : index
    %69 = vector.load %arg3[%c11, %c0_49, %c0_50] : memref<16x4x4xf32, #tpu.memory_space<vmem>>, vector<1x4x4xf32>
    %70 = vector.shape_cast %69 : vector<1x4x4xf32> to vector<4x4xf32>
    %cst_51 = arith.constant dense<0.000000e+00> : vector<256x4xf32>
    %71 = tpu.matmul %17, %70, %cst_51 {dimension_numbers = #tpu.dot_dimension_numbers<[1], [0], [0], [1], [0, 0, 1, 1], [], []>} : vector<256x4xf32>, vector<4x4xf32>, vector<256x4xf32> -> vector<256x4xf32>
    %72 = arith.addf %68, %71 : vector<256x4xf32>
    %73 = vector.shape_cast %72 : vector<256x4xf32> to vector<16x16x4xf32>
    %c0_52 = arith.constant 0 : index
    %c1_53 = arith.constant 1 : index
    %c0_54 = arith.constant 0 : index
    %c0_55 = arith.constant 0 : index
    %c0_56 = arith.constant 0 : index
    %c0_57 = arith.constant 0 : index
    %74 = vector.load %arg4[%c0_52, %c1_53, %c0_54, %c0_55, %c0_56, %c0_57] : memref<1x2x2x16x16x4xf32, #tpu.memory_space<vmem>>, vector<1x1x1x16x16x4xf32>
    %75 = vector.shape_cast %74 : vector<1x1x1x16x16x4xf32> to vector<16x16x4xf32>
    %76 = vector.shape_cast %73 : vector<16x16x4xf32> to vector<1x1x1x16x16x4xf32>
    tpu.vector_store %arg4[%c0_52, %c1_53, %c0_54, %c0_55, %c0_56, %c0_57], %76 {strides = array<i32>} : memref<1x2x2x16x16x4xf32, #tpu.memory_space<vmem>>, vector<1x1x1x16x16x4xf32>,
    %c12 = arith.constant 12 : index
    %c0_58 = arith.constant 0 : index
    %c0_59 = arith.constant 0 : index
    %77 = vector.load %arg3[%c12, %c0_58, %c0_59] : memref<16x4x4xf32, #tpu.memory_space<vmem>>, vector<1x4x4xf32>
    %78 = vector.shape_cast %77 : vector<1x4x4xf32> to vector<4x4xf32>
    %cst_60 = arith.constant dense<0.000000e+00> : vector<256x4xf32>
    %79 = tpu.matmul %11, %78, %cst_60 {dimension_numbers = #tpu.dot_dimension_numbers<[1], [0], [0], [1], [0, 0, 1, 1], [], []>} : vector<256x4xf32>, vector<4x4xf32>, vector<256x4xf32> -> vector<256x4xf32>
    %c13 = arith.constant 13 : index
    %c0_61 = arith.constant 0 : index
    %c0_62 = arith.constant 0 : index
    %80 = vector.load %arg3[%c13, %c0_61, %c0_62] : memref<16x4x4xf32, #tpu.memory_space<vmem>>, vector<1x4x4xf32>
    %81 = vector.shape_cast %80 : vector<1x4x4xf32> to vector<4x4xf32>
    %cst_63 = arith.constant dense<0.000000e+00> : vector<256x4xf32>
    %82 = tpu.matmul %13, %81, %cst_63 {dimension_numbers = #tpu.dot_dimension_numbers<[1], [0], [0], [1], [0, 0, 1, 1], [], []>} : vector<256x4xf32>, vector<4x4xf32>, vector<256x4xf32> -> vector<256x4xf32>
    %83 = arith.addf %79, %82 : vector<256x4xf32>
    %c14 = arith.constant 14 : index
    %c0_64 = arith.constant 0 : index
    %c0_65 = arith.constant 0 : index
    %84 = vector.load %arg3[%c14, %c0_64, %c0_65] : memref<16x4x4xf32, #tpu.memory_space<vmem>>, vector<1x4x4xf32>
    %85 = vector.shape_cast %84 : vector<1x4x4xf32> to vector<4x4xf32>
    %cst_66 = arith.constant dense<0.000000e+00> : vector<256x4xf32>
    %86 = tpu.matmul %17, %85, %cst_66 {dimension_numbers = #tpu.dot_dimension_numbers<[1], [0], [0], [1], [0, 0, 1, 1], [], []>} : vector<256x4xf32>, vector<4x4xf32>, vector<256x4xf32> -> vector<256x4xf32>
    %87 = arith.addf %83, %86 : vector<256x4xf32>
    %c15 = arith.constant 15 : index
    %c0_67 = arith.constant 0 : index
    %c0_68 = arith.constant 0 : index
    %88 = vector.load %arg3[%c15, %c0_67, %c0_68] : memref<16x4x4xf32, #tpu.memory_space<vmem>>, vector<1x4x4xf32>
    %89 = vector.shape_cast %88 : vector<1x4x4xf32> to vector<4x4xf32>
    %cst_69 = arith.constant dense<0.000000e+00> : vector<256x4xf32>
    %90 = tpu.matmul %19, %89, %cst_69 {dimension_numbers = #tpu.dot_dimension_numbers<[1], [0], [0], [1], [0, 0, 1, 1], [], []>} : vector<256x4xf32>, vector<4x4xf32>, vector<256x4xf32> -> vector<256x4xf32>
    %91 = arith.addf %87, %90 : vector<256x4xf32>
    %92 = vector.shape_cast %91 : vector<256x4xf32> to vector<16x16x4xf32>
    %c0_70 = arith.constant 0 : index
    %c1_71 = arith.constant 1 : index
    %c1_72 = arith.constant 1 : index
    %c0_73 = arith.constant 0 : index
    %c0_74 = arith.constant 0 : index
    %c0_75 = arith.constant 0 : index
    %93 = vector.load %arg4[%c0_70, %c1_71, %c1_72, %c0_73, %c0_74, %c0_75] : memref<1x2x2x16x16x4xf32, #tpu.memory_space<vmem>>, vector<1x1x1x16x16x4xf32>
    %94 = vector.shape_cast %93 : vector<1x1x1x16x16x4xf32> to vector<16x16x4xf32>
    %95 = vector.shape_cast %92 : vector<16x16x4xf32> to vector<1x1x1x16x16x4xf32>
    tpu.vector_store %arg4[%c0_70, %c1_71, %c1_72, %c0_73, %c0_74, %c0_75], %95 {strides = array<i32>} : memref<1x2x2x16x16x4xf32, #tpu.memory_space<vmem>>, vector<1x1x1x16x16x4xf32>,
    return
  }
  func.func @transform_0(%arg0: i32, %arg1: i32) -> (i32, i32, i32, i32, i32) {
    %c0_i32 = arith.constant 0 : i32
    %c0_i32_0 = arith.constant 0 : i32
    %c0_i32_1 = arith.constant 0 : i32
    %c0_i32_2 = arith.constant 0 : i32
    return %arg0, %arg1, %c0_i32, %c0_i32_0, %c0_i32_1 : i32, i32, i32, i32, i32
  }
  func.func @transform_1(%arg0: i32, %arg1: i32) -> (i32, i32, i32) {
    %c0_i32 = arith.constant 0 : i32
    %c0_i32_0 = arith.constant 0 : i32
    %c0_i32_1 = arith.constant 0 : i32
    %c0_i32_2 = arith.constant 0 : i32
    return %c0_i32, %c0_i32_0, %c0_i32_1 : i32, i32, i32
  }
  func.func @transform_2(%arg0: i32, %arg1: i32) -> (i32, i32, i32, i32, i32, i32) {
    %c0_i32 = arith.constant 0 : i32
    %c0_i32_0 = arith.constant 0 : i32
    %c0_i32_1 = arith.constant 0 : i32
    %c0_i32_2 = arith.constant 0 : i32
    %c0_i32_3 = arith.constant 0 : i32
    return %arg0, %c0_i32, %c0_i32_0, %arg1, %c0_i32_1, %c0_i32_2 : i32, i32, i32, i32, i32, i32
  }
}

</mosaic_0001>

<llo_original>
// kernel: pixel_shuffle2d.1
$region0: #{pixel_shuffle2d.1}
  #allocation0 [shape = 'u32[]', space=smem, size = 0x4, offset = 0x4, fixed_abs, tag = 'smem constant byte address 0x4 - core index']
  #allocation1 [shape = 'u32[72,128]{1,0:T(1,128)}', space=vmem, size = 0x9000, scoped, tag = 'internal scratch']
  %s0 = inlined_call_operand.vmem [shape: f32[2,1,18,18,4], index: 0, kind: input, shape index: {}]
  %s1 = inlined_call_operand.vmem [shape: f32[16,4,4], index: 1, kind: input, shape index: {}]
  %s2 = inlined_call_operand.vmem [shape: f32[2,2,2,16,16,4], index: 2, kind: output, shape index: {}]
  %s3 = sld [smem:[#allocation0]]
  $region41: #{pixel_shuffle2d.1} parent=0
    _
  %s5 = ssub.s32 1, %s3
  %s6 = scalar_select 0, %s5, %s3
  loop: start=0, step=1, limit=4
  $region2: #{pixel_shuffle2d.1} parent=0 // loop_pre_header
    _
  $region3: #{pixel_shuffle2d.1} parent=0 // loop_header
    %s8 = sphi 0, %s12
    %p9 = scmp.ge.s32.totalorder %s8, 4
    %s15 = sphi 0, %s27
    %s16 = sphi 0, %s23
    %s17 = sphi 0, %s15
    %s18 = sphi 0, %s16
    %s19 = sphi 0, %s17
    %s20 = sphi 0, %s18
    %s32 = sphi 0, %s34
    %s35 = sphi 0, %s32
    %s36 = sphi 0, %s35
    %s52 = sphi 0, %s36
    %s56 = sphi 0, %s56
    %s58 = sphi 0, %s56
    %s59 = sphi 0, %s58
    %s73 = sphi 0, %s59
    %s81 = sphi 0, %s83
    %s84 = sphi 0, %s81
    %s85 = sphi 0, %s84
    %s101 = sphi 0, %s85
  $region4: #{pixel_shuffle2d.1} parent=0 // loop_header_branch
    %11 = sbr.rel (%p9) target = $region8
  $region5: #{pixel_shuffle2d.1} parent=0 // loop_body
    %s13 = ssub.s32 %s8, 1
    %s14 = ssub.s32 %s8, 2
    %s21 = sadd.s32 1, %s16
    %p22 = scmp.ge.s32.totalorder %s21, 1
    %s23 = scalar_select %p22, 0, %s21
    %s24 = sadd.s32 1, %s15
    %s25 = scalar_select %p22, %s24, %s15
    %p26 = scmp.ge.s32.totalorder %s25, 2
    %s27 = scalar_select %p26, 0, %s25
    %s28 = ssub.s32 %s15, %s27
    %s29 = ssub.s32 %s16, %s23
    %s30 = sor.u32 %s28, %s29
    %p31 = scmp.eq.s32.totalorder %s30, 0
    %s33 = sadd.s32 %s32, 1
    %s34 = scalar_select %p31, %s32, %s33
    %p37 = pneg %p31
    %p38 = scmp.eq.s32.totalorder %s8, 1
    %p39 = por %p37, %p38
    %p40 = scmp.ne.s32.totalorder %s32, %s35
    %p41 = scmp.eq.s32.totalorder %s8, 0
    %p42 = por %p40, %p41
    %p43 = scmp.ne.s32.totalorder %s32, %s35
    %p44 = scmp.eq.s32.totalorder %s13, 1
    %p45 = por %p43, %p44
    %p46 = scmp.ne.s32.totalorder %s35, %s36
    %p47 = scmp.eq.s32.totalorder %s13, 0
    %p48 = por %p46, %p47
    %p49 = scmp.ne.s32.totalorder %s35, %s36
    %p50 = scmp.eq.s32.totalorder %s14, 1
    %p51 = por %p49, %p50
    %p53 = scmp.ne.s32.totalorder %s36, %s52
    %p54 = scmp.eq.s32.totalorder %s14, 0
    %p55 = por %p53, %p54
    %s57 = sadd.s32 %s56, 1
    %p60 = scmp.eq.s32.totalorder %s8, 1
    %p61 = scmp.ne.s32.totalorder %s56, %s58
    %p62 = scmp.eq.s32.totalorder %s8, 0
    %p63 = por %p61, %p62
    %p64 = scmp.ne.s32.totalorder %s56, %s58
    %p65 = scmp.eq.s32.totalorder %s13, 1
    %p66 = por %p64, %p65
    %p67 = scmp.ne.s32.totalorder %s58, %s59
    %p68 = scmp.eq.s32.totalorder %s13, 0
    %p69 = por %p67, %p68
    %p70 = scmp.ne.s32.totalorder %s58, %s59
    %p71 = scmp.eq.s32.totalorder %s14, 1
    %p72 = por %p70, %p71
    %p74 = scmp.ne.s32.totalorder %s59, %s73
    %p75 = scmp.eq.s32.totalorder %s14, 0
    %p76 = por %p74, %p75
    %s77 = ssub.s32 %s15, %s27
    %s78 = ssub.s32 %s16, %s23
    %s79 = sor.u32 %s77, %s78
    %p80 = scmp.eq.s32.totalorder %s79, 0
    %s82 = sadd.s32 %s81, 1
    %s83 = scalar_select %p80, %s81, %s82
    %p86 = pneg %p80
    %p87 = scmp.eq.s32.totalorder %s8, 1
    %p88 = por %p86, %p87
    %p89 = scmp.ne.s32.totalorder %s81, %s84
    %p90 = scmp.eq.s32.totalorder %s8, 0
    %p91 = por %p89, %p90
    %p92 = scmp.ne.s32.totalorder %s81, %s84
    %p93 = scmp.eq.s32.totalorder %s13, 1
    %p94 = por %p92, %p93
    %p95 = scmp.ne.s32.totalorder %s84, %s85
    %p96 = scmp.eq.s32.totalorder %s13, 0
    %p97 = por %p95, %p96
    %p98 = scmp.ne.s32.totalorder %s84, %s85
    %p99 = scmp.eq.s32.totalorder %s14, 1
    %p100 = por %p98, %p99
    %p102 = scmp.ne.s32.totalorder %s85, %s101
    %p103 = scmp.eq.s32.totalorder %s14, 0
    %p104 = por %p102, %p103
    %p105 = scmp.le.s32.totalorder 1, %s8
    %p106 = scmp.lt.s32.totalorder %s8, 3
    %p107 = pnand %p105, %p106
    %p108 = pneg %p107
    // Predicated region
    $region9: #{pixel_shuffle2d.1} parent=5 // pred_check
      _
    $region10: #{pixel_shuffle2d.1} parent=5 // pred_check_branch
      %110 = sbr.rel (%p107) target = $region12
    $region11: #{pixel_shuffle2d.1} parent=5 // pred_region
      %s111 = ssub.s32 %s8, 1
      // Predicated region
      $region13: #{pixel_shuffle2d.1} parent=11 // pred_check
        %p112 = pneg %p69
      $region14: #{pixel_shuffle2d.1} parent=11 // pred_check_branch
        %114 = sbr.rel (%p112) target = $region16
      $region15: #{pixel_shuffle2d.1} parent=11 // pred_region
        _
      $region16: #{pixel_shuffle2d.1} parent=11 // pred_fallthru
        _
    $region12: #{pixel_shuffle2d.1} parent=5 // pred_fallthru
      _
    %p115 = scmp.lt.s32.totalorder %s8, 2
    // Predicated region
    $region17: #{pixel_shuffle2d.1} parent=5 // pred_check
      %p116 = pneg %p115
    $region18: #{pixel_shuffle2d.1} parent=5 // pred_check_branch
      %118 = sbr.rel (%p116) target = $region20
    $region19: #{pixel_shuffle2d.1} parent=5 // pred_region
      // Predicated region
      $region21: #{pixel_shuffle2d.1} parent=19 // pred_check
        %p119 = pneg %p42
      $region22: #{pixel_shuffle2d.1} parent=19 // pred_check_branch
        %121 = sbr.rel (%p119) target = $region24
      $region23: #{pixel_shuffle2d.1} parent=19 // pred_region
        %p122 = scmp.lt.s32.totalorder %s15, 1
        %s123 = scalar_select %p122, %s15, 1
        %p124 = scmp.lt.s32.totalorder %s16, 0
        %s125 = scalar_select %p124, %s16, 0
        %s126 = smul.addr %s125, 54
        %s127 = smul.addr %s123, 54
        %s128 = sadd.s32 %s126, %s127
        %s129 = smul.addr %s128, 8
        %s130 = scalar_lea.vmem %s0, %s129
      $region24: #{pixel_shuffle2d.1} parent=19 // pred_fallthru
        _
    $region20: #{pixel_shuffle2d.1} parent=5 // pred_fallthru
      _
    %p131 = scmp.le.s32.totalorder 1, %s8
    %p132 = scmp.lt.s32.totalorder %s8, 3
    %p133 = pnand %p131, %p132
    %p134 = pneg %p133
    // Predicated region
    $region25: #{pixel_shuffle2d.1} parent=5 // pred_check
      _
    $region26: #{pixel_shuffle2d.1} parent=5 // pred_check_branch
      %136 = sbr.rel (%p133) target = $region28
    $region27: #{pixel_shuffle2d.1} parent=5 // pred_region
      %s137 = ssub.s32 %s8, 1
      %p138 = scmp.lt.s32.totalorder %s17, 1
      %s139 = scalar_select %p138, %s17, 1
      %p140 = scmp.lt.s32.totalorder %s18, 0
      %s141 = scalar_select %p140, %s18, 0
      %s142 = smul.addr %s141, 54
      %s143 = smul.addr %s139, 54
      %s144 = sadd.s32 %s142, %s143
      %s145 = smul.addr %s144, 8
      %s146 = scalar_lea.vmem %s0, %s145
      %p147 = pneg %p48
      %p148 = pneg %p45
      %p149 = pneg %p69
      %p150 = pneg %p66
      %p151 = pneg %p97
      %p152 = pneg %p94
      %s153 = smul.u32 16, %s18
      %p154 = scmp.lt.s32.totalorder %s17, 1
      %s155 = scalar_select %p154, %s17, 1
      %p156 = scmp.lt.s32.totalorder %s153, 15
      %s157 = scalar_select %p156, %s153, 15
      %s158 = smul.addr %s157, 2
      %s159 = smul.addr %s155, 128
      %s160 = sadd.s32 %s158, %s159
      %s161 = smul.addr %s160, 8
      %s162 = scalar_lea.vmem %s2, %s161
      %p163 = scmp.lt.s32.totalorder %s17, 1
      %s164 = scalar_select %p163, %s17, 1
      %p165 = scmp.lt.s32.totalorder %s18, 0
      %s166 = scalar_select %p165, %s18, 0
      %s167 = smul.addr %s166, 54
      %s168 = smul.addr %s164, 54
      %s169 = sadd.s32 %s167, %s168
      %s170 = smul.addr %s169, 8
      %s171 = scalar_lea.vmem %s0, %s170
      %s172 = smul.u32 16, %s18
      %p173 = scmp.lt.s32.totalorder %s17, 1
      %s174 = scalar_select %p173, %s17, 1
      %p175 = scmp.lt.s32.totalorder %s172, 15
      %s176 = scalar_select %p175, %s172, 15
      %s177 = smul.addr %s176, 2
      %s178 = smul.addr %s174, 128
      %s179 = sadd.s32 %s177, %s178
      %s180 = smul.addr %s179, 8
      %s181 = scalar_lea.vmem %s2, %s180
      %s182 = smul.u32 16, %s18
      %v183 = vld [vmem:[%s171] sm:$0xff]
      %v184 = vld [vmem:[%s171 + $0x8] sm:$0xff]
      %v185 = vld [vmem:[%s171 + $0x10] sm:$0x3]
      %v186 = vld [vmem:[%s171 + $0x18] sm:$0xff]
      %v187 = vld [vmem:[%s171 + $0x20] sm:$0xff]
      %v188 = vld [vmem:[%s171 + $0x28] sm:$0x3]
      %v189 = vld [vmem:[%s171 + $0x30] sm:$0xff]
      %v190 = vld [vmem:[%s171 + $0x38] sm:$0xff]
      %v191 = vld [vmem:[%s171 + $0x40] sm:$0x3]
      %v192 = vld [vmem:[%s171 + $0x48] sm:$0xff]
      %v193 = vld [vmem:[%s171 + $0x50] sm:$0xff]
      %v194 = vld [vmem:[%s171 + $0x58] sm:$0x3]
      %v195 = vld [vmem:[%s171 + $0x60] sm:$0xff]
      %v196 = vld [vmem:[%s171 + $0x68] sm:$0xff]
      %v197 = vld [vmem:[%s171 + $0x70] sm:$0x3]
      %v198 = vld [vmem:[%s171 + $0x78] sm:$0xff]
      %v199 = vld [vmem:[%s171 + $0x80] sm:$0xff]
      %v200 = vld [vmem:[%s171 + $0x88] sm:$0x3]
      %v201 = vld [vmem:[%s171 + $0x90] sm:$0xff]
      %v202 = vld [vmem:[%s171 + $0x98] sm:$0xff]
      %v203 = vld [vmem:[%s171 + $0xa0] sm:$0x3]
      %v204 = vld [vmem:[%s171 + $0xa8] sm:$0xff]
      %v205 = vld [vmem:[%s171 + $0xb0] sm:$0xff]
      %v206 = vld [vmem:[%s171 + $0xb8] sm:$0x3]
      %v207 = vld [vmem:[%s171 + $0xc0] sm:$0xff]
      %v208 = vld [vmem:[%s171 + $0xc8] sm:$0xff]
      %v209 = vld [vmem:[%s171 + $0xd0] sm:$0x3]
      %v210 = vld [vmem:[%s171 + $0xd8] sm:$0xff]
      %v211 = vld [vmem:[%s171 + $0xe0] sm:$0xff]
      %v212 = vld [vmem:[%s171 + $0xe8] sm:$0x3]
      %v213 = vld [vmem:[%s171 + $0xf0] sm:$0xff]
      %v214 = vld [vmem:[%s171 + $0xf8] sm:$0xff]
      %v215 = vld [vmem:[%s171 + $0x100] sm:$0x3]
      %v216 = vld [vmem:[%s171 + $0x108] sm:$0xff]
      %v217 = vld [vmem:[%s171 + $0x110] sm:$0xff]
      %v218 = vld [vmem:[%s171 + $0x118] sm:$0x3]
      %v219 = vld [vmem:[%s171 + $0x120] sm:$0xff]
      %v220 = vld [vmem:[%s171 + $0x128] sm:$0xff]
      %v221 = vld [vmem:[%s171 + $0x130] sm:$0x3]
      %v222 = vld [vmem:[%s171 + $0x138] sm:$0xff]
      %v223 = vld [vmem:[%s171 + $0x140] sm:$0xff]
      %v224 = vld [vmem:[%s171 + $0x148] sm:$0x3]
      %v225 = vld [vmem:[%s171 + $0x150] sm:$0xff]
      %v226 = vld [vmem:[%s171 + $0x158] sm:$0xff]
      %v227 = vld [vmem:[%s171 + $0x160] sm:$0x3]
      %v228 = vld [vmem:[%s171 + $0x168] sm:$0xff]
      %v229 = vld [vmem:[%s171 + $0x170] sm:$0xff]
      %v230 = vld [vmem:[%s171 + $0x178] sm:$0x3]
      %v231 = vld [vmem:[%s171 + $0x180] sm:$0xff]
      %v232 = vld [vmem:[%s171 + $0x188] sm:$0xff]
      %v233 = vld [vmem:[%s171 + $0x190] sm:$0x3]
      %v234 = vld [vmem:[%s171 + $0x198] sm:$0xff]
      %v235 = vld [vmem:[%s171 + $0x1a0] sm:$0xff]
      %v236 = vld [vmem:[%s171 + $0x1a8] sm:$0x3]
      %vm285 = vcmask 1046528
      %v286 = vrot.slane %v183, 1
      %v287 = vrot.slane %v184, 1
      %v288 = vsel %vm285, %v286, %v287
      %v289 = vrot.slane %v185, 1
      %v290 = vsel %vm285, %v287, %v289
      %v291 = vrot.slane %v186, 1
      %v292 = vrot.slane %v187, 1
      %v293 = vsel %vm285, %v291, %v292
      %v294 = vrot.slane %v188, 1
      %v295 = vsel %vm285, %v292, %v294
      %v296 = vrot.slane %v189, 1
      %v297 = vrot.slane %v190, 1
      %v298 = vsel %vm285, %v296, %v297
      %v299 = vrot.slane %v191, 1
      %v300 = vsel %vm285, %v297, %v299
      %v301 = vrot.slane %v192, 1
      %v302 = vrot.slane %v193, 1
      %v303 = vsel %vm285, %v301, %v302
      %v304 = vrot.slane %v194, 1
      %v305 = vsel %vm285, %v302, %v304
      %v306 = vrot.slane %v195, 1
      %v307 = vrot.slane %v196, 1
      %v308 = vsel %vm285, %v306, %v307
      %v309 = vrot.slane %v197, 1
      %v310 = vsel %vm285, %v307, %v309
      %v311 = vrot.slane %v198, 1
      %v312 = vrot.slane %v199, 1
      %v313 = vsel %vm285, %v311, %v312
      %v314 = vrot.slane %v200, 1
      %v315 = vsel %vm285, %v312, %v314
      %v316 = vrot.slane %v201, 1
      %v317 = vrot.slane %v202, 1
      %v318 = vsel %vm285, %v316, %v317
      %v319 = vrot.slane %v203, 1
      %v320 = vsel %vm285, %v317, %v319
      %v321 = vrot.slane %v204, 1
      %v322 = vrot.slane %v205, 1
      %v323 = vsel %vm285, %v321, %v322
      %v324 = vrot.slane %v206, 1
      %v325 = vsel %vm285, %v322, %v324
      %v326 = vrot.slane %v207, 1
      %v327 = vrot.slane %v208, 1
      %v328 = vsel %vm285, %v326, %v327
      %v329 = vrot.slane %v209, 1
      %v330 = vsel %vm285, %v327, %v329
      %v331 = vrot.slane %v210, 1
      %v332 = vrot.slane %v211, 1
      %v333 = vsel %vm285, %v331, %v332
      %v334 = vrot.slane %v212, 1
      %v335 = vsel %vm285, %v332, %v334
      %v336 = vrot.slane %v213, 1
      %v337 = vrot.slane %v214, 1
      %v338 = vsel %vm285, %v336, %v337
      %v339 = vrot.slane %v215, 1
      %v340 = vsel %vm285, %v337, %v339
      %v341 = vrot.slane %v216, 1
      %v342 = vrot.slane %v217, 1
      %v343 = vsel %vm285, %v341, %v342
      %v344 = vrot.slane %v218, 1
      %v345 = vsel %vm285, %v342, %v344
      %v346 = vrot.slane %v219, 1
      %v347 = vrot.slane %v220, 1
      %v348 = vsel %vm285, %v346, %v347
      %v349 = vrot.slane %v221, 1
      %v350 = vsel %vm285, %v347, %v349
      %v351 = vrot.slane %v222, 1
      %v352 = vrot.slane %v223, 1
      %v353 = vsel %vm285, %v351, %v352
      %v354 = vrot.slane %v224, 1
      %v355 = vsel %vm285, %v352, %v354
      %v356 = vrot.slane %v225, 1
      %v357 = vrot.slane %v226, 1
      %v358 = vsel %vm285, %v356, %v357
      %v359 = vrot.slane %v227, 1
      %v360 = vsel %vm285, %v357, %v359
      %v361 = vrot.slane %v228, 1
      %v362 = vrot.slane %v229, 1
      %v363 = vsel %vm285, %v361, %v362
      %v364 = vrot.slane %v230, 1
      %v365 = vsel %vm285, %v362, %v364
      %vm366 = vcmask 1045504
      %v367 = vrot.slane %v183, 2
      %v368 = vrot.slane %v184, 2
      %v369 = vsel %vm366, %v367, %v368
      %v370 = vrot.slane %v185, 2
      %v371 = vsel %vm366, %v368, %v370
      %v372 = vrot.slane %v186, 2
      %v373 = vrot.slane %v187, 2
      %v374 = vsel %vm366, %v372, %v373
      %v375 = vrot.slane %v188, 2
      %v376 = vsel %vm366, %v373, %v375
      %v377 = vrot.slane %v189, 2
      %v378 = vrot.slane %v190, 2
      %v379 = vsel %vm366, %v377, %v378
      %v380 = vrot.slane %v191, 2
      %v381 = vsel %vm366, %v378, %v380
      %v382 = vrot.slane %v192, 2
      %v383 = vrot.slane %v193, 2
      %v384 = vsel %vm366, %v382, %v383
      %v385 = vrot.slane %v194, 2
      %v386 = vsel %vm366, %v383, %v385
      %v387 = vrot.slane %v195, 2
      %v388 = vrot.slane %v196, 2
      %v389 = vsel %vm366, %v387, %v388
      %v390 = vrot.slane %v197, 2
      %v391 = vsel %vm366, %v388, %v390
      %v392 = vrot.slane %v198, 2
      %v393 = vrot.slane %v199, 2
      %v394 = vsel %vm366, %v392, %v393
      %v395 = vrot.slane %v200, 2
      %v396 = vsel %vm366, %v393, %v395
      %v397 = vrot.slane %v201, 2
      %v398 = vrot.slane %v202, 2
      %v399 = vsel %vm366, %v397, %v398
      %v400 = vrot.slane %v203, 2
      %v401 = vsel %vm366, %v398, %v400
      %v402 = vrot.slane %v204, 2
      %v403 = vrot.slane %v205, 2
      %v404 = vsel %vm366, %v402, %v403
      %v405 = vrot.slane %v206, 2
      %v406 = vsel %vm366, %v403, %v405
      %v407 = vrot.slane %v207, 2
      %v408 = vrot.slane %v208, 2
      %v409 = vsel %vm366, %v407, %v408
      %v410 = vrot.slane %v209, 2
      %v411 = vsel %vm366, %v408, %v410
      %v412 = vrot.slane %v210, 2
      %v413 = vrot.slane %v211, 2
      %v414 = vsel %vm366, %v412, %v413
      %v415 = vrot.slane %v212, 2
      %v416 = vsel %vm366, %v413, %v415
      %v417 = vrot.slane %v213, 2
      %v418 = vrot.slane %v214, 2
      %v419 = vsel %vm366, %v417, %v418
      %v420 = vrot.slane %v215, 2
      %v421 = vsel %vm366, %v418, %v420
      %v422 = vrot.slane %v216, 2
      %v423 = vrot.slane %v217, 2
      %v424 = vsel %vm366, %v422, %v423
      %v425 = vrot.slane %v218, 2
      %v426 = vsel %vm366, %v423, %v425
      %v427 = vrot.slane %v219, 2
      %v428 = vrot.slane %v220, 2
      %v429 = vsel %vm366, %v427, %v428
      %v430 = vrot.slane %v221, 2
      %v431 = vsel %vm366, %v428, %v430
      %v432 = vrot.slane %v222, 2
      %v433 = vrot.slane %v223, 2
      %v434 = vsel %vm366, %v432, %v433
      %v435 = vrot.slane %v224, 2
      %v436 = vsel %vm366, %v433, %v435
      %v437 = vrot.slane %v225, 2
      %v438 = vrot.slane %v226, 2
      %v439 = vsel %vm366, %v437, %v438
      %v440 = vrot.slane %v227, 2
      %v441 = vsel %vm366, %v438, %v440
      %v442 = vrot.slane %v228, 2
      %v443 = vrot.slane %v229, 2
      %v444 = vsel %vm366, %v442, %v443
      %v445 = vrot.slane %v230, 2
      %v446 = vsel %vm366, %v443, %v445
      %v450 = vrot.slane %v231, 1
      %v451 = vrot.slane %v232, 1
      %v452 = vsel %vm285, %v450, %v451
      %v453 = vrot.slane %v233, 1
      %v454 = vsel %vm285, %v451, %v453
      %v455 = vrot.slane %v231, 2
      %v456 = vrot.slane %v232, 2
      %v457 = vsel %vm366, %v455, %v456
      %v458 = vrot.slane %v233, 2
      %v459 = vsel %vm366, %v456, %v458
      %v463 = vrot.slane %v234, 1
      %v464 = vrot.slane %v235, 1
      %v465 = vsel %vm285, %v463, %v464
      %v466 = vrot.slane %v236, 1
      %v467 = vsel %vm285, %v464, %v466
      %v468 = vrot.slane %v234, 2
      %v469 = vrot.slane %v235, 2
      %v470 = vsel %vm366, %v468, %v469
      %v471 = vrot.slane %v236, 2
      %v472 = vsel %vm366, %v469, %v471
      %v473 = vld [vmem:[%s1] sm:$0xf]
      %s474 = scalar_lea.vmem %s1, 4
      %v475 = vld [vmem:[%s474] sm:$0xf]
      %vm476 = vcmask 31744
      %v477 = vsel %vm476, %v288, 0
      %v479 = vsel %vm476, %v290, 0
      %v481 = vsel %vm476, %v293, 0
      %v483 = vsel %vm476, %v295, 0
      %v485 = vsel %vm476, %v298, 0
      %v487 = vsel %vm476, %v300, 0
      %v489 = vsel %vm476, %v303, 0
      %v491 = vsel %vm476, %v305, 0
      %v493 = vsel %vm476, %v308, 0
      %v495 = vsel %vm476, %v310, 0
      %v497 = vsel %vm476, %v313, 0
      %v499 = vsel %vm476, %v315, 0
      %v501 = vsel %vm476, %v318, 0
      %v503 = vsel %vm476, %v320, 0
      %v505 = vsel %vm476, %v323, 0
      %v507 = vsel %vm476, %v325, 0
      %v509 = vsel %vm476, %v328, 0
      %v511 = vsel %vm476, %v330, 0
      %v513 = vsel %vm476, %v333, 0
      %v515 = vsel %vm476, %v335, 0
      %v517 = vsel %vm476, %v338, 0
      %v519 = vsel %vm476, %v340, 0
      %v521 = vsel %vm476, %v343, 0
      %v523 = vsel %vm476, %v345, 0
      %v525 = vsel %vm476, %v348, 0
      %v527 = vsel %vm476, %v350, 0
      %v529 = vsel %vm476, %v353, 0
      %v531 = vsel %vm476, %v355, 0
      %v533 = vsel %vm476, %v358, 0
      %v535 = vsel %vm476, %v360, 0
      %v537 = vsel %vm476, %v363, 0
      %v539 = vsel %vm476, %v365, 0
      %vm541 = vcmask 1043456
      %v543 = vsel %vm541, %v475, 0
      %545 = vmatpush.msra.mxu0 0.0
      %546 = vmatpush.msra.mxu0 0.0
      %547 = vmatpush.msra.mxu0 0.0
      %548 = vmatpush.msra.mxu0 0.0
      %549 = vmatpush.msra.mxu0 0.0
      %550 = vmatpush.msra.mxu0 0.0
      %551 = vmatpush.msra.mxu0 0.0
      %552 = vmatpush.msra.mxu0 0.0
      %553 = vmatpush.msra.mxu0 0.0
      %554 = vmatpush.msra.mxu0 0.0
      %555 = vmatpush.msra.mxu0 0.0
      %556 = vmatpush.msra.mxu0 0.0
      %557 = vmatpush.msra.mxu0 0.0
      %558 = vmatpush.msra.mxu0 0.0
      %559 = vmatpush.msra.mxu0 0.0
      %560 = vmatpush.msra.mxu0 %v543
      %561 = vmatmul.f32.gmra.mxu0 %v477
      %v562 = vpop.f32.mrf.mxu0
      %v563 = vadd.f32 0.0, %v562
      %564 = vmatmul.f32.gmra.mxu0 %v479
      %v565 = vpop.f32.mrf.mxu0
      %v566 = vadd.f32 0.0, %v565
      %567 = vmatmul.f32.gmra.mxu0 %v481
      %v568 = vpop.f32.mrf.mxu0
      %v569 = vadd.f32 0.0, %v568
      %570 = vmatmul.f32.gmra.mxu0 %v483
      %v571 = vpop.f32.mrf.mxu0
      %v572 = vadd.f32 0.0, %v571
      %573 = vmatmul.f32.gmra.mxu0 %v485
      %v574 = vpop.f32.mrf.mxu0
      %v575 = vadd.f32 0.0, %v574
      %576 = vmatmul.f32.gmra.mxu0 %v487
      %v577 = vpop.f32.mrf.mxu0
      %v578 = vadd.f32 0.0, %v577
      %579 = vmatmul.f32.gmra.mxu0 %v489
      %v580 = vpop.f32.mrf.mxu0
      %v581 = vadd.f32 0.0, %v580
      %582 = vmatmul.f32.gmra.mxu0 %v491
      %v583 = vpop.f32.mrf.mxu0
      %v584 = vadd.f32 0.0, %v583
      %585 = vmatmul.f32.gmra.mxu0 %v493
      %v586 = vpop.f32.mrf.mxu0
      %v587 = vadd.f32 0.0, %v586
      %588 = vmatmul.f32.gmra.mxu0 %v495
      %v589 = vpop.f32.mrf.mxu0
      %v590 = vadd.f32 0.0, %v589
      %591 = vmatmul.f32.gmra.mxu0 %v497
      %v592 = vpop.f32.mrf.mxu0
      %v593 = vadd.f32 0.0, %v592
      %594 = vmatmul.f32.gmra.mxu0 %v499
      %v595 = vpop.f32.mrf.mxu0
      %v596 = vadd.f32 0.0, %v595
      %597 = vmatmul.f32.gmra.mxu0 %v501
      %v598 = vpop.f32.mrf.mxu0
      %v599 = vadd.f32 0.0, %v598
      %600 = vmatmul.f32.gmra.mxu0 %v503
      %v601 = vpop.f32.mrf.mxu0
      %v602 = vadd.f32 0.0, %v601
      %603 = vmatmul.f32.gmra.mxu0 %v505
      %v604 = vpop.f32.mrf.mxu0
      %v605 = vadd.f32 0.0, %v604
      %606 = vmatmul.f32.gmra.mxu0 %v507
      %v607 = vpop.f32.mrf.mxu0
      %v608 = vadd.f32 0.0, %v607
      %609 = vmatmul.f32.gmra.mxu0 %v509
      %v610 = vpop.f32.mrf.mxu0
      %v611 = vadd.f32 0.0, %v610
      %612 = vmatmul.f32.gmra.mxu0 %v511
      %v613 = vpop.f32.mrf.mxu0
      %v614 = vadd.f32 0.0, %v613
      %615 = vmatmul.f32.gmra.mxu0 %v513
      %v616 = vpop.f32.mrf.mxu0
      %v617 = vadd.f32 0.0, %v616
      %618 = vmatmul.f32.gmra.mxu0 %v515
      %v619 = vpop.f32.mrf.mxu0
      %v620 = vadd.f32 0.0, %v619
      %621 = vmatmul.f32.gmra.mxu0 %v517
      %v622 = vpop.f32.mrf.mxu0
      %v623 = vadd.f32 0.0, %v622
      %624 = vmatmul.f32.gmra.mxu0 %v519
      %v625 = vpop.f32.mrf.mxu0
      %v626 = vadd.f32 0.0, %v625
      %627 = vmatmul.f32.gmra.mxu0 %v521
      %v628 = vpop.f32.mrf.mxu0
      %v629 = vadd.f32 0.0, %v628
      %630 = vmatmul.f32.gmra.mxu0 %v523
      %v631 = vpop.f32.mrf.mxu0
      %v632 = vadd.f32 0.0, %v631
      %633 = vmatmul.f32.gmra.mxu0 %v525
      %v634 = vpop.f32.mrf.mxu0
      %v635 = vadd.f32 0.0, %v634
      %636 = vmatmul.f32.gmra.mxu0 %v527
      %v637 = vpop.f32.mrf.mxu0
      %v638 = vadd.f32 0.0, %v637
      %639 = vmatmul.f32.gmra.mxu0 %v529
      %v640 = vpop.f32.mrf.mxu0
      %v641 = vadd.f32 0.0, %v640
      %642 = vmatmul.f32.gmra.mxu0 %v531
      %v643 = vpop.f32.mrf.mxu0
      %v644 = vadd.f32 0.0, %v643
      %645 = vmatmul.f32.gmra.mxu0 %v533
      %v646 = vpop.f32.mrf.mxu0
      %v647 = vadd.f32 0.0, %v646
      %648 = vmatmul.f32.gmra.mxu0 %v535
      %v649 = vpop.f32.mrf.mxu0
      %v650 = vadd.f32 0.0, %v649
      %651 = vmatmul.f32.gmra.mxu0 %v537
      %v652 = vpop.f32.mrf.mxu0
      %v653 = vadd.f32 0.0, %v652
      %654 = vmatmul.f32.gmra.mxu0 %v539
      %v655 = vpop.f32.mrf.mxu0
      %v656 = vadd.f32 0.0, %v655
      %657 = vdwg.mxu0
      %v658 = vsel %vm476, %v183, 0
      %v660 = vsel %vm476, %v184, 0
      %v662 = vsel %vm476, %v186, 0
      %v664 = vsel %vm476, %v187, 0
      %v666 = vsel %vm476, %v189, 0
      %v668 = vsel %vm476, %v190, 0
      %v670 = vsel %vm476, %v192, 0
      %v672 = vsel %vm476, %v193, 0
      %v674 = vsel %vm476, %v195, 0
      %v676 = vsel %vm476, %v196, 0
      %v678 = vsel %vm476, %v198, 0
      %v680 = vsel %vm476, %v199, 0
      %v682 = vsel %vm476, %v201, 0
      %v684 = vsel %vm476, %v202, 0
      %v686 = vsel %vm476, %v204, 0
      %v688 = vsel %vm476, %v205, 0
      %v690 = vsel %vm476, %v207, 0
      %v692 = vsel %vm476, %v208, 0
      %v694 = vsel %vm476, %v210, 0
      %v696 = vsel %vm476, %v211, 0
      %v698 = vsel %vm476, %v213, 0
      %v700 = vsel %vm476, %v214, 0
      %v702 = vsel %vm476, %v216, 0
      %v704 = vsel %vm476, %v217, 0
      %v706 = vsel %vm476, %v219, 0
      %v708 = vsel %vm476, %v220, 0
      %v710 = vsel %vm476, %v222, 0
      %v712 = vsel %vm476, %v223, 0
      %v714 = vsel %vm476, %v225, 0
      %v716 = vsel %vm476, %v226, 0
      %v718 = vsel %vm476, %v228, 0
      %v720 = vsel %vm476, %v229, 0
      %v723 = vsel %vm541, %v473, 0
      %725 = vmatpush.msra.mxu0 0.0
      %726 = vmatpush.msra.mxu0 0.0
      %727 = vmatpush.msra.mxu0 0.0
      %728 = vmatpush.msra.mxu0 0.0
      %729 = vmatpush.msra.mxu0 0.0
      %730 = vmatpush.msra.mxu0 0.0
      %731 = vmatpush.msra.mxu0 0.0
      %732 = vmatpush.msra.mxu0 0.0
      %733 = vmatpush.msra.mxu0 0.0
      %734 = vmatpush.msra.mxu0 0.0
      %735 = vmatpush.msra.mxu0 0.0
      %736 = vmatpush.msra.mxu0 0.0
      %737 = vmatpush.msra.mxu0 0.0
      %738 = vmatpush.msra.mxu0 0.0
      %739 = vmatpush.msra.mxu0 0.0
      %740 = vmatpush.msra.mxu0 %v723
      %741 = vmatmul.f32.gmra.mxu0 %v658
      %v742 = vpop.f32.mrf.mxu0
      %v743 = vadd.f32 %v563, %v742
      %744 = vmatmul.f32.gmra.mxu0 %v660
      %v745 = vpop.f32.mrf.mxu0
      %v746 = vadd.f32 %v566, %v745
      %747 = vmatmul.f32.gmra.mxu0 %v662
      %v748 = vpop.f32.mrf.mxu0
      %v749 = vadd.f32 %v569, %v748
      %750 = vmatmul.f32.gmra.mxu0 %v664
      %v751 = vpop.f32.mrf.mxu0
      %v752 = vadd.f32 %v572, %v751
      %753 = vmatmul.f32.gmra.mxu0 %v666
      %v754 = vpop.f32.mrf.mxu0
      %v755 = vadd.f32 %v575, %v754
      %756 = vmatmul.f32.gmra.mxu0 %v668
      %v757 = vpop.f32.mrf.mxu0
      %v758 = vadd.f32 %v578, %v757
      %759 = vmatmul.f32.gmra.mxu0 %v670
      %v760 = vpop.f32.mrf.mxu0
      %v761 = vadd.f32 %v581, %v760
      %762 = vmatmul.f32.gmra.mxu0 %v672
      %v763 = vpop.f32.mrf.mxu0
      %v764 = vadd.f32 %v584, %v763
      %765 = vmatmul.f32.gmra.mxu0 %v674
      %v766 = vpop.f32.mrf.mxu0
      %v767 = vadd.f32 %v587, %v766
      %768 = vmatmul.f32.gmra.mxu0 %v676
      %v769 = vpop.f32.mrf.mxu0
      %v770 = vadd.f32 %v590, %v769
      %771 = vmatmul.f32.gmra.mxu0 %v678
      %v772 = vpop.f32.mrf.mxu0
      %v773 = vadd.f32 %v593, %v772
      %774 = vmatmul.f32.gmra.mxu0 %v680
      %v775 = vpop.f32.mrf.mxu0
      %v776 = vadd.f32 %v596, %v775
      %777 = vmatmul.f32.gmra.mxu0 %v682
      %v778 = vpop.f32.mrf.mxu0
      %v779 = vadd.f32 %v599, %v778
      %780 = vmatmul.f32.gmra.mxu0 %v684
      %v781 = vpop.f32.mrf.mxu0
      %v782 = vadd.f32 %v602, %v781
      %783 = vmatmul.f32.gmra.mxu0 %v686
      %v784 = vpop.f32.mrf.mxu0
      %v785 = vadd.f32 %v605, %v784
      %786 = vmatmul.f32.gmra.mxu0 %v688
      %v787 = vpop.f32.mrf.mxu0
      %v788 = vadd.f32 %v608, %v787
      %789 = vmatmul.f32.gmra.mxu0 %v690
      %v790 = vpop.f32.mrf.mxu0
      %v791 = vadd.f32 %v611, %v790
      %792 = vmatmul.f32.gmra.mxu0 %v692
      %v793 = vpop.f32.mrf.mxu0
      %v794 = vadd.f32 %v614, %v793
      %795 = vmatmul.f32.gmra.mxu0 %v694
      %v796 = vpop.f32.mrf.mxu0
      %v797 = vadd.f32 %v617, %v796
      %798 = vmatmul.f32.gmra.mxu0 %v696
      %v799 = vpop.f32.mrf.mxu0
      %v800 = vadd.f32 %v620, %v799
      %801 = vmatmul.f32.gmra.mxu0 %v698
      %v802 = vpop.f32.mrf.mxu0
      %v803 = vadd.f32 %v623, %v802
      %804 = vmatmul.f32.gmra.mxu0 %v700
      %v805 = vpop.f32.mrf.mxu0
      %v806 = vadd.f32 %v626, %v805
      %807 = vmatmul.f32.gmra.mxu0 %v702
      %v808 = vpop.f32.mrf.mxu0
      %v809 = vadd.f32 %v629, %v808
      %810 = vmatmul.f32.gmra.mxu0 %v704
      %v811 = vpop.f32.mrf.mxu0
      %v812 = vadd.f32 %v632, %v811
      %813 = vmatmul.f32.gmra.mxu0 %v706
      %v814 = vpop.f32.mrf.mxu0
      %v815 = vadd.f32 %v635, %v814
      %816 = vmatmul.f32.gmra.mxu0 %v708
      %v817 = vpop.f32.mrf.mxu0
      %v818 = vadd.f32 %v638, %v817
      %819 = vmatmul.f32.gmra.mxu0 %v710
      %v820 = vpop.f32.mrf.mxu0
      %v821 = vadd.f32 %v641, %v820
      %822 = vmatmul.f32.gmra.mxu0 %v712
      %v823 = vpop.f32.mrf.mxu0
      %v824 = vadd.f32 %v644, %v823
      %825 = vmatmul.f32.gmra.mxu0 %v714
      %v826 = vpop.f32.mrf.mxu0
      %v827 = vadd.f32 %v647, %v826
      %828 = vmatmul.f32.gmra.mxu0 %v716
      %v829 = vpop.f32.mrf.mxu0
      %v830 = vadd.f32 %v650, %v829
      %831 = vmatmul.f32.gmra.mxu0 %v718
      %v832 = vpop.f32.mrf.mxu0
      %v833 = vadd.f32 %v653, %v832
      %834 = vmatmul.f32.gmra.mxu0 %v720
      %v835 = vpop.f32.mrf.mxu0
      %v836 = vadd.f32 %v656, %v835
      %837 = vdwg.mxu0
      %s838 = scalar_lea.vmem %s1, 8
      %v839 = vld [vmem:[%s838] sm:$0xf]
      %v840 = vsel %vm476, %v231, 0
      %v842 = vsel %vm476, %v232, 0
      %v845 = vsel %vm541, %v839, 0
      %847 = vmatpush.msra.mxu0 0.0
      %848 = vmatpush.msra.mxu0 0.0
      %849 = vmatpush.msra.mxu0 0.0
      %850 = vmatpush.msra.mxu0 0.0
      %851 = vmatpush.msra.mxu0 0.0
      %852 = vmatpush.msra.mxu0 0.0
      %853 = vmatpush.msra.mxu0 0.0
      %854 = vmatpush.msra.mxu0 0.0
      %855 = vmatpush.msra.mxu0 0.0
      %856 = vmatpush.msra.mxu0 0.0
      %857 = vmatpush.msra.mxu0 0.0
      %858 = vmatpush.msra.mxu0 0.0
      %859 = vmatpush.msra.mxu0 0.0
      %860 = vmatpush.msra.mxu0 0.0
      %861 = vmatpush.msra.mxu0 0.0
      %862 = vmatpush.msra.mxu0 %v845
      %863 = vmatmul.f32.gmra.mxu0 %v662
      %v864 = vpop.f32.mrf.mxu0
      %v865 = vadd.f32 0.0, %v864
      %866 = vmatmul.f32.gmra.mxu0 %v664
      %v867 = vpop.f32.mrf.mxu0
      %v868 = vadd.f32 0.0, %v867
      %869 = vmatmul.f32.gmra.mxu0 %v666
      %v870 = vpop.f32.mrf.mxu0
      %v871 = vadd.f32 0.0, %v870
      %872 = vmatmul.f32.gmra.mxu0 %v668
      %v873 = vpop.f32.mrf.mxu0
      %v874 = vadd.f32 0.0, %v873
      %875 = vmatmul.f32.gmra.mxu0 %v670
      %v876 = vpop.f32.mrf.mxu0
      %v877 = vadd.f32 0.0, %v876
      %878 = vmatmul.f32.gmra.mxu0 %v672
      %v879 = vpop.f32.mrf.mxu0
      %v880 = vadd.f32 0.0, %v879
      %881 = vmatmul.f32.gmra.mxu0 %v674
      %v882 = vpop.f32.mrf.mxu0
      %v883 = vadd.f32 0.0, %v882
      %884 = vmatmul.f32.gmra.mxu0 %v676
      %v885 = vpop.f32.mrf.mxu0
      %v886 = vadd.f32 0.0, %v885
      %887 = vmatmul.f32.gmra.mxu0 %v678
      %v888 = vpop.f32.mrf.mxu0
      %v889 = vadd.f32 0.0, %v888
      %890 = vmatmul.f32.gmra.mxu0 %v680
      %v891 = vpop.f32.mrf.mxu0
      %v892 = vadd.f32 0.0, %v891
      %893 = vmatmul.f32.gmra.mxu0 %v682
      %v894 = vpop.f32.mrf.mxu0
      %v895 = vadd.f32 0.0, %v894
      %896 = vmatmul.f32.gmra.mxu0 %v684
      %v897 = vpop.f32.mrf.mxu0
      %v898 = vadd.f32 0.0, %v897
      %899 = vmatmul.f32.gmra.mxu0 %v686
      %v900 = vpop.f32.mrf.mxu0
      %v901 = vadd.f32 0.0, %v900
      %902 = vmatmul.f32.gmra.mxu0 %v688
      %v903 = vpop.f32.mrf.mxu0
      %v904 = vadd.f32 0.0, %v903
      %905 = vmatmul.f32.gmra.mxu0 %v690
      %v906 = vpop.f32.mrf.mxu0
      %v907 = vadd.f32 0.0, %v906
      %908 = vmatmul.f32.gmra.mxu0 %v692
      %v909 = vpop.f32.mrf.mxu0
      %v910 = vadd.f32 0.0, %v909
      %911 = vmatmul.f32.gmra.mxu0 %v694
      %v912 = vpop.f32.mrf.mxu0
      %v913 = vadd.f32 0.0, %v912
      %914 = vmatmul.f32.gmra.mxu0 %v696
      %v915 = vpop.f32.mrf.mxu0
      %v916 = vadd.f32 0.0, %v915
      %917 = vmatmul.f32.gmra.mxu0 %v698
      %v918 = vpop.f32.mrf.mxu0
      %v919 = vadd.f32 0.0, %v918
      %920 = vmatmul.f32.gmra.mxu0 %v700
      %v921 = vpop.f32.mrf.mxu0
      %v922 = vadd.f32 0.0, %v921
      %923 = vmatmul.f32.gmra.mxu0 %v702
      %v924 = vpop.f32.mrf.mxu0
      %v925 = vadd.f32 0.0, %v924
      %926 = vmatmul.f32.gmra.mxu0 %v704
      %v927 = vpop.f32.mrf.mxu0
      %v928 = vadd.f32 0.0, %v927
      %929 = vmatmul.f32.gmra.mxu0 %v706
      %v930 = vpop.f32.mrf.mxu0
      %v931 = vadd.f32 0.0, %v930
      %932 = vmatmul.f32.gmra.mxu0 %v708
      %v933 = vpop.f32.mrf.mxu0
      %v934 = vadd.f32 0.0, %v933
      %935 = vmatmul.f32.gmra.mxu0 %v710
      %v936 = vpop.f32.mrf.mxu0
      %v937 = vadd.f32 0.0, %v936
      %938 = vmatmul.f32.gmra.mxu0 %v712
      %v939 = vpop.f32.mrf.mxu0
      %v940 = vadd.f32 0.0, %v939
      %941 = vmatmul.f32.gmra.mxu0 %v714
      %v942 = vpop.f32.mrf.mxu0
      %v943 = vadd.f32 0.0, %v942
      %944 = vmatmul.f32.gmra.mxu0 %v716
      %v945 = vpop.f32.mrf.mxu0
      %v946 = vadd.f32 0.0, %v945
      %947 = vmatmul.f32.gmra.mxu0 %v718
      %v948 = vpop.f32.mrf.mxu0
      %v949 = vadd.f32 0.0, %v948
      %950 = vmatmul.f32.gmra.mxu0 %v720
      %v951 = vpop.f32.mrf.mxu0
      %v952 = vadd.f32 0.0, %v951
      %953 = vmatmul.f32.gmra.mxu0 %v840
      %v954 = vpop.f32.mrf.mxu0
      %v955 = vadd.f32 0.0, %v954
      %956 = vmatmul.f32.gmra.mxu0 %v842
      %v957 = vpop.f32.mrf.mxu0
      %v958 = vadd.f32 0.0, %v957
      %959 = vdwg.mxu0
      %v960 = vadd.f32 %v743, %v865
      %v961 = vadd.f32 %v746, %v868
      %v962 = vadd.f32 %v749, %v871
      %v963 = vadd.f32 %v752, %v874
      %v964 = vadd.f32 %v755, %v877
      %v965 = vadd.f32 %v758, %v880
      %v966 = vadd.f32 %v761, %v883
      %v967 = vadd.f32 %v764, %v886
      %v968 = vadd.f32 %v767, %v889
      %v969 = vadd.f32 %v770, %v892
      %v970 = vadd.f32 %v773, %v895
      %v971 = vadd.f32 %v776, %v898
      %v972 = vadd.f32 %v779, %v901
      %v973 = vadd.f32 %v782, %v904
      %v974 = vadd.f32 %v785, %v907
      %v975 = vadd.f32 %v788, %v910
      %v976 = vadd.f32 %v791, %v913
      %v977 = vadd.f32 %v794, %v916
      %v978 = vadd.f32 %v797, %v919
      %v979 = vadd.f32 %v800, %v922
      %v980 = vadd.f32 %v803, %v925
      %v981 = vadd.f32 %v806, %v928
      %v982 = vadd.f32 %v809, %v931
      %v983 = vadd.f32 %v812, %v934
      %v984 = vadd.f32 %v815, %v937
      %v985 = vadd.f32 %v818, %v940
      %v986 = vadd.f32 %v821, %v943
      %v987 = vadd.f32 %v824, %v946
      %v988 = vadd.f32 %v827, %v949
      %v989 = vadd.f32 %v830, %v952
      %v990 = vadd.f32 %v833, %v955
      %v991 = vadd.f32 %v836, %v958
      %s992 = scalar_lea.vmem %s1, 12
      %v993 = vld [vmem:[%s992] sm:$0xf]
      %v994 = vsel %vm476, %v452, 0
      %v996 = vsel %vm476, %v454, 0
      %v999 = vsel %vm541, %v993, 0
      %1001 = vmatpush.msra.mxu0 0.0
      %1002 = vmatpush.msra.mxu0 0.0
      %1003 = vmatpush.msra.mxu0 0.0
      %1004 = vmatpush.msra.mxu0 0.0
      %1005 = vmatpush.msra.mxu0 0.0
      %1006 = vmatpush.msra.mxu0 0.0
      %1007 = vmatpush.msra.mxu0 0.0
      %1008 = vmatpush.msra.mxu0 0.0
      %1009 = vmatpush.msra.mxu0 0.0
      %1010 = vmatpush.msra.mxu0 0.0
      %1011 = vmatpush.msra.mxu0 0.0
      %1012 = vmatpush.msra.mxu0 0.0
      %1013 = vmatpush.msra.mxu0 0.0
      %1014 = vmatpush.msra.mxu0 0.0
      %1015 = vmatpush.msra.mxu0 0.0
      %1016 = vmatpush.msra.mxu0 %v999
      %1017 = vmatmul.f32.gmra.mxu0 %v481
      %v1018 = vpop.f32.mrf.mxu0
      %v1019 = vadd.f32 0.0, %v1018
      %1020 = vmatmul.f32.gmra.mxu0 %v483
      %v1021 = vpop.f32.mrf.mxu0
      %v1022 = vadd.f32 0.0, %v1021
      %1023 = vmatmul.f32.gmra.mxu0 %v485
      %v1024 = vpop.f32.mrf.mxu0
      %v1025 = vadd.f32 0.0, %v1024
      %1026 = vmatmul.f32.gmra.mxu0 %v487
      %v1027 = vpop.f32.mrf.mxu0
      %v1028 = vadd.f32 0.0, %v1027
      %1029 = vmatmul.f32.gmra.mxu0 %v489
      %v1030 = vpop.f32.mrf.mxu0
      %v1031 = vadd.f32 0.0, %v1030
      %1032 = vmatmul.f32.gmra.mxu0 %v491
      %v1033 = vpop.f32.mrf.mxu0
      %v1034 = vadd.f32 0.0, %v1033
      %1035 = vmatmul.f32.gmra.mxu0 %v493
      %v1036 = vpop.f32.mrf.mxu0
      %v1037 = vadd.f32 0.0, %v1036
      %1038 = vmatmul.f32.gmra.mxu0 %v495
      %v1039 = vpop.f32.mrf.mxu0
      %v1040 = vadd.f32 0.0, %v1039
      %1041 = vmatmul.f32.gmra.mxu0 %v497
      %v1042 = vpop.f32.mrf.mxu0
      %v1043 = vadd.f32 0.0, %v1042
      %1044 = vmatmul.f32.gmra.mxu0 %v499
      %v1045 = vpop.f32.mrf.mxu0
      %v1046 = vadd.f32 0.0, %v1045
      %1047 = vmatmul.f32.gmra.mxu0 %v501
      %v1048 = vpop.f32.mrf.mxu0
      %v1049 = vadd.f32 0.0, %v1048
      %1050 = vmatmul.f32.gmra.mxu0 %v503
      %v1051 = vpop.f32.mrf.mxu0
      %v1052 = vadd.f32 0.0, %v1051
      %1053 = vmatmul.f32.gmra.mxu0 %v505
      %v1054 = vpop.f32.mrf.mxu0
      %v1055 = vadd.f32 0.0, %v1054
      %1056 = vmatmul.f32.gmra.mxu0 %v507
      %v1057 = vpop.f32.mrf.mxu0
      %v1058 = vadd.f32 0.0, %v1057
      %1059 = vmatmul.f32.gmra.mxu0 %v509
      %v1060 = vpop.f32.mrf.mxu0
      %v1061 = vadd.f32 0.0, %v1060
      %1062 = vmatmul.f32.gmra.mxu0 %v511
      %v1063 = vpop.f32.mrf.mxu0
      %v1064 = vadd.f32 0.0, %v1063
      %1065 = vmatmul.f32.gmra.mxu0 %v513
      %v1066 = vpop.f32.mrf.mxu0
      %v1067 = vadd.f32 0.0, %v1066
      %1068 = vmatmul.f32.gmra.mxu0 %v515
      %v1069 = vpop.f32.mrf.mxu0
      %v1070 = vadd.f32 0.0, %v1069
      %1071 = vmatmul.f32.gmra.mxu0 %v517
      %v1072 = vpop.f32.mrf.mxu0
      %v1073 = vadd.f32 0.0, %v1072
      %1074 = vmatmul.f32.gmra.mxu0 %v519
      %v1075 = vpop.f32.mrf.mxu0
      %v1076 = vadd.f32 0.0, %v1075
      %1077 = vmatmul.f32.gmra.mxu0 %v521
      %v1078 = vpop.f32.mrf.mxu0
      %v1079 = vadd.f32 0.0, %v1078
      %1080 = vmatmul.f32.gmra.mxu0 %v523
      %v1081 = vpop.f32.mrf.mxu0
      %v1082 = vadd.f32 0.0, %v1081
      %1083 = vmatmul.f32.gmra.mxu0 %v525
      %v1084 = vpop.f32.mrf.mxu0
      %v1085 = vadd.f32 0.0, %v1084
      %1086 = vmatmul.f32.gmra.mxu0 %v527
      %v1087 = vpop.f32.mrf.mxu0
      %v1088 = vadd.f32 0.0, %v1087
      %1089 = vmatmul.f32.gmra.mxu0 %v529
      %v1090 = vpop.f32.mrf.mxu0
      %v1091 = vadd.f32 0.0, %v1090
      %1092 = vmatmul.f32.gmra.mxu0 %v531
      %v1093 = vpop.f32.mrf.mxu0
      %v1094 = vadd.f32 0.0, %v1093
      %1095 = vmatmul.f32.gmra.mxu0 %v533
      %v1096 = vpop.f32.mrf.mxu0
      %v1097 = vadd.f32 0.0, %v1096
      %1098 = vmatmul.f32.gmra.mxu0 %v535
      %v1099 = vpop.f32.mrf.mxu0
      %v1100 = vadd.f32 0.0, %v1099
      %1101 = vmatmul.f32.gmra.mxu0 %v537
      %v1102 = vpop.f32.mrf.mxu0
      %v1103 = vadd.f32 0.0, %v1102
      %1104 = vmatmul.f32.gmra.mxu0 %v539
      %v1105 = vpop.f32.mrf.mxu0
      %v1106 = vadd.f32 0.0, %v1105
      %1107 = vmatmul.f32.gmra.mxu0 %v994
      %v1108 = vpop.f32.mrf.mxu0
      %v1109 = vadd.f32 0.0, %v1108
      %1110 = vmatmul.f32.gmra.mxu0 %v996
      %v1111 = vpop.f32.mrf.mxu0
      %v1112 = vadd.f32 0.0, %v1111
      %1113 = vdwg.mxu0
      %v1114 = vadd.f32 %v960, %v1019
      %v1115 = vadd.f32 %v961, %v1022
      %v1116 = vadd.f32 %v962, %v1025
      %v1117 = vadd.f32 %v963, %v1028
      %v1118 = vadd.f32 %v964, %v1031
      %v1119 = vadd.f32 %v965, %v1034
      %v1120 = vadd.f32 %v966, %v1037
      %v1121 = vadd.f32 %v967, %v1040
      %v1122 = vadd.f32 %v968, %v1043
      %v1123 = vadd.f32 %v969, %v1046
      %v1124 = vadd.f32 %v970, %v1049
      %v1125 = vadd.f32 %v971, %v1052
      %v1126 = vadd.f32 %v972, %v1055
      %v1127 = vadd.f32 %v973, %v1058
      %v1128 = vadd.f32 %v974, %v1061
      %v1129 = vadd.f32 %v975, %v1064
      %v1130 = vadd.f32 %v976, %v1067
      %v1131 = vadd.f32 %v977, %v1070
      %v1132 = vadd.f32 %v978, %v1073
      %v1133 = vadd.f32 %v979, %v1076
      %v1134 = vadd.f32 %v980, %v1079
      %v1135 = vadd.f32 %v981, %v1082
      %v1136 = vadd.f32 %v982, %v1085
      %v1137 = vadd.f32 %v983, %v1088
      %v1138 = vadd.f32 %v984, %v1091
      %v1139 = vadd.f32 %v985, %v1094
      %v1140 = vadd.f32 %v986, %v1097
      %v1141 = vadd.f32 %v987, %v1100
      %v1142 = vadd.f32 %v988, %v1103
      %v1143 = vadd.f32 %v989, %v1106
      %v1144 = vadd.f32 %v990, %v1109
      %v1145 = vadd.f32 %v991, %v1112
      %1146 = vst.msk [vmem:[%s181] sm:$0xff] %vm476, %v1114
      %1147 = vst.msk [vmem:[%s181 + $0x8] sm:$0xff] %vm476, %v1115
      %1148 = vst.msk [vmem:[%s181 + $0x10] sm:$0xff] %vm476, %v1116
      %1149 = vst.msk [vmem:[%s181 + $0x18] sm:$0xff] %vm476, %v1117
      %1150 = vst.msk [vmem:[%s181 + $0x20] sm:$0xff] %vm476, %v1118
      %1151 = vst.msk [vmem:[%s181 + $0x28] sm:$0xff] %vm476, %v1119
      %1152 = vst.msk [vmem:[%s181 + $0x30] sm:$0xff] %vm476, %v1120
      %1153 = vst.msk [vmem:[%s181 + $0x38] sm:$0xff] %vm476, %v1121
      %1154 = vst.msk [vmem:[%s181 + $0x40] sm:$0xff] %vm476, %v1122
      %1155 = vst.msk [vmem:[%s181 + $0x48] sm:$0xff] %vm476, %v1123
      %1156 = vst.msk [vmem:[%s181 + $0x50] sm:$0xff] %vm476, %v1124
      %1157 = vst.msk [vmem:[%s181 + $0x58] sm:$0xff] %vm476, %v1125
      %1158 = vst.msk [vmem:[%s181 + $0x60] sm:$0xff] %vm476, %v1126
      %1159 = vst.msk [vmem:[%s181 + $0x68] sm:$0xff] %vm476, %v1127
      %1160 = vst.msk [vmem:[%s181 + $0x70] sm:$0xff] %vm476, %v1128
      %1161 = vst.msk [vmem:[%s181 + $0x78] sm:$0xff] %vm476, %v1129
      %1162 = vst.msk [vmem:[%s181 + $0x80] sm:$0xff] %vm476, %v1130
      %1163 = vst.msk [vmem:[%s181 + $0x88] sm:$0xff] %vm476, %v1131
      %1164 = vst.msk [vmem:[%s181 + $0x90] sm:$0xff] %vm476, %v1132
      %1165 = vst.msk [vmem:[%s181 + $0x98] sm:$0xff] %vm476, %v1133
      %1166 = vst.msk [vmem:[%s181 + $0xa0] sm:$0xff] %vm476, %v1134
      %1167 = vst.msk [vmem:[%s181 + $0xa8] sm:$0xff] %vm476, %v1135
      %1168 = vst.msk [vmem:[%s181 + $0xb0] sm:$0xff] %vm476, %v1136
      %1169 = vst.msk [vmem:[%s181 + $0xb8] sm:$0xff] %vm476, %v1137
      %1170 = vst.msk [vmem:[%s181 + $0xc0] sm:$0xff] %vm476, %v1138
      %1171 = vst.msk [vmem:[%s181 + $0xc8] sm:$0xff] %vm476, %v1139
      %1172 = vst.msk [vmem:[%s181 + $0xd0] sm:$0xff] %vm476, %v1140
      %1173 = vst.msk [vmem:[%s181 + $0xd8] sm:$0xff] %vm476, %v1141
      %1174 = vst.msk [vmem:[%s181 + $0xe0] sm:$0xff] %vm476, %v1142
      %1175 = vst.msk [vmem:[%s181 + $0xe8] sm:$0xff] %vm476, %v1143
      %1176 = vst.msk [vmem:[%s181 + $0xf0] sm:$0xff] %vm476, %v1144
      %1177 = vst.msk [vmem:[%s181 + $0xf8] sm:$0xff] %vm476, %v1145
      %s1178 = scalar_lea.vmem %s1, 16
      %v1179 = vld [vmem:[%s1178] sm:$0xf]
      %s1180 = scalar_lea.vmem %s1, 20
      %v1181 = vld [vmem:[%s1180] sm:$0xf]
      %v1182 = vsel %vm476, %v369, 0
      %v1184 = vsel %vm476, %v371, 0
      %v1186 = vsel %vm476, %v374, 0
      %v1188 = vsel %vm476, %v376, 0
      %v1190 = vsel %vm476, %v379, 0
      %v1192 = vsel %vm476, %v381, 0
      %v1194 = vsel %vm476, %v384, 0
      %v1196 = vsel %vm476, %v386, 0
      %v1198 = vsel %vm476, %v389, 0
      %v1200 = vsel %vm476, %v391, 0
      %v1202 = vsel %vm476, %v394, 0
      %v1204 = vsel %vm476, %v396, 0
      %v1206 = vsel %vm476, %v399, 0
      %v1208 = vsel %vm476, %v401, 0
      %v1210 = vsel %vm476, %v404, 0
      %v1212 = vsel %vm476, %v406, 0
      %v1214 = vsel %vm476, %v409, 0
      %v1216 = vsel %vm476, %v411, 0
      %v1218 = vsel %vm476, %v414, 0
      %v1220 = vsel %vm476, %v416, 0
      %v1222 = vsel %vm476, %v419, 0
      %v1224 = vsel %vm476, %v421, 0
      %v1226 = vsel %vm476, %v424, 0
      %v1228 = vsel %vm476, %v426, 0
      %v1230 = vsel %vm476, %v429, 0
      %v1232 = vsel %vm476, %v431, 0
      %v1234 = vsel %vm476, %v434, 0
      %v1236 = vsel %vm476, %v436, 0
      %v1238 = vsel %vm476, %v439, 0
      %v1240 = vsel %vm476, %v441, 0
      %v1242 = vsel %vm476, %v444, 0
      %v1244 = vsel %vm476, %v446, 0
      %v1247 = vsel %vm541, %v1181, 0
      %1249 = vmatpush.msra.mxu0 0.0
      %1250 = vmatpush.msra.mxu0 0.0
      %1251 = vmatpush.msra.mxu0 0.0
      %1252 = vmatpush.msra.mxu0 0.0
      %1253 = vmatpush.msra.mxu0 0.0
      %1254 = vmatpush.msra.mxu0 0.0
      %1255 = vmatpush.msra.mxu0 0.0
      %1256 = vmatpush.msra.mxu0 0.0
      %1257 = vmatpush.msra.mxu0 0.0
      %1258 = vmatpush.msra.mxu0 0.0
      %1259 = vmatpush.msra.mxu0 0.0
      %1260 = vmatpush.msra.mxu0 0.0
      %1261 = vmatpush.msra.mxu0 0.0
      %1262 = vmatpush.msra.mxu0 0.0
      %1263 = vmatpush.msra.mxu0 0.0
      %1264 = vmatpush.msra.mxu0 %v1247
      %1265 = vmatmul.f32.gmra.mxu0 %v1182
      %v1266 = vpop.f32.mrf.mxu0
      %v1267 = vadd.f32 0.0, %v1266
      %1268 = vmatmul.f32.gmra.mxu0 %v1184
      %v1269 = vpop.f32.mrf.mxu0
      %v1270 = vadd.f32 0.0, %v1269
      %1271 = vmatmul.f32.gmra.mxu0 %v1186
      %v1272 = vpop.f32.mrf.mxu0
      %v1273 = vadd.f32 0.0, %v1272
      %1274 = vmatmul.f32.gmra.mxu0 %v1188
      %v1275 = vpop.f32.mrf.mxu0
      %v1276 = vadd.f32 0.0, %v1275
      %1277 = vmatmul.f32.gmra.mxu0 %v1190
      %v1278 = vpop.f32.mrf.mxu0
      %v1279 = vadd.f32 0.0, %v1278
      %1280 = vmatmul.f32.gmra.mxu0 %v1192
      %v1281 = vpop.f32.mrf.mxu0
      %v1282 = vadd.f32 0.0, %v1281
      %1283 = vmatmul.f32.gmra.mxu0 %v1194
      %v1284 = vpop.f32.mrf.mxu0
      %v1285 = vadd.f32 0.0, %v1284
      %1286 = vmatmul.f32.gmra.mxu0 %v1196
      %v1287 = vpop.f32.mrf.mxu0
      %v1288 = vadd.f32 0.0, %v1287
      %1289 = vmatmul.f32.gmra.mxu0 %v1198
      %v1290 = vpop.f32.mrf.mxu0
      %v1291 = vadd.f32 0.0, %v1290
      %1292 = vmatmul.f32.gmra.mxu0 %v1200
      %v1293 = vpop.f32.mrf.mxu0
      %v1294 = vadd.f32 0.0, %v1293
      %1295 = vmatmul.f32.gmra.mxu0 %v1202
      %v1296 = vpop.f32.mrf.mxu0
      %v1297 = vadd.f32 0.0, %v1296
      %1298 = vmatmul.f32.gmra.mxu0 %v1204
      %v1299 = vpop.f32.mrf.mxu0
      %v1300 = vadd.f32 0.0, %v1299
      %1301 = vmatmul.f32.gmra.mxu0 %v1206
      %v1302 = vpop.f32.mrf.mxu0
      %v1303 = vadd.f32 0.0, %v1302
      %1304 = vmatmul.f32.gmra.mxu0 %v1208
      %v1305 = vpop.f32.mrf.mxu0
      %v1306 = vadd.f32 0.0, %v1305
      %1307 = vmatmul.f32.gmra.mxu0 %v1210
      %v1308 = vpop.f32.mrf.mxu0
      %v1309 = vadd.f32 0.0, %v1308
      %1310 = vmatmul.f32.gmra.mxu0 %v1212
      %v1311 = vpop.f32.mrf.mxu0
      %v1312 = vadd.f32 0.0, %v1311
      %1313 = vmatmul.f32.gmra.mxu0 %v1214
      %v1314 = vpop.f32.mrf.mxu0
      %v1315 = vadd.f32 0.0, %v1314
      %1316 = vmatmul.f32.gmra.mxu0 %v1216
      %v1317 = vpop.f32.mrf.mxu0
      %v1318 = vadd.f32 0.0, %v1317
      %1319 = vmatmul.f32.gmra.mxu0 %v1218
      %v1320 = vpop.f32.mrf.mxu0
      %v1321 = vadd.f32 0.0, %v1320
      %1322 = vmatmul.f32.gmra.mxu0 %v1220
      %v1323 = vpop.f32.mrf.mxu0
      %v1324 = vadd.f32 0.0, %v1323
      %1325 = vmatmul.f32.gmra.mxu0 %v1222
      %v1326 = vpop.f32.mrf.mxu0
      %v1327 = vadd.f32 0.0, %v1326
      %1328 = vmatmul.f32.gmra.mxu0 %v1224
      %v1329 = vpop.f32.mrf.mxu0
      %v1330 = vadd.f32 0.0, %v1329
      %1331 = vmatmul.f32.gmra.mxu0 %v1226
      %v1332 = vpop.f32.mrf.mxu0
      %v1333 = vadd.f32 0.0, %v1332
      %1334 = vmatmul.f32.gmra.mxu0 %v1228
      %v1335 = vpop.f32.mrf.mxu0
      %v1336 = vadd.f32 0.0, %v1335
      %1337 = vmatmul.f32.gmra.mxu0 %v1230
      %v1338 = vpop.f32.mrf.mxu0
      %v1339 = vadd.f32 0.0, %v1338
      %1340 = vmatmul.f32.gmra.mxu0 %v1232
      %v1341 = vpop.f32.mrf.mxu0
      %v1342 = vadd.f32 0.0, %v1341
      %1343 = vmatmul.f32.gmra.mxu0 %v1234
      %v1344 = vpop.f32.mrf.mxu0
      %v1345 = vadd.f32 0.0, %v1344
      %1346 = vmatmul.f32.gmra.mxu0 %v1236
      %v1347 = vpop.f32.mrf.mxu0
      %v1348 = vadd.f32 0.0, %v1347
      %1349 = vmatmul.f32.gmra.mxu0 %v1238
      %v1350 = vpop.f32.mrf.mxu0
      %v1351 = vadd.f32 0.0, %v1350
      %1352 = vmatmul.f32.gmra.mxu0 %v1240
      %v1353 = vpop.f32.mrf.mxu0
      %v1354 = vadd.f32 0.0, %v1353
      %1355 = vmatmul.f32.gmra.mxu0 %v1242
      %v1356 = vpop.f32.mrf.mxu0
      %v1357 = vadd.f32 0.0, %v1356
      %1358 = vmatmul.f32.gmra.mxu0 %v1244
      %v1359 = vpop.f32.mrf.mxu0
      %v1360 = vadd.f32 0.0, %v1359
      %1361 = vdwg.mxu0
      %v1363 = vsel %vm541, %v1179, 0
      %1365 = vmatpush.msra.mxu0 0.0
      %1366 = vmatpush.msra.mxu0 0.0
      %1367 = vmatpush.msra.mxu0 0.0
      %1368 = vmatpush.msra.mxu0 0.0
      %1369 = vmatpush.msra.mxu0 0.0
      %1370 = vmatpush.msra.mxu0 0.0
      %1371 = vmatpush.msra.mxu0 0.0
      %1372 = vmatpush.msra.mxu0 0.0
      %1373 = vmatpush.msra.mxu0 0.0
      %1374 = vmatpush.msra.mxu0 0.0
      %1375 = vmatpush.msra.mxu0 0.0
      %1376 = vmatpush.msra.mxu0 0.0
      %1377 = vmatpush.msra.mxu0 0.0
      %1378 = vmatpush.msra.mxu0 0.0
      %1379 = vmatpush.msra.mxu0 0.0
      %1380 = vmatpush.msra.mxu0 %v1363
      %1381 = vmatmul.f32.gmra.mxu0 %v477
      %v1382 = vpop.f32.mrf.mxu0
      %v1383 = vadd.f32 %v1267, %v1382
      %1384 = vmatmul.f32.gmra.mxu0 %v479
      %v1385 = vpop.f32.mrf.mxu0
      %v1386 = vadd.f32 %v1270, %v1385
      %1387 = vmatmul.f32.gmra.mxu0 %v481
      %v1388 = vpop.f32.mrf.mxu0
      %v1389 = vadd.f32 %v1273, %v1388
      %1390 = vmatmul.f32.gmra.mxu0 %v483
      %v1391 = vpop.f32.mrf.mxu0
      %v1392 = vadd.f32 %v1276, %v1391
      %1393 = vmatmul.f32.gmra.mxu0 %v485
      %v1394 = vpop.f32.mrf.mxu0
      %v1395 = vadd.f32 %v1279, %v1394
      %1396 = vmatmul.f32.gmra.mxu0 %v487
      %v1397 = vpop.f32.mrf.mxu0
      %v1398 = vadd.f32 %v1282, %v1397
      %1399 = vmatmul.f32.gmra.mxu0 %v489
      %v1400 = vpop.f32.mrf.mxu0
      %v1401 = vadd.f32 %v1285, %v1400
      %1402 = vmatmul.f32.gmra.mxu0 %v491
      %v1403 = vpop.f32.mrf.mxu0
      %v1404 = vadd.f32 %v1288, %v1403
      %1405 = vmatmul.f32.gmra.mxu0 %v493
      %v1406 = vpop.f32.mrf.mxu0
      %v1407 = vadd.f32 %v1291, %v1406
      %1408 = vmatmul.f32.gmra.mxu0 %v495
      %v1409 = vpop.f32.mrf.mxu0
      %v1410 = vadd.f32 %v1294, %v1409
      %1411 = vmatmul.f32.gmra.mxu0 %v497
      %v1412 = vpop.f32.mrf.mxu0
      %v1413 = vadd.f32 %v1297, %v1412
      %1414 = vmatmul.f32.gmra.mxu0 %v499
      %v1415 = vpop.f32.mrf.mxu0
      %v1416 = vadd.f32 %v1300, %v1415
      %1417 = vmatmul.f32.gmra.mxu0 %v501
      %v1418 = vpop.f32.mrf.mxu0
      %v1419 = vadd.f32 %v1303, %v1418
      %1420 = vmatmul.f32.gmra.mxu0 %v503
      %v1421 = vpop.f32.mrf.mxu0
      %v1422 = vadd.f32 %v1306, %v1421
      %1423 = vmatmul.f32.gmra.mxu0 %v505
      %v1424 = vpop.f32.mrf.mxu0
      %v1425 = vadd.f32 %v1309, %v1424
      %1426 = vmatmul.f32.gmra.mxu0 %v507
      %v1427 = vpop.f32.mrf.mxu0
      %v1428 = vadd.f32 %v1312, %v1427
      %1429 = vmatmul.f32.gmra.mxu0 %v509
      %v1430 = vpop.f32.mrf.mxu0
      %v1431 = vadd.f32 %v1315, %v1430
      %1432 = vmatmul.f32.gmra.mxu0 %v511
      %v1433 = vpop.f32.mrf.mxu0
      %v1434 = vadd.f32 %v1318, %v1433
      %1435 = vmatmul.f32.gmra.mxu0 %v513
      %v1436 = vpop.f32.mrf.mxu0
      %v1437 = vadd.f32 %v1321, %v1436
      %1438 = vmatmul.f32.gmra.mxu0 %v515
      %v1439 = vpop.f32.mrf.mxu0
      %v1440 = vadd.f32 %v1324, %v1439
      %1441 = vmatmul.f32.gmra.mxu0 %v517
      %v1442 = vpop.f32.mrf.mxu0
      %v1443 = vadd.f32 %v1327, %v1442
      %1444 = vmatmul.f32.gmra.mxu0 %v519
      %v1445 = vpop.f32.mrf.mxu0
      %v1446 = vadd.f32 %v1330, %v1445
      %1447 = vmatmul.f32.gmra.mxu0 %v521
      %v1448 = vpop.f32.mrf.mxu0
      %v1449 = vadd.f32 %v1333, %v1448
      %1450 = vmatmul.f32.gmra.mxu0 %v523
      %v1451 = vpop.f32.mrf.mxu0
      %v1452 = vadd.f32 %v1336, %v1451
      %1453 = vmatmul.f32.gmra.mxu0 %v525
      %v1454 = vpop.f32.mrf.mxu0
      %v1455 = vadd.f32 %v1339, %v1454
      %1456 = vmatmul.f32.gmra.mxu0 %v527
      %v1457 = vpop.f32.mrf.mxu0
      %v1458 = vadd.f32 %v1342, %v1457
      %1459 = vmatmul.f32.gmra.mxu0 %v529
      %v1460 = vpop.f32.mrf.mxu0
      %v1461 = vadd.f32 %v1345, %v1460
      %1462 = vmatmul.f32.gmra.mxu0 %v531
      %v1463 = vpop.f32.mrf.mxu0
      %v1464 = vadd.f32 %v1348, %v1463
      %1465 = vmatmul.f32.gmra.mxu0 %v533
      %v1466 = vpop.f32.mrf.mxu0
      %v1467 = vadd.f32 %v1351, %v1466
      %1468 = vmatmul.f32.gmra.mxu0 %v535
      %v1469 = vpop.f32.mrf.mxu0
      %v1470 = vadd.f32 %v1354, %v1469
      %1471 = vmatmul.f32.gmra.mxu0 %v537
      %v1472 = vpop.f32.mrf.mxu0
      %v1473 = vadd.f32 %v1357, %v1472
      %1474 = vmatmul.f32.gmra.mxu0 %v539
      %v1475 = vpop.f32.mrf.mxu0
      %v1476 = vadd.f32 %v1360, %v1475
      %1477 = vdwg.mxu0
      %s1478 = scalar_lea.vmem %s1, 24
      %v1479 = vld [vmem:[%s1478] sm:$0xf]
      %v1481 = vsel %vm541, %v1479, 0
      %1483 = vmatpush.msra.mxu0 0.0
      %1484 = vmatpush.msra.mxu0 0.0
      %1485 = vmatpush.msra.mxu0 0.0
      %1486 = vmatpush.msra.mxu0 0.0
      %1487 = vmatpush.msra.mxu0 0.0
      %1488 = vmatpush.msra.mxu0 0.0
      %1489 = vmatpush.msra.mxu0 0.0
      %1490 = vmatpush.msra.mxu0 0.0
      %1491 = vmatpush.msra.mxu0 0.0
      %1492 = vmatpush.msra.mxu0 0.0
      %1493 = vmatpush.msra.mxu0 0.0
      %1494 = vmatpush.msra.mxu0 0.0
      %1495 = vmatpush.msra.mxu0 0.0
      %1496 = vmatpush.msra.mxu0 0.0
      %1497 = vmatpush.msra.mxu0 0.0
      %1498 = vmatpush.msra.mxu0 %v1481
      %1499 = vmatmul.f32.gmra.mxu0 %v481
      %v1500 = vpop.f32.mrf.mxu0
      %v1501 = vadd.f32 0.0, %v1500
      %1502 = vmatmul.f32.gmra.mxu0 %v483
      %v1503 = vpop.f32.mrf.mxu0
      %v1504 = vadd.f32 0.0, %v1503
      %1505 = vmatmul.f32.gmra.mxu0 %v485
      %v1506 = vpop.f32.mrf.mxu0
      %v1507 = vadd.f32 0.0, %v1506
      %1508 = vmatmul.f32.gmra.mxu0 %v487
      %v1509 = vpop.f32.mrf.mxu0
      %v1510 = vadd.f32 0.0, %v1509
      %1511 = vmatmul.f32.gmra.mxu0 %v489
      %v1512 = vpop.f32.mrf.mxu0
      %v1513 = vadd.f32 0.0, %v1512
      %1514 = vmatmul.f32.gmra.mxu0 %v491
      %v1515 = vpop.f32.mrf.mxu0
      %v1516 = vadd.f32 0.0, %v1515
      %1517 = vmatmul.f32.gmra.mxu0 %v493
      %v1518 = vpop.f32.mrf.mxu0
      %v1519 = vadd.f32 0.0, %v1518
      %1520 = vmatmul.f32.gmra.mxu0 %v495
      %v1521 = vpop.f32.mrf.mxu0
      %v1522 = vadd.f32 0.0, %v1521
      %1523 = vmatmul.f32.gmra.mxu0 %v497
      %v1524 = vpop.f32.mrf.mxu0
      %v1525 = vadd.f32 0.0, %v1524
      %1526 = vmatmul.f32.gmra.mxu0 %v499
      %v1527 = vpop.f32.mrf.mxu0
      %v1528 = vadd.f32 0.0, %v1527
      %1529 = vmatmul.f32.gmra.mxu0 %v501
      %v1530 = vpop.f32.mrf.mxu0
      %v1531 = vadd.f32 0.0, %v1530
      %1532 = vmatmul.f32.gmra.mxu0 %v503
      %v1533 = vpop.f32.mrf.mxu0
      %v1534 = vadd.f32 0.0, %v1533
      %1535 = vmatmul.f32.gmra.mxu0 %v505
      %v1536 = vpop.f32.mrf.mxu0
      %v1537 = vadd.f32 0.0, %v1536
      %1538 = vmatmul.f32.gmra.mxu0 %v507
      %v1539 = vpop.f32.mrf.mxu0
      %v1540 = vadd.f32 0.0, %v1539
      %1541 = vmatmul.f32.gmra.mxu0 %v509
      %v1542 = vpop.f32.mrf.mxu0
      %v1543 = vadd.f32 0.0, %v1542
      %1544 = vmatmul.f32.gmra.mxu0 %v511
      %v1545 = vpop.f32.mrf.mxu0
      %v1546 = vadd.f32 0.0, %v1545
      %1547 = vmatmul.f32.gmra.mxu0 %v513
      %v1548 = vpop.f32.mrf.mxu0
      %v1549 = vadd.f32 0.0, %v1548
      %1550 = vmatmul.f32.gmra.mxu0 %v515
      %v1551 = vpop.f32.mrf.mxu0
      %v1552 = vadd.f32 0.0, %v1551
      %1553 = vmatmul.f32.gmra.mxu0 %v517
      %v1554 = vpop.f32.mrf.mxu0
      %v1555 = vadd.f32 0.0, %v1554
      %1556 = vmatmul.f32.gmra.mxu0 %v519
      %v1557 = vpop.f32.mrf.mxu0
      %v1558 = vadd.f32 0.0, %v1557
      %1559 = vmatmul.f32.gmra.mxu0 %v521
      %v1560 = vpop.f32.mrf.mxu0
      %v1561 = vadd.f32 0.0, %v1560
      %1562 = vmatmul.f32.gmra.mxu0 %v523
      %v1563 = vpop.f32.mrf.mxu0
      %v1564 = vadd.f32 0.0, %v1563
      %1565 = vmatmul.f32.gmra.mxu0 %v525
      %v1566 = vpop.f32.mrf.mxu0
      %v1567 = vadd.f32 0.0, %v1566
      %1568 = vmatmul.f32.gmra.mxu0 %v527
      %v1569 = vpop.f32.mrf.mxu0
      %v1570 = vadd.f32 0.0, %v1569
      %1571 = vmatmul.f32.gmra.mxu0 %v529
      %v1572 = vpop.f32.mrf.mxu0
      %v1573 = vadd.f32 0.0, %v1572
      %1574 = vmatmul.f32.gmra.mxu0 %v531
      %v1575 = vpop.f32.mrf.mxu0
      %v1576 = vadd.f32 0.0, %v1575
      %1577 = vmatmul.f32.gmra.mxu0 %v533
      %v1578 = vpop.f32.mrf.mxu0
      %v1579 = vadd.f32 0.0, %v1578
      %1580 = vmatmul.f32.gmra.mxu0 %v535
      %v1581 = vpop.f32.mrf.mxu0
      %v1582 = vadd.f32 0.0, %v1581
      %1583 = vmatmul.f32.gmra.mxu0 %v537
      %v1584 = vpop.f32.mrf.mxu0
      %v1585 = vadd.f32 0.0, %v1584
      %1586 = vmatmul.f32.gmra.mxu0 %v539
      %v1587 = vpop.f32.mrf.mxu0
      %v1588 = vadd.f32 0.0, %v1587
      %1589 = vmatmul.f32.gmra.mxu0 %v994
      %v1590 = vpop.f32.mrf.mxu0
      %v1591 = vadd.f32 0.0, %v1590
      %1592 = vmatmul.f32.gmra.mxu0 %v996
      %v1593 = vpop.f32.mrf.mxu0
      %v1594 = vadd.f32 0.0, %v1593
      %1595 = vdwg.mxu0
      %v1596 = vadd.f32 %v1383, %v1501
      %v1597 = vadd.f32 %v1386, %v1504
      %v1598 = vadd.f32 %v1389, %v1507
      %v1599 = vadd.f32 %v1392, %v1510
      %v1600 = vadd.f32 %v1395, %v1513
      %v1601 = vadd.f32 %v1398, %v1516
      %v1602 = vadd.f32 %v1401, %v1519
      %v1603 = vadd.f32 %v1404, %v1522
      %v1604 = vadd.f32 %v1407, %v1525
      %v1605 = vadd.f32 %v1410, %v1528
      %v1606 = vadd.f32 %v1413, %v1531
      %v1607 = vadd.f32 %v1416, %v1534
      %v1608 = vadd.f32 %v1419, %v1537
      %v1609 = vadd.f32 %v1422, %v1540
      %v1610 = vadd.f32 %v1425, %v1543
      %v1611 = vadd.f32 %v1428, %v1546
      %v1612 = vadd.f32 %v1431, %v1549
      %v1613 = vadd.f32 %v1434, %v1552
      %v1614 = vadd.f32 %v1437, %v1555
      %v1615 = vadd.f32 %v1440, %v1558
      %v1616 = vadd.f32 %v1443, %v1561
      %v1617 = vadd.f32 %v1446, %v1564
      %v1618 = vadd.f32 %v1449, %v1567
      %v1619 = vadd.f32 %v1452, %v1570
      %v1620 = vadd.f32 %v1455, %v1573
      %v1621 = vadd.f32 %v1458, %v1576
      %v1622 = vadd.f32 %v1461, %v1579
      %v1623 = vadd.f32 %v1464, %v1582
      %v1624 = vadd.f32 %v1467, %v1585
      %v1625 = vadd.f32 %v1470, %v1588
      %v1626 = vadd.f32 %v1473, %v1591
      %v1627 = vadd.f32 %v1476, %v1594
      %s1628 = scalar_lea.vmem %s1, 28
      %v1629 = vld [vmem:[%s1628] sm:$0xf]
      %v1630 = vsel %vm476, %v457, 0
      %v1632 = vsel %vm476, %v459, 0
      %v1635 = vsel %vm541, %v1629, 0
      %1637 = vmatpush.msra.mxu0 0.0
      %1638 = vmatpush.msra.mxu0 0.0
      %1639 = vmatpush.msra.mxu0 0.0
      %1640 = vmatpush.msra.mxu0 0.0
      %1641 = vmatpush.msra.mxu0 0.0
      %1642 = vmatpush.msra.mxu0 0.0
      %1643 = vmatpush.msra.mxu0 0.0
      %1644 = vmatpush.msra.mxu0 0.0
      %1645 = vmatpush.msra.mxu0 0.0
      %1646 = vmatpush.msra.mxu0 0.0
      %1647 = vmatpush.msra.mxu0 0.0
      %1648 = vmatpush.msra.mxu0 0.0
      %1649 = vmatpush.msra.mxu0 0.0
      %1650 = vmatpush.msra.mxu0 0.0
      %1651 = vmatpush.msra.mxu0 0.0
      %1652 = vmatpush.msra.mxu0 %v1635
      %1653 = vmatmul.f32.gmra.mxu0 %v1186
      %v1654 = vpop.f32.mrf.mxu0
      %v1655 = vadd.f32 0.0, %v1654
      %1656 = vmatmul.f32.gmra.mxu0 %v1188
      %v1657 = vpop.f32.mrf.mxu0
      %v1658 = vadd.f32 0.0, %v1657
      %1659 = vmatmul.f32.gmra.mxu0 %v1190
      %v1660 = vpop.f32.mrf.mxu0
      %v1661 = vadd.f32 0.0, %v1660
      %1662 = vmatmul.f32.gmra.mxu0 %v1192
      %v1663 = vpop.f32.mrf.mxu0
      %v1664 = vadd.f32 0.0, %v1663
      %1665 = vmatmul.f32.gmra.mxu0 %v1194
      %v1666 = vpop.f32.mrf.mxu0
      %v1667 = vadd.f32 0.0, %v1666
      %1668 = vmatmul.f32.gmra.mxu0 %v1196
      %v1669 = vpop.f32.mrf.mxu0
      %v1670 = vadd.f32 0.0, %v1669
      %1671 = vmatmul.f32.gmra.mxu0 %v1198
      %v1672 = vpop.f32.mrf.mxu0
      %v1673 = vadd.f32 0.0, %v1672
      %1674 = vmatmul.f32.gmra.mxu0 %v1200
      %v1675 = vpop.f32.mrf.mxu0
      %v1676 = vadd.f32 0.0, %v1675
      %1677 = vmatmul.f32.gmra.mxu0 %v1202
      %v1678 = vpop.f32.mrf.mxu0
      %v1679 = vadd.f32 0.0, %v1678
      %1680 = vmatmul.f32.gmra.mxu0 %v1204
      %v1681 = vpop.f32.mrf.mxu0
      %v1682 = vadd.f32 0.0, %v1681
      %1683 = vmatmul.f32.gmra.mxu0 %v1206
      %v1684 = vpop.f32.mrf.mxu0
      %v1685 = vadd.f32 0.0, %v1684
      %1686 = vmatmul.f32.gmra.mxu0 %v1208
      %v1687 = vpop.f32.mrf.mxu0
      %v1688 = vadd.f32 0.0, %v1687
      %1689 = vmatmul.f32.gmra.mxu0 %v1210
      %v1690 = vpop.f32.mrf.mxu0
      %v1691 = vadd.f32 0.0, %v1690
      %1692 = vmatmul.f32.gmra.mxu0 %v1212
      %v1693 = vpop.f32.mrf.mxu0
      %v1694 = vadd.f32 0.0, %v1693
      %1695 = vmatmul.f32.gmra.mxu0 %v1214
      %v1696 = vpop.f32.mrf.mxu0
      %v1697 = vadd.f32 0.0, %v1696
      %1698 = vmatmul.f32.gmra.mxu0 %v1216
      %v1699 = vpop.f32.mrf.mxu0
      %v1700 = vadd.f32 0.0, %v1699
      %1701 = vmatmul.f32.gmra.mxu0 %v1218
      %v1702 = vpop.f32.mrf.mxu0
      %v1703 = vadd.f32 0.0, %v1702
      %1704 = vmatmul.f32.gmra.mxu0 %v1220
      %v1705 = vpop.f32.mrf.mxu0
      %v1706 = vadd.f32 0.0, %v1705
      %1707 = vmatmul.f32.gmra.mxu0 %v1222
      %v1708 = vpop.f32.mrf.mxu0
      %v1709 = vadd.f32 0.0, %v1708
      %1710 = vmatmul.f32.gmra.mxu0 %v1224
      %v1711 = vpop.f32.mrf.mxu0
      %v1712 = vadd.f32 0.0, %v1711
      %1713 = vmatmul.f32.gmra.mxu0 %v1226
      %v1714 = vpop.f32.mrf.mxu0
      %v1715 = vadd.f32 0.0, %v1714
      %1716 = vmatmul.f32.gmra.mxu0 %v1228
      %v1717 = vpop.f32.mrf.mxu0
      %v1718 = vadd.f32 0.0, %v1717
      %1719 = vmatmul.f32.gmra.mxu0 %v1230
      %v1720 = vpop.f32.mrf.mxu0
      %v1721 = vadd.f32 0.0, %v1720
      %1722 = vmatmul.f32.gmra.mxu0 %v1232
      %v1723 = vpop.f32.mrf.mxu0
      %v1724 = vadd.f32 0.0, %v1723
      %1725 = vmatmul.f32.gmra.mxu0 %v1234
      %v1726 = vpop.f32.mrf.mxu0
      %v1727 = vadd.f32 0.0, %v1726
      %1728 = vmatmul.f32.gmra.mxu0 %v1236
      %v1729 = vpop.f32.mrf.mxu0
      %v1730 = vadd.f32 0.0, %v1729
      %1731 = vmatmul.f32.gmra.mxu0 %v1238
      %v1732 = vpop.f32.mrf.mxu0
      %v1733 = vadd.f32 0.0, %v1732
      %1734 = vmatmul.f32.gmra.mxu0 %v1240
      %v1735 = vpop.f32.mrf.mxu0
      %v1736 = vadd.f32 0.0, %v1735
      %1737 = vmatmul.f32.gmra.mxu0 %v1242
      %v1738 = vpop.f32.mrf.mxu0
      %v1739 = vadd.f32 0.0, %v1738
      %1740 = vmatmul.f32.gmra.mxu0 %v1244
      %v1741 = vpop.f32.mrf.mxu0
      %v1742 = vadd.f32 0.0, %v1741
      %1743 = vmatmul.f32.gmra.mxu0 %v1630
      %v1744 = vpop.f32.mrf.mxu0
      %v1745 = vadd.f32 0.0, %v1744
      %1746 = vmatmul.f32.gmra.mxu0 %v1632
      %v1747 = vpop.f32.mrf.mxu0
      %v1748 = vadd.f32 0.0, %v1747
      %1749 = vdwg.mxu0
      %v1750 = vadd.f32 %v1596, %v1655
      %v1751 = vadd.f32 %v1597, %v1658
      %v1752 = vadd.f32 %v1598, %v1661
      %v1753 = vadd.f32 %v1599, %v1664
      %v1754 = vadd.f32 %v1600, %v1667
      %v1755 = vadd.f32 %v1601, %v1670
      %v1756 = vadd.f32 %v1602, %v1673
      %v1757 = vadd.f32 %v1603, %v1676
      %v1758 = vadd.f32 %v1604, %v1679
      %v1759 = vadd.f32 %v1605, %v1682
      %v1760 = vadd.f32 %v1606, %v1685
      %v1761 = vadd.f32 %v1607, %v1688
      %v1762 = vadd.f32 %v1608, %v1691
      %v1763 = vadd.f32 %v1609, %v1694
      %v1764 = vadd.f32 %v1610, %v1697
      %v1765 = vadd.f32 %v1611, %v1700
      %v1766 = vadd.f32 %v1612, %v1703
      %v1767 = vadd.f32 %v1613, %v1706
      %v1768 = vadd.f32 %v1614, %v1709
      %v1769 = vadd.f32 %v1615, %v1712
      %v1770 = vadd.f32 %v1616, %v1715
      %v1771 = vadd.f32 %v1617, %v1718
      %v1772 = vadd.f32 %v1618, %v1721
      %v1773 = vadd.f32 %v1619, %v1724
      %v1774 = vadd.f32 %v1620, %v1727
      %v1775 = vadd.f32 %v1621, %v1730
      %v1776 = vadd.f32 %v1622, %v1733
      %v1777 = vadd.f32 %v1623, %v1736
      %v1778 = vadd.f32 %v1624, %v1739
      %v1779 = vadd.f32 %v1625, %v1742
      %v1780 = vadd.f32 %v1626, %v1745
      %v1781 = vadd.f32 %v1627, %v1748
      %s1782 = scalar_lea.vmem %s181, 256
      %1783 = vst.msk [vmem:[%s1782] sm:$0xff] %vm476, %v1750
      %1784 = vst.msk [vmem:[%s1782 + $0x8] sm:$0xff] %vm476, %v1751
      %1785 = vst.msk [vmem:[%s1782 + $0x10] sm:$0xff] %vm476, %v1752
      %1786 = vst.msk [vmem:[%s1782 + $0x18] sm:$0xff] %vm476, %v1753
      %1787 = vst.msk [vmem:[%s1782 + $0x20] sm:$0xff] %vm476, %v1754
      %1788 = vst.msk [vmem:[%s1782 + $0x28] sm:$0xff] %vm476, %v1755
      %1789 = vst.msk [vmem:[%s1782 + $0x30] sm:$0xff] %vm476, %v1756
      %1790 = vst.msk [vmem:[%s1782 + $0x38] sm:$0xff] %vm476, %v1757
      %1791 = vst.msk [vmem:[%s1782 + $0x40] sm:$0xff] %vm476, %v1758
      %1792 = vst.msk [vmem:[%s1782 + $0x48] sm:$0xff] %vm476, %v1759
      %1793 = vst.msk [vmem:[%s1782 + $0x50] sm:$0xff] %vm476, %v1760
      %1794 = vst.msk [vmem:[%s1782 + $0x58] sm:$0xff] %vm476, %v1761
      %1795 = vst.msk [vmem:[%s1782 + $0x60] sm:$0xff] %vm476, %v1762
      %1796 = vst.msk [vmem:[%s1782 + $0x68] sm:$0xff] %vm476, %v1763
      %1797 = vst.msk [vmem:[%s1782 + $0x70] sm:$0xff] %vm476, %v1764
      %1798 = vst.msk [vmem:[%s1782 + $0x78] sm:$0xff] %vm476, %v1765
      %1799 = vst.msk [vmem:[%s1782 + $0x80] sm:$0xff] %vm476, %v1766
      %1800 = vst.msk [vmem:[%s1782 + $0x88] sm:$0xff] %vm476, %v1767
      %1801 = vst.msk [vmem:[%s1782 + $0x90] sm:$0xff] %vm476, %v1768
      %1802 = vst.msk [vmem:[%s1782 + $0x98] sm:$0xff] %vm476, %v1769
      %1803 = vst.msk [vmem:[%s1782 + $0xa0] sm:$0xff] %vm476, %v1770
      %1804 = vst.msk [vmem:[%s1782 + $0xa8] sm:$0xff] %vm476, %v1771
      %1805 = vst.msk [vmem:[%s1782 + $0xb0] sm:$0xff] %vm476, %v1772
      %1806 = vst.msk [vmem:[%s1782 + $0xb8] sm:$0xff] %vm476, %v1773
      %1807 = vst.msk [vmem:[%s1782 + $0xc0] sm:$0xff] %vm476, %v1774
      %1808 = vst.msk [vmem:[%s1782 + $0xc8] sm:$0xff] %vm476, %v1775
      %1809 = vst.msk [vmem:[%s1782 + $0xd0] sm:$0xff] %vm476, %v1776
      %1810 = vst.msk [vmem:[%s1782 + $0xd8] sm:$0xff] %vm476, %v1777
      %1811 = vst.msk [vmem:[%s1782 + $0xe0] sm:$0xff] %vm476, %v1778
      %1812 = vst.msk [vmem:[%s1782 + $0xe8] sm:$0xff] %vm476, %v1779
      %1813 = vst.msk [vmem:[%s1782 + $0xf0] sm:$0xff] %vm476, %v1780
      %1814 = vst.msk [vmem:[%s1782 + $0xf8] sm:$0xff] %vm476, %v1781
      %s1815 = scalar_lea.vmem %s1, 32
      %v1816 = vld [vmem:[%s1815] sm:$0xf]
      %s1817 = scalar_lea.vmem %s1, 36
      %v1818 = vld [vmem:[%s1817] sm:$0xf]
      %v1820 = vsel %vm541, %v1818, 0
      %1822 = vmatpush.msra.mxu0 0.0
      %1823 = vmatpush.msra.mxu0 0.0
      %1824 = vmatpush.msra.mxu0 0.0
      %1825 = vmatpush.msra.mxu0 0.0
      %1826 = vmatpush.msra.mxu0 0.0
      %1827 = vmatpush.msra.mxu0 0.0
      %1828 = vmatpush.msra.mxu0 0.0
      %1829 = vmatpush.msra.mxu0 0.0
      %1830 = vmatpush.msra.mxu0 0.0
      %1831 = vmatpush.msra.mxu0 0.0
      %1832 = vmatpush.msra.mxu0 0.0
      %1833 = vmatpush.msra.mxu0 0.0
      %1834 = vmatpush.msra.mxu0 0.0
      %1835 = vmatpush.msra.mxu0 0.0
      %1836 = vmatpush.msra.mxu0 0.0
      %1837 = vmatpush.msra.mxu0 %v1820
      %1838 = vmatmul.f32.gmra.mxu0 %v481
      %v1839 = vpop.f32.mrf.mxu0
      %v1840 = vadd.f32 0.0, %v1839
      %1841 = vmatmul.f32.gmra.mxu0 %v483
      %v1842 = vpop.f32.mrf.mxu0
      %v1843 = vadd.f32 0.0, %v1842
      %1844 = vmatmul.f32.gmra.mxu0 %v485
      %v1845 = vpop.f32.mrf.mxu0
      %v1846 = vadd.f32 0.0, %v1845
      %1847 = vmatmul.f32.gmra.mxu0 %v487
      %v1848 = vpop.f32.mrf.mxu0
      %v1849 = vadd.f32 0.0, %v1848
      %1850 = vmatmul.f32.gmra.mxu0 %v489
      %v1851 = vpop.f32.mrf.mxu0
      %v1852 = vadd.f32 0.0, %v1851
      %1853 = vmatmul.f32.gmra.mxu0 %v491
      %v1854 = vpop.f32.mrf.mxu0
      %v1855 = vadd.f32 0.0, %v1854
      %1856 = vmatmul.f32.gmra.mxu0 %v493
      %v1857 = vpop.f32.mrf.mxu0
      %v1858 = vadd.f32 0.0, %v1857
      %1859 = vmatmul.f32.gmra.mxu0 %v495
      %v1860 = vpop.f32.mrf.mxu0
      %v1861 = vadd.f32 0.0, %v1860
      %1862 = vmatmul.f32.gmra.mxu0 %v497
      %v1863 = vpop.f32.mrf.mxu0
      %v1864 = vadd.f32 0.0, %v1863
      %1865 = vmatmul.f32.gmra.mxu0 %v499
      %v1866 = vpop.f32.mrf.mxu0
      %v1867 = vadd.f32 0.0, %v1866
      %1868 = vmatmul.f32.gmra.mxu0 %v501
      %v1869 = vpop.f32.mrf.mxu0
      %v1870 = vadd.f32 0.0, %v1869
      %1871 = vmatmul.f32.gmra.mxu0 %v503
      %v1872 = vpop.f32.mrf.mxu0
      %v1873 = vadd.f32 0.0, %v1872
      %1874 = vmatmul.f32.gmra.mxu0 %v505
      %v1875 = vpop.f32.mrf.mxu0
      %v1876 = vadd.f32 0.0, %v1875
      %1877 = vmatmul.f32.gmra.mxu0 %v507
      %v1878 = vpop.f32.mrf.mxu0
      %v1879 = vadd.f32 0.0, %v1878
      %1880 = vmatmul.f32.gmra.mxu0 %v509
      %v1881 = vpop.f32.mrf.mxu0
      %v1882 = vadd.f32 0.0, %v1881
      %1883 = vmatmul.f32.gmra.mxu0 %v511
      %v1884 = vpop.f32.mrf.mxu0
      %v1885 = vadd.f32 0.0, %v1884
      %1886 = vmatmul.f32.gmra.mxu0 %v513
      %v1887 = vpop.f32.mrf.mxu0
      %v1888 = vadd.f32 0.0, %v1887
      %1889 = vmatmul.f32.gmra.mxu0 %v515
      %v1890 = vpop.f32.mrf.mxu0
      %v1891 = vadd.f32 0.0, %v1890
      %1892 = vmatmul.f32.gmra.mxu0 %v517
      %v1893 = vpop.f32.mrf.mxu0
      %v1894 = vadd.f32 0.0, %v1893
      %1895 = vmatmul.f32.gmra.mxu0 %v519
      %v1896 = vpop.f32.mrf.mxu0
      %v1897 = vadd.f32 0.0, %v1896
      %1898 = vmatmul.f32.gmra.mxu0 %v521
      %v1899 = vpop.f32.mrf.mxu0
      %v1900 = vadd.f32 0.0, %v1899
      %1901 = vmatmul.f32.gmra.mxu0 %v523
      %v1902 = vpop.f32.mrf.mxu0
      %v1903 = vadd.f32 0.0, %v1902
      %1904 = vmatmul.f32.gmra.mxu0 %v525
      %v1905 = vpop.f32.mrf.mxu0
      %v1906 = vadd.f32 0.0, %v1905
      %1907 = vmatmul.f32.gmra.mxu0 %v527
      %v1908 = vpop.f32.mrf.mxu0
      %v1909 = vadd.f32 0.0, %v1908
      %1910 = vmatmul.f32.gmra.mxu0 %v529
      %v1911 = vpop.f32.mrf.mxu0
      %v1912 = vadd.f32 0.0, %v1911
      %1913 = vmatmul.f32.gmra.mxu0 %v531
      %v1914 = vpop.f32.mrf.mxu0
      %v1915 = vadd.f32 0.0, %v1914
      %1916 = vmatmul.f32.gmra.mxu0 %v533
      %v1917 = vpop.f32.mrf.mxu0
      %v1918 = vadd.f32 0.0, %v1917
      %1919 = vmatmul.f32.gmra.mxu0 %v535
      %v1920 = vpop.f32.mrf.mxu0
      %v1921 = vadd.f32 0.0, %v1920
      %1922 = vmatmul.f32.gmra.mxu0 %v537
      %v1923 = vpop.f32.mrf.mxu0
      %v1924 = vadd.f32 0.0, %v1923
      %1925 = vmatmul.f32.gmra.mxu0 %v539
      %v1926 = vpop.f32.mrf.mxu0
      %v1927 = vadd.f32 0.0, %v1926
      %1928 = vmatmul.f32.gmra.mxu0 %v994
      %v1929 = vpop.f32.mrf.mxu0
      %v1930 = vadd.f32 0.0, %v1929
      %1931 = vmatmul.f32.gmra.mxu0 %v996
      %v1932 = vpop.f32.mrf.mxu0
      %v1933 = vadd.f32 0.0, %v1932
      %1934 = vdwg.mxu0
      %v1936 = vsel %vm541, %v1816, 0
      %1938 = vmatpush.msra.mxu0 0.0
      %1939 = vmatpush.msra.mxu0 0.0
      %1940 = vmatpush.msra.mxu0 0.0
      %1941 = vmatpush.msra.mxu0 0.0
      %1942 = vmatpush.msra.mxu0 0.0
      %1943 = vmatpush.msra.mxu0 0.0
      %1944 = vmatpush.msra.mxu0 0.0
      %1945 = vmatpush.msra.mxu0 0.0
      %1946 = vmatpush.msra.mxu0 0.0
      %1947 = vmatpush.msra.mxu0 0.0
      %1948 = vmatpush.msra.mxu0 0.0
      %1949 = vmatpush.msra.mxu0 0.0
      %1950 = vmatpush.msra.mxu0 0.0
      %1951 = vmatpush.msra.mxu0 0.0
      %1952 = vmatpush.msra.mxu0 0.0
      %1953 = vmatpush.msra.mxu0 %v1936
      %1954 = vmatmul.f32.gmra.mxu0 %v662
      %v1955 = vpop.f32.mrf.mxu0
      %v1956 = vadd.f32 %v1840, %v1955
      %1957 = vmatmul.f32.gmra.mxu0 %v664
      %v1958 = vpop.f32.mrf.mxu0
      %v1959 = vadd.f32 %v1843, %v1958
      %1960 = vmatmul.f32.gmra.mxu0 %v666
      %v1961 = vpop.f32.mrf.mxu0
      %v1962 = vadd.f32 %v1846, %v1961
      %1963 = vmatmul.f32.gmra.mxu0 %v668
      %v1964 = vpop.f32.mrf.mxu0
      %v1965 = vadd.f32 %v1849, %v1964
      %1966 = vmatmul.f32.gmra.mxu0 %v670
      %v1967 = vpop.f32.mrf.mxu0
      %v1968 = vadd.f32 %v1852, %v1967
      %1969 = vmatmul.f32.gmra.mxu0 %v672
      %v1970 = vpop.f32.mrf.mxu0
      %v1971 = vadd.f32 %v1855, %v1970
      %1972 = vmatmul.f32.gmra.mxu0 %v674
      %v1973 = vpop.f32.mrf.mxu0
      %v1974 = vadd.f32 %v1858, %v1973
      %1975 = vmatmul.f32.gmra.mxu0 %v676
      %v1976 = vpop.f32.mrf.mxu0
      %v1977 = vadd.f32 %v1861, %v1976
      %1978 = vmatmul.f32.gmra.mxu0 %v678
      %v1979 = vpop.f32.mrf.mxu0
      %v1980 = vadd.f32 %v1864, %v1979
      %1981 = vmatmul.f32.gmra.mxu0 %v680
      %v1982 = vpop.f32.mrf.mxu0
      %v1983 = vadd.f32 %v1867, %v1982
      %1984 = vmatmul.f32.gmra.mxu0 %v682
      %v1985 = vpop.f32.mrf.mxu0
      %v1986 = vadd.f32 %v1870, %v1985
      %1987 = vmatmul.f32.gmra.mxu0 %v684
      %v1988 = vpop.f32.mrf.mxu0
      %v1989 = vadd.f32 %v1873, %v1988
      %1990 = vmatmul.f32.gmra.mxu0 %v686
      %v1991 = vpop.f32.mrf.mxu0
      %v1992 = vadd.f32 %v1876, %v1991
      %1993 = vmatmul.f32.gmra.mxu0 %v688
      %v1994 = vpop.f32.mrf.mxu0
      %v1995 = vadd.f32 %v1879, %v1994
      %1996 = vmatmul.f32.gmra.mxu0 %v690
      %v1997 = vpop.f32.mrf.mxu0
      %v1998 = vadd.f32 %v1882, %v1997
      %1999 = vmatmul.f32.gmra.mxu0 %v692
      %v2000 = vpop.f32.mrf.mxu0
      %v2001 = vadd.f32 %v1885, %v2000
      %2002 = vmatmul.f32.gmra.mxu0 %v694
      %v2003 = vpop.f32.mrf.mxu0
      %v2004 = vadd.f32 %v1888, %v2003
      %2005 = vmatmul.f32.gmra.mxu0 %v696
      %v2006 = vpop.f32.mrf.mxu0
      %v2007 = vadd.f32 %v1891, %v2006
      %2008 = vmatmul.f32.gmra.mxu0 %v698
      %v2009 = vpop.f32.mrf.mxu0
      %v2010 = vadd.f32 %v1894, %v2009
      %2011 = vmatmul.f32.gmra.mxu0 %v700
      %v2012 = vpop.f32.mrf.mxu0
      %v2013 = vadd.f32 %v1897, %v2012
      %2014 = vmatmul.f32.gmra.mxu0 %v702
      %v2015 = vpop.f32.mrf.mxu0
      %v2016 = vadd.f32 %v1900, %v2015
      %2017 = vmatmul.f32.gmra.mxu0 %v704
      %v2018 = vpop.f32.mrf.mxu0
      %v2019 = vadd.f32 %v1903, %v2018
      %2020 = vmatmul.f32.gmra.mxu0 %v706
      %v2021 = vpop.f32.mrf.mxu0
      %v2022 = vadd.f32 %v1906, %v2021
      %2023 = vmatmul.f32.gmra.mxu0 %v708
      %v2024 = vpop.f32.mrf.mxu0
      %v2025 = vadd.f32 %v1909, %v2024
      %2026 = vmatmul.f32.gmra.mxu0 %v710
      %v2027 = vpop.f32.mrf.mxu0
      %v2028 = vadd.f32 %v1912, %v2027
      %2029 = vmatmul.f32.gmra.mxu0 %v712
      %v2030 = vpop.f32.mrf.mxu0
      %v2031 = vadd.f32 %v1915, %v2030
      %2032 = vmatmul.f32.gmra.mxu0 %v714
      %v2033 = vpop.f32.mrf.mxu0
      %v2034 = vadd.f32 %v1918, %v2033
      %2035 = vmatmul.f32.gmra.mxu0 %v716
      %v2036 = vpop.f32.mrf.mxu0
      %v2037 = vadd.f32 %v1921, %v2036
      %2038 = vmatmul.f32.gmra.mxu0 %v718
      %v2039 = vpop.f32.mrf.mxu0
      %v2040 = vadd.f32 %v1924, %v2039
      %2041 = vmatmul.f32.gmra.mxu0 %v720
      %v2042 = vpop.f32.mrf.mxu0
      %v2043 = vadd.f32 %v1927, %v2042
      %2044 = vmatmul.f32.gmra.mxu0 %v840
      %v2045 = vpop.f32.mrf.mxu0
      %v2046 = vadd.f32 %v1930, %v2045
      %2047 = vmatmul.f32.gmra.mxu0 %v842
      %v2048 = vpop.f32.mrf.mxu0
      %v2049 = vadd.f32 %v1933, %v2048
      %2050 = vdwg.mxu0
      %s2051 = scalar_lea.vmem %s1, 40
      %v2052 = vld [vmem:[%s2051] sm:$0xf]
      %v2053 = vsel %vm476, %v234, 0
      %v2055 = vsel %vm476, %v235, 0
      %v2058 = vsel %vm541, %v2052, 0
      %2060 = vmatpush.msra.mxu0 0.0
      %2061 = vmatpush.msra.mxu0 0.0
      %2062 = vmatpush.msra.mxu0 0.0
      %2063 = vmatpush.msra.mxu0 0.0
      %2064 = vmatpush.msra.mxu0 0.0
      %2065 = vmatpush.msra.mxu0 0.0
      %2066 = vmatpush.msra.mxu0 0.0
      %2067 = vmatpush.msra.mxu0 0.0
      %2068 = vmatpush.msra.mxu0 0.0
      %2069 = vmatpush.msra.mxu0 0.0
      %2070 = vmatpush.msra.mxu0 0.0
      %2071 = vmatpush.msra.mxu0 0.0
      %2072 = vmatpush.msra.mxu0 0.0
      %2073 = vmatpush.msra.mxu0 0.0
      %2074 = vmatpush.msra.mxu0 0.0
      %2075 = vmatpush.msra.mxu0 %v2058
      %2076 = vmatmul.f32.gmra.mxu0 %v666
      %v2077 = vpop.f32.mrf.mxu0
      %v2078 = vadd.f32 0.0, %v2077
      %2079 = vmatmul.f32.gmra.mxu0 %v668
      %v2080 = vpop.f32.mrf.mxu0
      %v2081 = vadd.f32 0.0, %v2080
      %2082 = vmatmul.f32.gmra.mxu0 %v670
      %v2083 = vpop.f32.mrf.mxu0
      %v2084 = vadd.f32 0.0, %v2083
      %2085 = vmatmul.f32.gmra.mxu0 %v672
      %v2086 = vpop.f32.mrf.mxu0
      %v2087 = vadd.f32 0.0, %v2086
      %2088 = vmatmul.f32.gmra.mxu0 %v674
      %v2089 = vpop.f32.mrf.mxu0
      %v2090 = vadd.f32 0.0, %v2089
      %2091 = vmatmul.f32.gmra.mxu0 %v676
      %v2092 = vpop.f32.mrf.mxu0
      %v2093 = vadd.f32 0.0, %v2092
      %2094 = vmatmul.f32.gmra.mxu0 %v678
      %v2095 = vpop.f32.mrf.mxu0
      %v2096 = vadd.f32 0.0, %v2095
      %2097 = vmatmul.f32.gmra.mxu0 %v680
      %v2098 = vpop.f32.mrf.mxu0
      %v2099 = vadd.f32 0.0, %v2098
      %2100 = vmatmul.f32.gmra.mxu0 %v682
      %v2101 = vpop.f32.mrf.mxu0
      %v2102 = vadd.f32 0.0, %v2101
      %2103 = vmatmul.f32.gmra.mxu0 %v684
      %v2104 = vpop.f32.mrf.mxu0
      %v2105 = vadd.f32 0.0, %v2104
      %2106 = vmatmul.f32.gmra.mxu0 %v686
      %v2107 = vpop.f32.mrf.mxu0
      %v2108 = vadd.f32 0.0, %v2107
      %2109 = vmatmul.f32.gmra.mxu0 %v688
      %v2110 = vpop.f32.mrf.mxu0
      %v2111 = vadd.f32 0.0, %v2110
      %2112 = vmatmul.f32.gmra.mxu0 %v690
      %v2113 = vpop.f32.mrf.mxu0
      %v2114 = vadd.f32 0.0, %v2113
      %2115 = vmatmul.f32.gmra.mxu0 %v692
      %v2116 = vpop.f32.mrf.mxu0
      %v2117 = vadd.f32 0.0, %v2116
      %2118 = vmatmul.f32.gmra.mxu0 %v694
      %v2119 = vpop.f32.mrf.mxu0
      %v2120 = vadd.f32 0.0, %v2119
      %2121 = vmatmul.f32.gmra.mxu0 %v696
      %v2122 = vpop.f32.mrf.mxu0
      %v2123 = vadd.f32 0.0, %v2122
      %2124 = vmatmul.f32.gmra.mxu0 %v698
      %v2125 = vpop.f32.mrf.mxu0
      %v2126 = vadd.f32 0.0, %v2125
      %2127 = vmatmul.f32.gmra.mxu0 %v700
      %v2128 = vpop.f32.mrf.mxu0
      %v2129 = vadd.f32 0.0, %v2128
      %2130 = vmatmul.f32.gmra.mxu0 %v702
      %v2131 = vpop.f32.mrf.mxu0
      %v2132 = vadd.f32 0.0, %v2131
      %2133 = vmatmul.f32.gmra.mxu0 %v704
      %v2134 = vpop.f32.mrf.mxu0
      %v2135 = vadd.f32 0.0, %v2134
      %2136 = vmatmul.f32.gmra.mxu0 %v706
      %v2137 = vpop.f32.mrf.mxu0
      %v2138 = vadd.f32 0.0, %v2137
      %2139 = vmatmul.f32.gmra.mxu0 %v708
      %v2140 = vpop.f32.mrf.mxu0
      %v2141 = vadd.f32 0.0, %v2140
      %2142 = vmatmul.f32.gmra.mxu0 %v710
      %v2143 = vpop.f32.mrf.mxu0
      %v2144 = vadd.f32 0.0, %v2143
      %2145 = vmatmul.f32.gmra.mxu0 %v712
      %v2146 = vpop.f32.mrf.mxu0
      %v2147 = vadd.f32 0.0, %v2146
      %2148 = vmatmul.f32.gmra.mxu0 %v714
      %v2149 = vpop.f32.mrf.mxu0
      %v2150 = vadd.f32 0.0, %v2149
      %2151 = vmatmul.f32.gmra.mxu0 %v716
      %v2152 = vpop.f32.mrf.mxu0
      %v2153 = vadd.f32 0.0, %v2152
      %2154 = vmatmul.f32.gmra.mxu0 %v718
      %v2155 = vpop.f32.mrf.mxu0
      %v2156 = vadd.f32 0.0, %v2155
      %2157 = vmatmul.f32.gmra.mxu0 %v720
      %v2158 = vpop.f32.mrf.mxu0
      %v2159 = vadd.f32 0.0, %v2158
      %2160 = vmatmul.f32.gmra.mxu0 %v840
      %v2161 = vpop.f32.mrf.mxu0
      %v2162 = vadd.f32 0.0, %v2161
      %2163 = vmatmul.f32.gmra.mxu0 %v842
      %v2164 = vpop.f32.mrf.mxu0
      %v2165 = vadd.f32 0.0, %v2164
      %2166 = vmatmul.f32.gmra.mxu0 %v2053
      %v2167 = vpop.f32.mrf.mxu0
      %v2168 = vadd.f32 0.0, %v2167
      %2169 = vmatmul.f32.gmra.mxu0 %v2055
      %v2170 = vpop.f32.mrf.mxu0
      %v2171 = vadd.f32 0.0, %v2170
      %2172 = vdwg.mxu0
      %v2173 = vadd.f32 %v1956, %v2078
      %v2174 = vadd.f32 %v1959, %v2081
      %v2175 = vadd.f32 %v1962, %v2084
      %v2176 = vadd.f32 %v1965, %v2087
      %v2177 = vadd.f32 %v1968, %v2090
      %v2178 = vadd.f32 %v1971, %v2093
      %v2179 = vadd.f32 %v1974, %v2096
      %v2180 = vadd.f32 %v1977, %v2099
      %v2181 = vadd.f32 %v1980, %v2102
      %v2182 = vadd.f32 %v1983, %v2105
      %v2183 = vadd.f32 %v1986, %v2108
      %v2184 = vadd.f32 %v1989, %v2111
      %v2185 = vadd.f32 %v1992, %v2114
      %v2186 = vadd.f32 %v1995, %v2117
      %v2187 = vadd.f32 %v1998, %v2120
      %v2188 = vadd.f32 %v2001, %v2123
      %v2189 = vadd.f32 %v2004, %v2126
      %v2190 = vadd.f32 %v2007, %v2129
      %v2191 = vadd.f32 %v2010, %v2132
      %v2192 = vadd.f32 %v2013, %v2135
      %v2193 = vadd.f32 %v2016, %v2138
      %v2194 = vadd.f32 %v2019, %v2141
      %v2195 = vadd.f32 %v2022, %v2144
      %v2196 = vadd.f32 %v2025, %v2147
      %v2197 = vadd.f32 %v2028, %v2150
      %v2198 = vadd.f32 %v2031, %v2153
      %v2199 = vadd.f32 %v2034, %v2156
      %v2200 = vadd.f32 %v2037, %v2159
      %v2201 = vadd.f32 %v2040, %v2162
      %v2202 = vadd.f32 %v2043, %v2165
      %v2203 = vadd.f32 %v2046, %v2168
      %v2204 = vadd.f32 %v2049, %v2171
      %s2205 = scalar_lea.vmem %s1, 44
      %v2206 = vld [vmem:[%s2205] sm:$0xf]
      %v2207 = vsel %vm476, %v465, 0
      %v2209 = vsel %vm476, %v467, 0
      %v2212 = vsel %vm541, %v2206, 0
      %2214 = vmatpush.msra.mxu0 0.0
      %2215 = vmatpush.msra.mxu0 0.0
      %2216 = vmatpush.msra.mxu0 0.0
      %2217 = vmatpush.msra.mxu0 0.0
      %2218 = vmatpush.msra.mxu0 0.0
      %2219 = vmatpush.msra.mxu0 0.0
      %2220 = vmatpush.msra.mxu0 0.0
      %2221 = vmatpush.msra.mxu0 0.0
      %2222 = vmatpush.msra.mxu0 0.0
      %2223 = vmatpush.msra.mxu0 0.0
      %2224 = vmatpush.msra.mxu0 0.0
      %2225 = vmatpush.msra.mxu0 0.0
      %2226 = vmatpush.msra.mxu0 0.0
      %2227 = vmatpush.msra.mxu0 0.0
      %2228 = vmatpush.msra.mxu0 0.0
      %2229 = vmatpush.msra.mxu0 %v2212
      %2230 = vmatmul.f32.gmra.mxu0 %v485
      %v2231 = vpop.f32.mrf.mxu0
      %v2232 = vadd.f32 0.0, %v2231
      %2233 = vmatmul.f32.gmra.mxu0 %v487
      %v2234 = vpop.f32.mrf.mxu0
      %v2235 = vadd.f32 0.0, %v2234
      %2236 = vmatmul.f32.gmra.mxu0 %v489
      %v2237 = vpop.f32.mrf.mxu0
      %v2238 = vadd.f32 0.0, %v2237
      %2239 = vmatmul.f32.gmra.mxu0 %v491
      %v2240 = vpop.f32.mrf.mxu0
      %v2241 = vadd.f32 0.0, %v2240
      %2242 = vmatmul.f32.gmra.mxu0 %v493
      %v2243 = vpop.f32.mrf.mxu0
      %v2244 = vadd.f32 0.0, %v2243
      %2245 = vmatmul.f32.gmra.mxu0 %v495
      %v2246 = vpop.f32.mrf.mxu0
      %v2247 = vadd.f32 0.0, %v2246
      %2248 = vmatmul.f32.gmra.mxu0 %v497
      %v2249 = vpop.f32.mrf.mxu0
      %v2250 = vadd.f32 0.0, %v2249
      %2251 = vmatmul.f32.gmra.mxu0 %v499
      %v2252 = vpop.f32.mrf.mxu0
      %v2253 = vadd.f32 0.0, %v2252
      %2254 = vmatmul.f32.gmra.mxu0 %v501
      %v2255 = vpop.f32.mrf.mxu0
      %v2256 = vadd.f32 0.0, %v2255
      %2257 = vmatmul.f32.gmra.mxu0 %v503
      %v2258 = vpop.f32.mrf.mxu0
      %v2259 = vadd.f32 0.0, %v2258
      %2260 = vmatmul.f32.gmra.mxu0 %v505
      %v2261 = vpop.f32.mrf.mxu0
      %v2262 = vadd.f32 0.0, %v2261
      %2263 = vmatmul.f32.gmra.mxu0 %v507
      %v2264 = vpop.f32.mrf.mxu0
      %v2265 = vadd.f32 0.0, %v2264
      %2266 = vmatmul.f32.gmra.mxu0 %v509
      %v2267 = vpop.f32.mrf.mxu0
      %v2268 = vadd.f32 0.0, %v2267
      %2269 = vmatmul.f32.gmra.mxu0 %v511
      %v2270 = vpop.f32.mrf.mxu0
      %v2271 = vadd.f32 0.0, %v2270
      %2272 = vmatmul.f32.gmra.mxu0 %v513
      %v2273 = vpop.f32.mrf.mxu0
      %v2274 = vadd.f32 0.0, %v2273
      %2275 = vmatmul.f32.gmra.mxu0 %v515
      %v2276 = vpop.f32.mrf.mxu0
      %v2277 = vadd.f32 0.0, %v2276
      %2278 = vmatmul.f32.gmra.mxu0 %v517
      %v2279 = vpop.f32.mrf.mxu0
      %v2280 = vadd.f32 0.0, %v2279
      %2281 = vmatmul.f32.gmra.mxu0 %v519
      %v2282 = vpop.f32.mrf.mxu0
      %v2283 = vadd.f32 0.0, %v2282
      %2284 = vmatmul.f32.gmra.mxu0 %v521
      %v2285 = vpop.f32.mrf.mxu0
      %v2286 = vadd.f32 0.0, %v2285
      %2287 = vmatmul.f32.gmra.mxu0 %v523
      %v2288 = vpop.f32.mrf.mxu0
      %v2289 = vadd.f32 0.0, %v2288
      %2290 = vmatmul.f32.gmra.mxu0 %v525
      %v2291 = vpop.f32.mrf.mxu0
      %v2292 = vadd.f32 0.0, %v2291
      %2293 = vmatmul.f32.gmra.mxu0 %v527
      %v2294 = vpop.f32.mrf.mxu0
      %v2295 = vadd.f32 0.0, %v2294
      %2296 = vmatmul.f32.gmra.mxu0 %v529
      %v2297 = vpop.f32.mrf.mxu0
      %v2298 = vadd.f32 0.0, %v2297
      %2299 = vmatmul.f32.gmra.mxu0 %v531
      %v2300 = vpop.f32.mrf.mxu0
      %v2301 = vadd.f32 0.0, %v2300
      %2302 = vmatmul.f32.gmra.mxu0 %v533
      %v2303 = vpop.f32.mrf.mxu0
      %v2304 = vadd.f32 0.0, %v2303
      %2305 = vmatmul.f32.gmra.mxu0 %v535
      %v2306 = vpop.f32.mrf.mxu0
      %v2307 = vadd.f32 0.0, %v2306
      %2308 = vmatmul.f32.gmra.mxu0 %v537
      %v2309 = vpop.f32.mrf.mxu0
      %v2310 = vadd.f32 0.0, %v2309
      %2311 = vmatmul.f32.gmra.mxu0 %v539
      %v2312 = vpop.f32.mrf.mxu0
      %v2313 = vadd.f32 0.0, %v2312
      %2314 = vmatmul.f32.gmra.mxu0 %v994
      %v2315 = vpop.f32.mrf.mxu0
      %v2316 = vadd.f32 0.0, %v2315
      %2317 = vmatmul.f32.gmra.mxu0 %v996
      %v2318 = vpop.f32.mrf.mxu0
      %v2319 = vadd.f32 0.0, %v2318
      %2320 = vmatmul.f32.gmra.mxu0 %v2207
      %v2321 = vpop.f32.mrf.mxu0
      %v2322 = vadd.f32 0.0, %v2321
      %2323 = vmatmul.f32.gmra.mxu0 %v2209
      %v2324 = vpop.f32.mrf.mxu0
      %v2325 = vadd.f32 0.0, %v2324
      %2326 = vdwg.mxu0
      %v2327 = vadd.f32 %v2173, %v2232
      %v2328 = vadd.f32 %v2174, %v2235
      %v2329 = vadd.f32 %v2175, %v2238
      %v2330 = vadd.f32 %v2176, %v2241
      %v2331 = vadd.f32 %v2177, %v2244
      %v2332 = vadd.f32 %v2178, %v2247
      %v2333 = vadd.f32 %v2179, %v2250
      %v2334 = vadd.f32 %v2180, %v2253
      %v2335 = vadd.f32 %v2181, %v2256
      %v2336 = vadd.f32 %v2182, %v2259
      %v2337 = vadd.f32 %v2183, %v2262
      %v2338 = vadd.f32 %v2184, %v2265
      %v2339 = vadd.f32 %v2185, %v2268
      %v2340 = vadd.f32 %v2186, %v2271
      %v2341 = vadd.f32 %v2187, %v2274
      %v2342 = vadd.f32 %v2188, %v2277
      %v2343 = vadd.f32 %v2189, %v2280
      %v2344 = vadd.f32 %v2190, %v2283
      %v2345 = vadd.f32 %v2191, %v2286
      %v2346 = vadd.f32 %v2192, %v2289
      %v2347 = vadd.f32 %v2193, %v2292
      %v2348 = vadd.f32 %v2194, %v2295
      %v2349 = vadd.f32 %v2195, %v2298
      %v2350 = vadd.f32 %v2196, %v2301
      %v2351 = vadd.f32 %v2197, %v2304
      %v2352 = vadd.f32 %v2198, %v2307
      %v2353 = vadd.f32 %v2199, %v2310
      %v2354 = vadd.f32 %v2200, %v2313
      %v2355 = vadd.f32 %v2201, %v2316
      %v2356 = vadd.f32 %v2202, %v2319
      %v2357 = vadd.f32 %v2203, %v2322
      %v2358 = vadd.f32 %v2204, %v2325
      %s2359 = scalar_lea.vmem %s181, 512
      %2360 = vst.msk [vmem:[%s2359] sm:$0xff] %vm476, %v2327
      %2361 = vst.msk [vmem:[%s2359 + $0x8] sm:$0xff] %vm476, %v2328
      %2362 = vst.msk [vmem:[%s2359 + $0x10] sm:$0xff] %vm476, %v2329
      %2363 = vst.msk [vmem:[%s2359 + $0x18] sm:$0xff] %vm476, %v2330
      %2364 = vst.msk [vmem:[%s2359 + $0x20] sm:$0xff] %vm476, %v2331
      %2365 = vst.msk [vmem:[%s2359 + $0x28] sm:$0xff] %vm476, %v2332
      %2366 = vst.msk [vmem:[%s2359 + $0x30] sm:$0xff] %vm476, %v2333
      %2367 = vst.msk [vmem:[%s2359 + $0x38] sm:$0xff] %vm476, %v2334
      %2368 = vst.msk [vmem:[%s2359 + $0x40] sm:$0xff] %vm476, %v2335
      %2369 = vst.msk [vmem:[%s2359 + $0x48] sm:$0xff] %vm476, %v2336
      %2370 = vst.msk [vmem:[%s2359 + $0x50] sm:$0xff] %vm476, %v2337
      %2371 = vst.msk [vmem:[%s2359 + $0x58] sm:$0xff] %vm476, %v2338
      %2372 = vst.msk [vmem:[%s2359 + $0x60] sm:$0xff] %vm476, %v2339
      %2373 = vst.msk [vmem:[%s2359 + $0x68] sm:$0xff] %vm476, %v2340
      %2374 = vst.msk [vmem:[%s2359 + $0x70] sm:$0xff] %vm476, %v2341
      %2375 = vst.msk [vmem:[%s2359 + $0x78] sm:$0xff] %vm476, %v2342
      %2376 = vst.msk [vmem:[%s2359 + $0x80] sm:$0xff] %vm476, %v2343
      %2377 = vst.msk [vmem:[%s2359 + $0x88] sm:$0xff] %vm476, %v2344
      %2378 = vst.msk [vmem:[%s2359 + $0x90] sm:$0xff] %vm476, %v2345
      %2379 = vst.msk [vmem:[%s2359 + $0x98] sm:$0xff] %vm476, %v2346
      %2380 = vst.msk [vmem:[%s2359 + $0xa0] sm:$0xff] %vm476, %v2347
      %2381 = vst.msk [vmem:[%s2359 + $0xa8] sm:$0xff] %vm476, %v2348
      %2382 = vst.msk [vmem:[%s2359 + $0xb0] sm:$0xff] %vm476, %v2349
      %2383 = vst.msk [vmem:[%s2359 + $0xb8] sm:$0xff] %vm476, %v2350
      %2384 = vst.msk [vmem:[%s2359 + $0xc0] sm:$0xff] %vm476, %v2351
      %2385 = vst.msk [vmem:[%s2359 + $0xc8] sm:$0xff] %vm476, %v2352
      %2386 = vst.msk [vmem:[%s2359 + $0xd0] sm:$0xff] %vm476, %v2353
      %2387 = vst.msk [vmem:[%s2359 + $0xd8] sm:$0xff] %vm476, %v2354
      %2388 = vst.msk [vmem:[%s2359 + $0xe0] sm:$0xff] %vm476, %v2355
      %2389 = vst.msk [vmem:[%s2359 + $0xe8] sm:$0xff] %vm476, %v2356
      %2390 = vst.msk [vmem:[%s2359 + $0xf0] sm:$0xff] %vm476, %v2357
      %2391 = vst.msk [vmem:[%s2359 + $0xf8] sm:$0xff] %vm476, %v2358
      %s2392 = scalar_lea.vmem %s1, 48
      %v2393 = vld [vmem:[%s2392] sm:$0xf]
      %s2394 = scalar_lea.vmem %s1, 52
      %v2395 = vld [vmem:[%s2394] sm:$0xf]
      %v2397 = vsel %vm541, %v2395, 0
      %2399 = vmatpush.msra.mxu0 0.0
      %2400 = vmatpush.msra.mxu0 0.0
      %2401 = vmatpush.msra.mxu0 0.0
      %2402 = vmatpush.msra.mxu0 0.0
      %2403 = vmatpush.msra.mxu0 0.0
      %2404 = vmatpush.msra.mxu0 0.0
      %2405 = vmatpush.msra.mxu0 0.0
      %2406 = vmatpush.msra.mxu0 0.0
      %2407 = vmatpush.msra.mxu0 0.0
      %2408 = vmatpush.msra.mxu0 0.0
      %2409 = vmatpush.msra.mxu0 0.0
      %2410 = vmatpush.msra.mxu0 0.0
      %2411 = vmatpush.msra.mxu0 0.0
      %2412 = vmatpush.msra.mxu0 0.0
      %2413 = vmatpush.msra.mxu0 0.0
      %2414 = vmatpush.msra.mxu0 %v2397
      %2415 = vmatmul.f32.gmra.mxu0 %v1186
      %v2416 = vpop.f32.mrf.mxu0
      %v2417 = vadd.f32 0.0, %v2416
      %2418 = vmatmul.f32.gmra.mxu0 %v1188
      %v2419 = vpop.f32.mrf.mxu0
      %v2420 = vadd.f32 0.0, %v2419
      %2421 = vmatmul.f32.gmra.mxu0 %v1190
      %v2422 = vpop.f32.mrf.mxu0
      %v2423 = vadd.f32 0.0, %v2422
      %2424 = vmatmul.f32.gmra.mxu0 %v1192
      %v2425 = vpop.f32.mrf.mxu0
      %v2426 = vadd.f32 0.0, %v2425
      %2427 = vmatmul.f32.gmra.mxu0 %v1194
      %v2428 = vpop.f32.mrf.mxu0
      %v2429 = vadd.f32 0.0, %v2428
      %2430 = vmatmul.f32.gmra.mxu0 %v1196
      %v2431 = vpop.f32.mrf.mxu0
      %v2432 = vadd.f32 0.0, %v2431
      %2433 = vmatmul.f32.gmra.mxu0 %v1198
      %v2434 = vpop.f32.mrf.mxu0
      %v2435 = vadd.f32 0.0, %v2434
      %2436 = vmatmul.f32.gmra.mxu0 %v1200
      %v2437 = vpop.f32.mrf.mxu0
      %v2438 = vadd.f32 0.0, %v2437
      %2439 = vmatmul.f32.gmra.mxu0 %v1202
      %v2440 = vpop.f32.mrf.mxu0
      %v2441 = vadd.f32 0.0, %v2440
      %2442 = vmatmul.f32.gmra.mxu0 %v1204
      %v2443 = vpop.f32.mrf.mxu0
      %v2444 = vadd.f32 0.0, %v2443
      %2445 = vmatmul.f32.gmra.mxu0 %v1206
      %v2446 = vpop.f32.mrf.mxu0
      %v2447 = vadd.f32 0.0, %v2446
      %2448 = vmatmul.f32.gmra.mxu0 %v1208
      %v2449 = vpop.f32.mrf.mxu0
      %v2450 = vadd.f32 0.0, %v2449
      %2451 = vmatmul.f32.gmra.mxu0 %v1210
      %v2452 = vpop.f32.mrf.mxu0
      %v2453 = vadd.f32 0.0, %v2452
      %2454 = vmatmul.f32.gmra.mxu0 %v1212
      %v2455 = vpop.f32.mrf.mxu0
      %v2456 = vadd.f32 0.0, %v2455
      %2457 = vmatmul.f32.gmra.mxu0 %v1214
      %v2458 = vpop.f32.mrf.mxu0
      %v2459 = vadd.f32 0.0, %v2458
      %2460 = vmatmul.f32.gmra.mxu0 %v1216
      %v2461 = vpop.f32.mrf.mxu0
      %v2462 = vadd.f32 0.0, %v2461
      %2463 = vmatmul.f32.gmra.mxu0 %v1218
      %v2464 = vpop.f32.mrf.mxu0
      %v2465 = vadd.f32 0.0, %v2464
      %2466 = vmatmul.f32.gmra.mxu0 %v1220
      %v2467 = vpop.f32.mrf.mxu0
      %v2468 = vadd.f32 0.0, %v2467
      %2469 = vmatmul.f32.gmra.mxu0 %v1222
      %v2470 = vpop.f32.mrf.mxu0
      %v2471 = vadd.f32 0.0, %v2470
      %2472 = vmatmul.f32.gmra.mxu0 %v1224
      %v2473 = vpop.f32.mrf.mxu0
      %v2474 = vadd.f32 0.0, %v2473
      %2475 = vmatmul.f32.gmra.mxu0 %v1226
      %v2476 = vpop.f32.mrf.mxu0
      %v2477 = vadd.f32 0.0, %v2476
      %2478 = vmatmul.f32.gmra.mxu0 %v1228
      %v2479 = vpop.f32.mrf.mxu0
      %v2480 = vadd.f32 0.0, %v2479
      %2481 = vmatmul.f32.gmra.mxu0 %v1230
      %v2482 = vpop.f32.mrf.mxu0
      %v2483 = vadd.f32 0.0, %v2482
      %2484 = vmatmul.f32.gmra.mxu0 %v1232
      %v2485 = vpop.f32.mrf.mxu0
      %v2486 = vadd.f32 0.0, %v2485
      %2487 = vmatmul.f32.gmra.mxu0 %v1234
      %v2488 = vpop.f32.mrf.mxu0
      %v2489 = vadd.f32 0.0, %v2488
      %2490 = vmatmul.f32.gmra.mxu0 %v1236
      %v2491 = vpop.f32.mrf.mxu0
      %v2492 = vadd.f32 0.0, %v2491
      %2493 = vmatmul.f32.gmra.mxu0 %v1238
      %v2494 = vpop.f32.mrf.mxu0
      %v2495 = vadd.f32 0.0, %v2494
      %2496 = vmatmul.f32.gmra.mxu0 %v1240
      %v2497 = vpop.f32.mrf.mxu0
      %v2498 = vadd.f32 0.0, %v2497
      %2499 = vmatmul.f32.gmra.mxu0 %v1242
      %v2500 = vpop.f32.mrf.mxu0
      %v2501 = vadd.f32 0.0, %v2500
      %2502 = vmatmul.f32.gmra.mxu0 %v1244
      %v2503 = vpop.f32.mrf.mxu0
      %v2504 = vadd.f32 0.0, %v2503
      %2505 = vmatmul.f32.gmra.mxu0 %v1630
      %v2506 = vpop.f32.mrf.mxu0
      %v2507 = vadd.f32 0.0, %v2506
      %2508 = vmatmul.f32.gmra.mxu0 %v1632
      %v2509 = vpop.f32.mrf.mxu0
      %v2510 = vadd.f32 0.0, %v2509
      %2511 = vdwg.mxu0
      %v2513 = vsel %vm541, %v2393, 0
      %2515 = vmatpush.msra.mxu0 0.0
      %2516 = vmatpush.msra.mxu0 0.0
      %2517 = vmatpush.msra.mxu0 0.0
      %2518 = vmatpush.msra.mxu0 0.0
      %2519 = vmatpush.msra.mxu0 0.0
      %2520 = vmatpush.msra.mxu0 0.0
      %2521 = vmatpush.msra.mxu0 0.0
      %2522 = vmatpush.msra.mxu0 0.0
      %2523 = vmatpush.msra.mxu0 0.0
      %2524 = vmatpush.msra.mxu0 0.0
      %2525 = vmatpush.msra.mxu0 0.0
      %2526 = vmatpush.msra.mxu0 0.0
      %2527 = vmatpush.msra.mxu0 0.0
      %2528 = vmatpush.msra.mxu0 0.0
      %2529 = vmatpush.msra.mxu0 0.0
      %2530 = vmatpush.msra.mxu0 %v2513
      %2531 = vmatmul.f32.gmra.mxu0 %v481
      %v2532 = vpop.f32.mrf.mxu0
      %v2533 = vadd.f32 %v2417, %v2532
      %2534 = vmatmul.f32.gmra.mxu0 %v483
      %v2535 = vpop.f32.mrf.mxu0
      %v2536 = vadd.f32 %v2420, %v2535
      %2537 = vmatmul.f32.gmra.mxu0 %v485
      %v2538 = vpop.f32.mrf.mxu0
      %v2539 = vadd.f32 %v2423, %v2538
      %2540 = vmatmul.f32.gmra.mxu0 %v487
      %v2541 = vpop.f32.mrf.mxu0
      %v2542 = vadd.f32 %v2426, %v2541
      %2543 = vmatmul.f32.gmra.mxu0 %v489
      %v2544 = vpop.f32.mrf.mxu0
      %v2545 = vadd.f32 %v2429, %v2544
      %2546 = vmatmul.f32.gmra.mxu0 %v491
      %v2547 = vpop.f32.mrf.mxu0
      %v2548 = vadd.f32 %v2432, %v2547
      %2549 = vmatmul.f32.gmra.mxu0 %v493
      %v2550 = vpop.f32.mrf.mxu0
      %v2551 = vadd.f32 %v2435, %v2550
      %2552 = vmatmul.f32.gmra.mxu0 %v495
      %v2553 = vpop.f32.mrf.mxu0
      %v2554 = vadd.f32 %v2438, %v2553
      %2555 = vmatmul.f32.gmra.mxu0 %v497
      %v2556 = vpop.f32.mrf.mxu0
      %v2557 = vadd.f32 %v2441, %v2556
      %2558 = vmatmul.f32.gmra.mxu0 %v499
      %v2559 = vpop.f32.mrf.mxu0
      %v2560 = vadd.f32 %v2444, %v2559
      %2561 = vmatmul.f32.gmra.mxu0 %v501
      %v2562 = vpop.f32.mrf.mxu0
      %v2563 = vadd.f32 %v2447, %v2562
      %2564 = vmatmul.f32.gmra.mxu0 %v503
      %v2565 = vpop.f32.mrf.mxu0
      %v2566 = vadd.f32 %v2450, %v2565
      %2567 = vmatmul.f32.gmra.mxu0 %v505
      %v2568 = vpop.f32.mrf.mxu0
      %v2569 = vadd.f32 %v2453, %v2568
      %2570 = vmatmul.f32.gmra.mxu0 %v507
      %v2571 = vpop.f32.mrf.mxu0
      %v2572 = vadd.f32 %v2456, %v2571
      %2573 = vmatmul.f32.gmra.mxu0 %v509
      %v2574 = vpop.f32.mrf.mxu0
      %v2575 = vadd.f32 %v2459, %v2574
      %2576 = vmatmul.f32.gmra.mxu0 %v511
      %v2577 = vpop.f32.mrf.mxu0
      %v2578 = vadd.f32 %v2462, %v2577
      %2579 = vmatmul.f32.gmra.mxu0 %v513
      %v2580 = vpop.f32.mrf.mxu0
      %v2581 = vadd.f32 %v2465, %v2580
      %2582 = vmatmul.f32.gmra.mxu0 %v515
      %v2583 = vpop.f32.mrf.mxu0
      %v2584 = vadd.f32 %v2468, %v2583
      %2585 = vmatmul.f32.gmra.mxu0 %v517
      %v2586 = vpop.f32.mrf.mxu0
      %v2587 = vadd.f32 %v2471, %v2586
      %2588 = vmatmul.f32.gmra.mxu0 %v519
      %v2589 = vpop.f32.mrf.mxu0
      %v2590 = vadd.f32 %v2474, %v2589
      %2591 = vmatmul.f32.gmra.mxu0 %v521
      %v2592 = vpop.f32.mrf.mxu0
      %v2593 = vadd.f32 %v2477, %v2592
      %2594 = vmatmul.f32.gmra.mxu0 %v523
      %v2595 = vpop.f32.mrf.mxu0
      %v2596 = vadd.f32 %v2480, %v2595
      %2597 = vmatmul.f32.gmra.mxu0 %v525
      %v2598 = vpop.f32.mrf.mxu0
      %v2599 = vadd.f32 %v2483, %v2598
      %2600 = vmatmul.f32.gmra.mxu0 %v527
      %v2601 = vpop.f32.mrf.mxu0
      %v2602 = vadd.f32 %v2486, %v2601
      %2603 = vmatmul.f32.gmra.mxu0 %v529
      %v2604 = vpop.f32.mrf.mxu0
      %v2605 = vadd.f32 %v2489, %v2604
      %2606 = vmatmul.f32.gmra.mxu0 %v531
      %v2607 = vpop.f32.mrf.mxu0
      %v2608 = vadd.f32 %v2492, %v2607
      %2609 = vmatmul.f32.gmra.mxu0 %v533
      %v2610 = vpop.f32.mrf.mxu0
      %v2611 = vadd.f32 %v2495, %v2610
      %2612 = vmatmul.f32.gmra.mxu0 %v535
      %v2613 = vpop.f32.mrf.mxu0
      %v2614 = vadd.f32 %v2498, %v2613
      %2615 = vmatmul.f32.gmra.mxu0 %v537
      %v2616 = vpop.f32.mrf.mxu0
      %v2617 = vadd.f32 %v2501, %v2616
      %2618 = vmatmul.f32.gmra.mxu0 %v539
      %v2619 = vpop.f32.mrf.mxu0
      %v2620 = vadd.f32 %v2504, %v2619
      %2621 = vmatmul.f32.gmra.mxu0 %v994
      %v2622 = vpop.f32.mrf.mxu0
      %v2623 = vadd.f32 %v2507, %v2622
      %2624 = vmatmul.f32.gmra.mxu0 %v996
      %v2625 = vpop.f32.mrf.mxu0
      %v2626 = vadd.f32 %v2510, %v2625
      %2627 = vdwg.mxu0
      %s2628 = scalar_lea.vmem %s1, 56
      %v2629 = vld [vmem:[%s2628] sm:$0xf]
      %v2631 = vsel %vm541, %v2629, 0
      %2633 = vmatpush.msra.mxu0 0.0
      %2634 = vmatpush.msra.mxu0 0.0
      %2635 = vmatpush.msra.mxu0 0.0
      %2636 = vmatpush.msra.mxu0 0.0
      %2637 = vmatpush.msra.mxu0 0.0
      %2638 = vmatpush.msra.mxu0 0.0
      %2639 = vmatpush.msra.mxu0 0.0
      %2640 = vmatpush.msra.mxu0 0.0
      %2641 = vmatpush.msra.mxu0 0.0
      %2642 = vmatpush.msra.mxu0 0.0
      %2643 = vmatpush.msra.mxu0 0.0
      %2644 = vmatpush.msra.mxu0 0.0
      %2645 = vmatpush.msra.mxu0 0.0
      %2646 = vmatpush.msra.mxu0 0.0
      %2647 = vmatpush.msra.mxu0 0.0
      %2648 = vmatpush.msra.mxu0 %v2631
      %2649 = vmatmul.f32.gmra.mxu0 %v485
      %v2650 = vpop.f32.mrf.mxu0
      %v2651 = vadd.f32 0.0, %v2650
      %2652 = vmatmul.f32.gmra.mxu0 %v487
      %v2653 = vpop.f32.mrf.mxu0
      %v2654 = vadd.f32 0.0, %v2653
      %2655 = vmatmul.f32.gmra.mxu0 %v489
      %v2656 = vpop.f32.mrf.mxu0
      %v2657 = vadd.f32 0.0, %v2656
      %2658 = vmatmul.f32.gmra.mxu0 %v491
      %v2659 = vpop.f32.mrf.mxu0
      %v2660 = vadd.f32 0.0, %v2659
      %2661 = vmatmul.f32.gmra.mxu0 %v493
      %v2662 = vpop.f32.mrf.mxu0
      %v2663 = vadd.f32 0.0, %v2662
      %2664 = vmatmul.f32.gmra.mxu0 %v495
      %v2665 = vpop.f32.mrf.mxu0
      %v2666 = vadd.f32 0.0, %v2665
      %2667 = vmatmul.f32.gmra.mxu0 %v497
      %v2668 = vpop.f32.mrf.mxu0
      %v2669 = vadd.f32 0.0, %v2668
      %2670 = vmatmul.f32.gmra.mxu0 %v499
      %v2671 = vpop.f32.mrf.mxu0
      %v2672 = vadd.f32 0.0, %v2671
      %2673 = vmatmul.f32.gmra.mxu0 %v501
      %v2674 = vpop.f32.mrf.mxu0
      %v2675 = vadd.f32 0.0, %v2674
      %2676 = vmatmul.f32.gmra.mxu0 %v503
      %v2677 = vpop.f32.mrf.mxu0
      %v2678 = vadd.f32 0.0, %v2677
      %2679 = vmatmul.f32.gmra.mxu0 %v505
      %v2680 = vpop.f32.mrf.mxu0
      %v2681 = vadd.f32 0.0, %v2680
      %2682 = vmatmul.f32.gmra.mxu0 %v507
      %v2683 = vpop.f32.mrf.mxu0
      %v2684 = vadd.f32 0.0, %v2683
      %2685 = vmatmul.f32.gmra.mxu0 %v509
      %v2686 = vpop.f32.mrf.mxu0
      %v2687 = vadd.f32 0.0, %v2686
      %2688 = vmatmul.f32.gmra.mxu0 %v511
      %v2689 = vpop.f32.mrf.mxu0
      %v2690 = vadd.f32 0.0, %v2689
      %2691 = vmatmul.f32.gmra.mxu0 %v513
      %v2692 = vpop.f32.mrf.mxu0
      %v2693 = vadd.f32 0.0, %v2692
      %2694 = vmatmul.f32.gmra.mxu0 %v515
      %v2695 = vpop.f32.mrf.mxu0
      %v2696 = vadd.f32 0.0, %v2695
      %2697 = vmatmul.f32.gmra.mxu0 %v517
      %v2698 = vpop.f32.mrf.mxu0
      %v2699 = vadd.f32 0.0, %v2698
      %2700 = vmatmul.f32.gmra.mxu0 %v519
      %v2701 = vpop.f32.mrf.mxu0
      %v2702 = vadd.f32 0.0, %v2701
      %2703 = vmatmul.f32.gmra.mxu0 %v521
      %v2704 = vpop.f32.mrf.mxu0
      %v2705 = vadd.f32 0.0, %v2704
      %2706 = vmatmul.f32.gmra.mxu0 %v523
      %v2707 = vpop.f32.mrf.mxu0
      %v2708 = vadd.f32 0.0, %v2707
      %2709 = vmatmul.f32.gmra.mxu0 %v525
      %v2710 = vpop.f32.mrf.mxu0
      %v2711 = vadd.f32 0.0, %v2710
      %2712 = vmatmul.f32.gmra.mxu0 %v527
      %v2713 = vpop.f32.mrf.mxu0
      %v2714 = vadd.f32 0.0, %v2713
      %2715 = vmatmul.f32.gmra.mxu0 %v529
      %v2716 = vpop.f32.mrf.mxu0
      %v2717 = vadd.f32 0.0, %v2716
      %2718 = vmatmul.f32.gmra.mxu0 %v531
      %v2719 = vpop.f32.mrf.mxu0
      %v2720 = vadd.f32 0.0, %v2719
      %2721 = vmatmul.f32.gmra.mxu0 %v533
      %v2722 = vpop.f32.mrf.mxu0
      %v2723 = vadd.f32 0.0, %v2722
      %2724 = vmatmul.f32.gmra.mxu0 %v535
      %v2725 = vpop.f32.mrf.mxu0
      %v2726 = vadd.f32 0.0, %v2725
      %2727 = vmatmul.f32.gmra.mxu0 %v537
      %v2728 = vpop.f32.mrf.mxu0
      %v2729 = vadd.f32 0.0, %v2728
      %2730 = vmatmul.f32.gmra.mxu0 %v539
      %v2731 = vpop.f32.mrf.mxu0
      %v2732 = vadd.f32 0.0, %v2731
      %2733 = vmatmul.f32.gmra.mxu0 %v994
      %v2734 = vpop.f32.mrf.mxu0
      %v2735 = vadd.f32 0.0, %v2734
      %2736 = vmatmul.f32.gmra.mxu0 %v996
      %v2737 = vpop.f32.mrf.mxu0
      %v2738 = vadd.f32 0.0, %v2737
      %2739 = vmatmul.f32.gmra.mxu0 %v2207
      %v2740 = vpop.f32.mrf.mxu0
      %v2741 = vadd.f32 0.0, %v2740
      %2742 = vmatmul.f32.gmra.mxu0 %v2209
      %v2743 = vpop.f32.mrf.mxu0
      %v2744 = vadd.f32 0.0, %v2743
      %2745 = vdwg.mxu0
      %v2746 = vadd.f32 %v2533, %v2651
      %v2747 = vadd.f32 %v2536, %v2654
      %v2748 = vadd.f32 %v2539, %v2657
      %v2749 = vadd.f32 %v2542, %v2660
      %v2750 = vadd.f32 %v2545, %v2663
      %v2751 = vadd.f32 %v2548, %v2666
      %v2752 = vadd.f32 %v2551, %v2669
      %v2753 = vadd.f32 %v2554, %v2672
      %v2754 = vadd.f32 %v2557, %v2675
      %v2755 = vadd.f32 %v2560, %v2678
      %v2756 = vadd.f32 %v2563, %v2681
      %v2757 = vadd.f32 %v2566, %v2684
      %v2758 = vadd.f32 %v2569, %v2687
      %v2759 = vadd.f32 %v2572, %v2690
      %v2760 = vadd.f32 %v2575, %v2693
      %v2761 = vadd.f32 %v2578, %v2696
      %v2762 = vadd.f32 %v2581, %v2699
      %v2763 = vadd.f32 %v2584, %v2702
      %v2764 = vadd.f32 %v2587, %v2705
      %v2765 = vadd.f32 %v2590, %v2708
      %v2766 = vadd.f32 %v2593, %v2711
      %v2767 = vadd.f32 %v2596, %v2714
      %v2768 = vadd.f32 %v2599, %v2717
      %v2769 = vadd.f32 %v2602, %v2720
      %v2770 = vadd.f32 %v2605, %v2723
      %v2771 = vadd.f32 %v2608, %v2726
      %v2772 = vadd.f32 %v2611, %v2729
      %v2773 = vadd.f32 %v2614, %v2732
      %v2774 = vadd.f32 %v2617, %v2735
      %v2775 = vadd.f32 %v2620, %v2738
      %v2776 = vadd.f32 %v2623, %v2741
      %v2777 = vadd.f32 %v2626, %v2744
      %s2778 = scalar_lea.vmem %s1, 60
      %v2779 = vld [vmem:[%s2778] sm:$0xf]
      %v2780 = vsel %vm476, %v470, 0
      %v2782 = vsel %vm476, %v472, 0
      %v2785 = vsel %vm541, %v2779, 0
      %2787 = vmatpush.msra.mxu0 0.0
      %2788 = vmatpush.msra.mxu0 0.0
      %2789 = vmatpush.msra.mxu0 0.0
      %2790 = vmatpush.msra.mxu0 0.0
      %2791 = vmatpush.msra.mxu0 0.0
      %2792 = vmatpush.msra.mxu0 0.0
      %2793 = vmatpush.msra.mxu0 0.0
      %2794 = vmatpush.msra.mxu0 0.0
      %2795 = vmatpush.msra.mxu0 0.0
      %2796 = vmatpush.msra.mxu0 0.0
      %2797 = vmatpush.msra.mxu0 0.0
      %2798 = vmatpush.msra.mxu0 0.0
      %2799 = vmatpush.msra.mxu0 0.0
      %2800 = vmatpush.msra.mxu0 0.0
      %2801 = vmatpush.msra.mxu0 0.0
      %2802 = vmatpush.msra.mxu0 %v2785
      %2803 = vmatmul.f32.gmra.mxu0 %v1190
      %v2804 = vpop.f32.mrf.mxu0
      %v2805 = vadd.f32 0.0, %v2804
      %2806 = vmatmul.f32.gmra.mxu0 %v1192
      %v2807 = vpop.f32.mrf.mxu0
      %v2808 = vadd.f32 0.0, %v2807
      %2809 = vmatmul.f32.gmra.mxu0 %v1194
      %v2810 = vpop.f32.mrf.mxu0
      %v2811 = vadd.f32 0.0, %v2810
      %2812 = vmatmul.f32.gmra.mxu0 %v1196
      %v2813 = vpop.f32.mrf.mxu0
      %v2814 = vadd.f32 0.0, %v2813
      %2815 = vmatmul.f32.gmra.mxu0 %v1198
      %v2816 = vpop.f32.mrf.mxu0
      %v2817 = vadd.f32 0.0, %v2816
      %2818 = vmatmul.f32.gmra.mxu0 %v1200
      %v2819 = vpop.f32.mrf.mxu0
      %v2820 = vadd.f32 0.0, %v2819
      %2821 = vmatmul.f32.gmra.mxu0 %v1202
      %v2822 = vpop.f32.mrf.mxu0
      %v2823 = vadd.f32 0.0, %v2822
      %2824 = vmatmul.f32.gmra.mxu0 %v1204
      %v2825 = vpop.f32.mrf.mxu0
      %v2826 = vadd.f32 0.0, %v2825
      %2827 = vmatmul.f32.gmra.mxu0 %v1206
      %v2828 = vpop.f32.mrf.mxu0
      %v2829 = vadd.f32 0.0, %v2828
      %2830 = vmatmul.f32.gmra.mxu0 %v1208
      %v2831 = vpop.f32.mrf.mxu0
      %v2832 = vadd.f32 0.0, %v2831
      %2833 = vmatmul.f32.gmra.mxu0 %v1210
      %v2834 = vpop.f32.mrf.mxu0
      %v2835 = vadd.f32 0.0, %v2834
      %2836 = vmatmul.f32.gmra.mxu0 %v1212
      %v2837 = vpop.f32.mrf.mxu0
      %v2838 = vadd.f32 0.0, %v2837
      %2839 = vmatmul.f32.gmra.mxu0 %v1214
      %v2840 = vpop.f32.mrf.mxu0
      %v2841 = vadd.f32 0.0, %v2840
      %2842 = vmatmul.f32.gmra.mxu0 %v1216
      %v2843 = vpop.f32.mrf.mxu0
      %v2844 = vadd.f32 0.0, %v2843
      %2845 = vmatmul.f32.gmra.mxu0 %v1218
      %v2846 = vpop.f32.mrf.mxu0
      %v2847 = vadd.f32 0.0, %v2846
      %2848 = vmatmul.f32.gmra.mxu0 %v1220
      %v2849 = vpop.f32.mrf.mxu0
      %v2850 = vadd.f32 0.0, %v2849
      %2851 = vmatmul.f32.gmra.mxu0 %v1222
      %v2852 = vpop.f32.mrf.mxu0
      %v2853 = vadd.f32 0.0, %v2852
      %2854 = vmatmul.f32.gmra.mxu0 %v1224
      %v2855 = vpop.f32.mrf.mxu0
      %v2856 = vadd.f32 0.0, %v2855
      %2857 = vmatmul.f32.gmra.mxu0 %v1226
      %v2858 = vpop.f32.mrf.mxu0
      %v2859 = vadd.f32 0.0, %v2858
      %2860 = vmatmul.f32.gmra.mxu0 %v1228
      %v2861 = vpop.f32.mrf.mxu0
      %v2862 = vadd.f32 0.0, %v2861
      %2863 = vmatmul.f32.gmra.mxu0 %v1230
      %v2864 = vpop.f32.mrf.mxu0
      %v2865 = vadd.f32 0.0, %v2864
      %2866 = vmatmul.f32.gmra.mxu0 %v1232
      %v2867 = vpop.f32.mrf.mxu0
      %v2868 = vadd.f32 0.0, %v2867
      %2869 = vmatmul.f32.gmra.mxu0 %v1234
      %v2870 = vpop.f32.mrf.mxu0
      %v2871 = vadd.f32 0.0, %v2870
      %2872 = vmatmul.f32.gmra.mxu0 %v1236
      %v2873 = vpop.f32.mrf.mxu0
      %v2874 = vadd.f32 0.0, %v2873
      %2875 = vmatmul.f32.gmra.mxu0 %v1238
      %v2876 = vpop.f32.mrf.mxu0
      %v2877 = vadd.f32 0.0, %v2876
      %2878 = vmatmul.f32.gmra.mxu0 %v1240
      %v2879 = vpop.f32.mrf.mxu0
      %v2880 = vadd.f32 0.0, %v2879
      %2881 = vmatmul.f32.gmra.mxu0 %v1242
      %v2882 = vpop.f32.mrf.mxu0
      %v2883 = vadd.f32 0.0, %v2882
      %2884 = vmatmul.f32.gmra.mxu0 %v1244
      %v2885 = vpop.f32.mrf.mxu0
      %v2886 = vadd.f32 0.0, %v2885
      %2887 = vmatmul.f32.gmra.mxu0 %v1630
      %v2888 = vpop.f32.mrf.mxu0
      %v2889 = vadd.f32 0.0, %v2888
      %2890 = vmatmul.f32.gmra.mxu0 %v1632
      %v2891 = vpop.f32.mrf.mxu0
      %v2892 = vadd.f32 0.0, %v2891
      %2893 = vmatmul.f32.gmra.mxu0 %v2780
      %v2894 = vpop.f32.mrf.mxu0
      %v2895 = vadd.f32 0.0, %v2894
      %2896 = vmatmul.f32.gmra.mxu0 %v2782
      %v2897 = vpop.f32.mrf.mxu0
      %v2898 = vadd.f32 0.0, %v2897
      %2899 = vdwg.mxu0
      %v2900 = vadd.f32 %v2746, %v2805
      %v2901 = vadd.f32 %v2747, %v2808
      %v2902 = vadd.f32 %v2748, %v2811
      %v2903 = vadd.f32 %v2749, %v2814
      %v2904 = vadd.f32 %v2750, %v2817
      %v2905 = vadd.f32 %v2751, %v2820
      %v2906 = vadd.f32 %v2752, %v2823
      %v2907 = vadd.f32 %v2753, %v2826
      %v2908 = vadd.f32 %v2754, %v2829
      %v2909 = vadd.f32 %v2755, %v2832
      %v2910 = vadd.f32 %v2756, %v2835
      %v2911 = vadd.f32 %v2757, %v2838
      %v2912 = vadd.f32 %v2758, %v2841
      %v2913 = vadd.f32 %v2759, %v2844
      %v2914 = vadd.f32 %v2760, %v2847
      %v2915 = vadd.f32 %v2761, %v2850
      %v2916 = vadd.f32 %v2762, %v2853
      %v2917 = vadd.f32 %v2763, %v2856
      %v2918 = vadd.f32 %v2764, %v2859
      %v2919 = vadd.f32 %v2765, %v2862
      %v2920 = vadd.f32 %v2766, %v2865
      %v2921 = vadd.f32 %v2767, %v2868
      %v2922 = vadd.f32 %v2768, %v2871
      %v2923 = vadd.f32 %v2769, %v2874
      %v2924 = vadd.f32 %v2770, %v2877
      %v2925 = vadd.f32 %v2771, %v2880
      %v2926 = vadd.f32 %v2772, %v2883
      %v2927 = vadd.f32 %v2773, %v2886
      %v2928 = vadd.f32 %v2774, %v2889
      %v2929 = vadd.f32 %v2775, %v2892
      %v2930 = vadd.f32 %v2776, %v2895
      %v2931 = vadd.f32 %v2777, %v2898
      %s2932 = scalar_lea.vmem %s181, 768
      %2933 = vst.msk [vmem:[%s2932] sm:$0xff] %vm476, %v2900
      %2934 = vst.msk [vmem:[%s2932 + $0x8] sm:$0xff] %vm476, %v2901
      %2935 = vst.msk [vmem:[%s2932 + $0x10] sm:$0xff] %vm476, %v2902
      %2936 = vst.msk [vmem:[%s2932 + $0x18] sm:$0xff] %vm476, %v2903
      %2937 = vst.msk [vmem:[%s2932 + $0x20] sm:$0xff] %vm476, %v2904
      %2938 = vst.msk [vmem:[%s2932 + $0x28] sm:$0xff] %vm476, %v2905
      %2939 = vst.msk [vmem:[%s2932 + $0x30] sm:$0xff] %vm476, %v2906
      %2940 = vst.msk [vmem:[%s2932 + $0x38] sm:$0xff] %vm476, %v2907
      %2941 = vst.msk [vmem:[%s2932 + $0x40] sm:$0xff] %vm476, %v2908
      %2942 = vst.msk [vmem:[%s2932 + $0x48] sm:$0xff] %vm476, %v2909
      %2943 = vst.msk [vmem:[%s2932 + $0x50] sm:$0xff] %vm476, %v2910
      %2944 = vst.msk [vmem:[%s2932 + $0x58] sm:$0xff] %vm476, %v2911
      %2945 = vst.msk [vmem:[%s2932 + $0x60] sm:$0xff] %vm476, %v2912
      %2946 = vst.msk [vmem:[%s2932 + $0x68] sm:$0xff] %vm476, %v2913
      %2947 = vst.msk [vmem:[%s2932 + $0x70] sm:$0xff] %vm476, %v2914
      %2948 = vst.msk [vmem:[%s2932 + $0x78] sm:$0xff] %vm476, %v2915
      %2949 = vst.msk [vmem:[%s2932 + $0x80] sm:$0xff] %vm476, %v2916
      %2950 = vst.msk [vmem:[%s2932 + $0x88] sm:$0xff] %vm476, %v2917
      %2951 = vst.msk [vmem:[%s2932 + $0x90] sm:$0xff] %vm476, %v2918
      %2952 = vst.msk [vmem:[%s2932 + $0x98] sm:$0xff] %vm476, %v2919
      %2953 = vst.msk [vmem:[%s2932 + $0xa0] sm:$0xff] %vm476, %v2920
      %2954 = vst.msk [vmem:[%s2932 + $0xa8] sm:$0xff] %vm476, %v2921
      %2955 = vst.msk [vmem:[%s2932 + $0xb0] sm:$0xff] %vm476, %v2922
      %2956 = vst.msk [vmem:[%s2932 + $0xb8] sm:$0xff] %vm476, %v2923
      %2957 = vst.msk [vmem:[%s2932 + $0xc0] sm:$0xff] %vm476, %v2924
      %2958 = vst.msk [vmem:[%s2932 + $0xc8] sm:$0xff] %vm476, %v2925
      %2959 = vst.msk [vmem:[%s2932 + $0xd0] sm:$0xff] %vm476, %v2926
      %2960 = vst.msk [vmem:[%s2932 + $0xd8] sm:$0xff] %vm476, %v2927
      %2961 = vst.msk [vmem:[%s2932 + $0xe0] sm:$0xff] %vm476, %v2928
      %2962 = vst.msk [vmem:[%s2932 + $0xe8] sm:$0xff] %vm476, %v2929
      %2963 = vst.msk [vmem:[%s2932 + $0xf0] sm:$0xff] %vm476, %v2930
      %2964 = vst.msk [vmem:[%s2932 + $0xf8] sm:$0xff] %vm476, %v2931
      %s2965 = smul.u32 16, %s18
      %p2966 = scmp.lt.s32.totalorder %s17, 1
      %s2967 = scalar_select %p2966, %s17, 1
      %p2968 = scmp.lt.s32.totalorder %s2965, 15
      %s2969 = scalar_select %p2968, %s2965, 15
      %s2970 = smul.addr %s2969, 2
      %s2971 = smul.addr %s2967, 128
      %s2972 = sadd.s32 %s2970, %s2971
      %s2973 = smul.addr %s2972, 8
      %s2974 = scalar_lea.vmem %s2, %s2973
      // Predicated region
      $region29: #{pixel_shuffle2d.1} parent=27 // pred_check
        %p2975 = pneg %p94
      $region30: #{pixel_shuffle2d.1} parent=27 // pred_check_branch
        %2977 = sbr.rel (%p2975) target = $region32
      $region31: #{pixel_shuffle2d.1} parent=27 // pred_region
        %s2978 = smul.u32 16, %s18
      $region32: #{pixel_shuffle2d.1} parent=27 // pred_fallthru
        _
    $region28: #{pixel_shuffle2d.1} parent=5 // pred_fallthru
      _
    %p2979 = scmp.le.s32.totalorder 2, %s8
    // Predicated region
    $region33: #{pixel_shuffle2d.1} parent=5 // pred_check
      %p2980 = pneg %p2979
    $region34: #{pixel_shuffle2d.1} parent=5 // pred_check_branch
      %2982 = sbr.rel (%p2980) target = $region36
    $region35: #{pixel_shuffle2d.1} parent=5 // pred_region
      %s2983 = ssub.s32 %s8, 2
      // Predicated region
      $region37: #{pixel_shuffle2d.1} parent=35 // pred_check
        %p2984 = pneg %p100
      $region38: #{pixel_shuffle2d.1} parent=35 // pred_check_branch
        %2986 = sbr.rel (%p2984) target = $region40
      $region39: #{pixel_shuffle2d.1} parent=35 // pred_region
        %s2987 = smul.u32 16, %s20
        %p2988 = scmp.lt.s32.totalorder %s19, 1
        %s2989 = scalar_select %p2988, %s19, 1
        %p2990 = scmp.lt.s32.totalorder %s2987, 15
        %s2991 = scalar_select %p2990, %s2987, 15
        %s2992 = smul.addr %s2991, 2
        %s2993 = smul.addr %s2989, 128
        %s2994 = sadd.s32 %s2992, %s2993
        %s2995 = smul.addr %s2994, 8
        %s2996 = scalar_lea.vmem %s2, %s2995
      $region40: #{pixel_shuffle2d.1} parent=35 // pred_fallthru
        _
    $region36: #{pixel_shuffle2d.1} parent=5 // pred_fallthru
      _
  $region6: #{pixel_shuffle2d.1} parent=0 // loop_footer
    %s12 = sadd.s32 1, %s8
  $region7: #{pixel_shuffle2d.1} parent=0 // loop_footer_branch
    %7 = sbr.rel target = $region3
  $region8: #{pixel_shuffle2d.1} parent=0 // loop_exit
    _

</llo_original>
